<compile_context>
chip_gen: v7x
topology: tpu7x:2x2x1
jax: 0.10.0
libtpu: 0.0.40
codegen_flags: <defaults>
</compile_context>

<pallas_src>
import jax
import jax.numpy as jnp
import numpy as np
from jax import lax
from jax.experimental import pallas as pl
from jax.experimental.pallas import tpu as pltpu

C_OUT = 16   # conv output channels
K = 3        # conv kernel size
EMB = 128    # embedding_dim (module default)


# ---------------------------------------------------------------------------
# Fused kernel: conv(3x3, C_in=1) + bias + ReLU + channel-major flatten +
#               Linear(F -> E), single invocation.
# ---------------------------------------------------------------------------
def fused_encoder_kernel(xs_ref, w9_ref, cb_ref, lw_ref, lb_ref, o_ref):
    # xs_ref: (9, N, HW) f32  VMEM -- 9 shifted input slabs (im2col taps)
    # w9_ref: (9, C_OUT) f32  SMEM -- conv weights, tap-major
    # cb_ref: (C_OUT,)   f32  SMEM -- conv bias
    # lw_ref: (E, F)     bf16 VMEM -- torch Linear weight layout, F = C_OUT*HW
    # lb_ref: (1, E)     f32  VMEM -- linear bias
    # o_ref : (N, E)     f32  VMEM
    ntaps, n, hw = xs_ref.shape
    e = lw_ref.shape[0]
    c_out = w9_ref.shape[1]

    xs = xs_ref[...]                                   # (9, N, HW), loaded once
    acc = jnp.zeros((n, e), jnp.float32)

    for c in range(c_out):                             # static, fully unrolled
        # 3x3 conv for channel c as 9 scalar*vector FMAs on the lane-dense slab
        plane = xs[0] * w9_ref[0, c]
        for t in range(1, ntaps):
            plane = plane + xs[t] * w9_ref[t, c]
        plane = jnp.maximum(plane + cb_ref[c], 0.0)    # bias + ReLU (f32, VPU)

        # channel-c chunk of the Linear weight, torch layout (E, HW); static,
        # lane-aligned slice -> no transpose, contract on dim 1 (MXU).
        wc = lw_ref[:, c * hw:(c + 1) * hw]
        acc = acc + lax.dot_general(
            plane.astype(jnp.bfloat16), wc,
            dimension_numbers=(((1,), (1,)), ((), ())),
            preferred_element_type=jnp.float32)

    o_ref[...] = acc + lb_ref[...]                     # lane-dense (N, 128) store


# ---------------------------------------------------------------------------
# Wrapper: cheap XLA prep (pad + 9 shifted slabs), one pallas_call.
# ---------------------------------------------------------------------------
@jax.jit
def encoder_forward(x, conv_w, conv_b, lin_w_bf16, lin_b):
    """x: (N, 1, H, W) f32.  conv_w: (16, 1, 3, 3), conv_b: (16,),
    lin_w_bf16: (E, F) bf16 (torch Linear layout), lin_b: (E,). -> (N, E) f32."""
    n, cin, h, w = x.shape
    assert cin == 1
    hw = h * w
    e = lin_w_bf16.shape[0]

    xpad = jnp.pad(x[:, 0], ((0, 0), (1, 1), (1, 1)))             # (N, H+2, W+2)
    slabs = jnp.stack(
        [xpad[:, dy:dy + h, dx:dx + w].reshape(n, hw)
         for dy in range(K) for dx in range(K)], axis=0)          # (9, N, HW)

    w9 = conv_w[:, 0].reshape(C_OUT, K * K).T                     # (9, C_OUT)
    lb2 = lin_b.reshape(1, e).astype(jnp.float32)                 # (1, E)

    return pl.pallas_call(
        fused_encoder_kernel,
        out_shape=jax.ShapeDtypeStruct((n, e), jnp.float32),
        in_specs=[
            pl.BlockSpec(memory_space=pltpu.MemorySpace.VMEM),    # slabs (f32)
            pl.BlockSpec(memory_space=pltpu.MemorySpace.SMEM),    # conv w scalars
            pl.BlockSpec(memory_space=pltpu.MemorySpace.SMEM),    # conv b scalars
            pl.BlockSpec(memory_space=pltpu.MemorySpace.VMEM),    # linear w (bf16)
            pl.BlockSpec(memory_space=pltpu.MemorySpace.VMEM),    # linear b
        ],
        out_specs=pl.BlockSpec(memory_space=pltpu.MemorySpace.VMEM),
    )(slabs, w9, conv_b.astype(jnp.float32), lin_w_bf16, lb2)


# ---------------------------------------------------------------------------
# Pure-JAX f32 reference (for a sanity check)
# ---------------------------------------------------------------------------
def encoder_reference(x, conv_w, conv_b, lin_w, lin_b):
    conv = lax.conv_general_dilated(
        x, conv_w, window_strides=(1, 1), padding=((1, 1), (1, 1)),
        dimension_numbers=("NCHW", "OIHW", "NCHW"))
    conv = jnp.maximum(conv + conv_b.reshape(1, -1, 1, 1), 0.0)
    feat = conv.reshape(conv.shape[0], -1)
    return feat @ lin_w.T + lin_b


if __name__ == "__main__":
    N, H, W = 2, 16, 16
    F = C_OUT * H * W  # 4096

    key = jax.random.PRNGKey(0)
    k1, k2, k3, k4, k5 = jax.random.split(key, 5)
    x = jax.random.normal(k1, (N, 1, H, W), jnp.float32)
    conv_w = jax.random.normal(k2, (C_OUT, 1, K, K), jnp.float32) * 0.1
    conv_b = jax.random.normal(k3, (C_OUT,), jnp.float32) * 0.1
    # NOTE: the PyTorch module constructs a fresh Linear inside forward();
    # here its parameters are initialized deterministically once.
    lin_w = jax.random.normal(k4, (EMB, F), jnp.float32) * 0.02
    lin_b = jax.random.normal(k5, (EMB,), jnp.float32) * 0.02

    # Weight carried in bf16 (cast once, outside the forward) -> halves the
    # dominant HBM traffic; the kernel accumulates in f32.
    lin_w_bf16 = lin_w.astype(jnp.bfloat16)

    out = encoder_forward(x, conv_w, conv_b, lin_w_bf16, lin_b)
    out = jax.block_until_ready(out)
    assert out.shape == (N, EMB), out.shape

    ref = encoder_reference(x, conv_w, conv_b, lin_w, lin_b)
    np.testing.assert_allclose(np.asarray(out), np.asarray(ref),
                               rtol=3e-2, atol=3e-2)

    print("KERNEL_OK")
</pallas_src>

<mosaic_0001>
module attributes {stable_mosaic.version = 11 : i64} {
  func.func @fused_encoder_kernel(%arg0: memref<9x2x256xf32, #tpu.memory_space<vmem>>, %arg1: memref<9x16xf32, #tpu.memory_space<smem>>, %arg2: memref<16xf32, #tpu.memory_space<smem>>, %arg3: memref<128x4096xbf16, #tpu.memory_space<vmem>>, %arg4: memref<1x128xf32, #tpu.memory_space<vmem>>, %arg5: memref<2x128xf32, #tpu.memory_space<vmem>>) attributes {dimension_semantics = [], scalar_prefetch = 0 : i64, scratch_operands = 0 : i64, tpu.core_type = #tpu.core_type<tc>} {
    %c0 = arith.constant 0 : index
    %c0_0 = arith.constant 0 : index
    %c0_1 = arith.constant 0 : index
    %0 = vector.load %arg0[%c0, %c0_0, %c0_1] : memref<9x2x256xf32, #tpu.memory_space<vmem>>, vector<9x2x256xf32>
    %cst = arith.constant 0.000000e+00 : f32
    %1 = vector.broadcast %cst : f32 to vector<2x128xf32>
    %2 = vector.extract_strided_slice %0 {offsets = [0, 0, 0], sizes = [1, 2, 256], strides = [1, 1, 1]} : vector<9x2x256xf32> to vector<1x2x256xf32>
    %3 = vector.shape_cast %2 : vector<1x2x256xf32> to vector<2x256xf32>
    %c0_2 = arith.constant 0 : index
    %c0_3 = arith.constant 0 : index
    %4 = memref.load %arg1[%c0_2, %c0_3] : memref<9x16xf32, #tpu.memory_space<smem>>
    %5 = vector.broadcast %4 : f32 to vector<2x256xf32>
    %6 = arith.mulf %3, %5 : vector<2x256xf32>
    %7 = vector.extract_strided_slice %0 {offsets = [1, 0, 0], sizes = [1, 2, 256], strides = [1, 1, 1]} : vector<9x2x256xf32> to vector<1x2x256xf32>
    %8 = vector.shape_cast %7 : vector<1x2x256xf32> to vector<2x256xf32>
    %c1 = arith.constant 1 : index
    %c0_4 = arith.constant 0 : index
    %9 = memref.load %arg1[%c1, %c0_4] : memref<9x16xf32, #tpu.memory_space<smem>>
    %10 = vector.broadcast %9 : f32 to vector<2x256xf32>
    %11 = arith.mulf %8, %10 : vector<2x256xf32>
    %12 = arith.addf %6, %11 : vector<2x256xf32>
    %13 = vector.extract_strided_slice %0 {offsets = [2, 0, 0], sizes = [1, 2, 256], strides = [1, 1, 1]} : vector<9x2x256xf32> to vector<1x2x256xf32>
    %14 = vector.shape_cast %13 : vector<1x2x256xf32> to vector<2x256xf32>
    %c2 = arith.constant 2 : index
    %c0_5 = arith.constant 0 : index
    %15 = memref.load %arg1[%c2, %c0_5] : memref<9x16xf32, #tpu.memory_space<smem>>
    %16 = vector.broadcast %15 : f32 to vector<2x256xf32>
    %17 = arith.mulf %14, %16 : vector<2x256xf32>
    %18 = arith.addf %12, %17 : vector<2x256xf32>
    %19 = vector.extract_strided_slice %0 {offsets = [3, 0, 0], sizes = [1, 2, 256], strides = [1, 1, 1]} : vector<9x2x256xf32> to vector<1x2x256xf32>
    %20 = vector.shape_cast %19 : vector<1x2x256xf32> to vector<2x256xf32>
    %c3 = arith.constant 3 : index
    %c0_6 = arith.constant 0 : index
    %21 = memref.load %arg1[%c3, %c0_6] : memref<9x16xf32, #tpu.memory_space<smem>>
    %22 = vector.broadcast %21 : f32 to vector<2x256xf32>
    %23 = arith.mulf %20, %22 : vector<2x256xf32>
    %24 = arith.addf %18, %23 : vector<2x256xf32>
    %25 = vector.extract_strided_slice %0 {offsets = [4, 0, 0], sizes = [1, 2, 256], strides = [1, 1, 1]} : vector<9x2x256xf32> to vector<1x2x256xf32>
    %26 = vector.shape_cast %25 : vector<1x2x256xf32> to vector<2x256xf32>
    %c4 = arith.constant 4 : index
    %c0_7 = arith.constant 0 : index
    %27 = memref.load %arg1[%c4, %c0_7] : memref<9x16xf32, #tpu.memory_space<smem>>
    %28 = vector.broadcast %27 : f32 to vector<2x256xf32>
    %29 = arith.mulf %26, %28 : vector<2x256xf32>
    %30 = arith.addf %24, %29 : vector<2x256xf32>
    %31 = vector.extract_strided_slice %0 {offsets = [5, 0, 0], sizes = [1, 2, 256], strides = [1, 1, 1]} : vector<9x2x256xf32> to vector<1x2x256xf32>
    %32 = vector.shape_cast %31 : vector<1x2x256xf32> to vector<2x256xf32>
    %c5 = arith.constant 5 : index
    %c0_8 = arith.constant 0 : index
    %33 = memref.load %arg1[%c5, %c0_8] : memref<9x16xf32, #tpu.memory_space<smem>>
    %34 = vector.broadcast %33 : f32 to vector<2x256xf32>
    %35 = arith.mulf %32, %34 : vector<2x256xf32>
    %36 = arith.addf %30, %35 : vector<2x256xf32>
    %37 = vector.extract_strided_slice %0 {offsets = [6, 0, 0], sizes = [1, 2, 256], strides = [1, 1, 1]} : vector<9x2x256xf32> to vector<1x2x256xf32>
    %38 = vector.shape_cast %37 : vector<1x2x256xf32> to vector<2x256xf32>
    %c6 = arith.constant 6 : index
    %c0_9 = arith.constant 0 : index
    %39 = memref.load %arg1[%c6, %c0_9] : memref<9x16xf32, #tpu.memory_space<smem>>
    %40 = vector.broadcast %39 : f32 to vector<2x256xf32>
    %41 = arith.mulf %38, %40 : vector<2x256xf32>
    %42 = arith.addf %36, %41 : vector<2x256xf32>
    %43 = vector.extract_strided_slice %0 {offsets = [7, 0, 0], sizes = [1, 2, 256], strides = [1, 1, 1]} : vector<9x2x256xf32> to vector<1x2x256xf32>
    %44 = vector.shape_cast %43 : vector<1x2x256xf32> to vector<2x256xf32>
    %c7 = arith.constant 7 : index
    %c0_10 = arith.constant 0 : index
    %45 = memref.load %arg1[%c7, %c0_10] : memref<9x16xf32, #tpu.memory_space<smem>>
    %46 = vector.broadcast %45 : f32 to vector<2x256xf32>
    %47 = arith.mulf %44, %46 : vector<2x256xf32>
    %48 = arith.addf %42, %47 : vector<2x256xf32>
    %49 = vector.extract_strided_slice %0 {offsets = [8, 0, 0], sizes = [1, 2, 256], strides = [1, 1, 1]} : vector<9x2x256xf32> to vector<1x2x256xf32>
    %50 = vector.shape_cast %49 : vector<1x2x256xf32> to vector<2x256xf32>
    %c8 = arith.constant 8 : index
    %c0_11 = arith.constant 0 : index
    %51 = memref.load %arg1[%c8, %c0_11] : memref<9x16xf32, #tpu.memory_space<smem>>
    %52 = vector.broadcast %51 : f32 to vector<2x256xf32>
    %53 = arith.mulf %50, %52 : vector<2x256xf32>
    %54 = arith.addf %48, %53 : vector<2x256xf32>
    %c0_12 = arith.constant 0 : index
    %55 = memref.load %arg2[%c0_12] : memref<16xf32, #tpu.memory_space<smem>>
    %56 = vector.broadcast %55 : f32 to vector<2x256xf32>
    %57 = arith.addf %54, %56 : vector<2x256xf32>
    %cst_13 = arith.constant 0.000000e+00 : f32
    %58 = vector.broadcast %cst_13 : f32 to vector<2x256xf32>
    %59 = arith.maximumf %57, %58 : vector<2x256xf32>
    %c0_14 = arith.constant 0 : index
    %c0_15 = arith.constant 0 : index
    %60 = vector.load %arg3[%c0_14, %c0_15] : memref<128x4096xbf16, #tpu.memory_space<vmem>>, vector<128x256xbf16>
    %61 = arith.truncf %59 : vector<2x256xf32> to vector<2x256xbf16>
    %cst_16 = arith.constant dense<0.000000e+00> : vector<2x128xf32>
    %62 = tpu.matmul %61, %60, %cst_16 {dimension_numbers = #tpu.dot_dimension_numbers<[1], [1], [0], [0], [0, 0, 1, 0], [], []>} : vector<2x256xbf16>, vector<128x256xbf16>, vector<2x128xf32> -> vector<2x128xf32>
    %63 = arith.addf %1, %62 : vector<2x128xf32>
    %64 = vector.extract_strided_slice %0 {offsets = [0, 0, 0], sizes = [1, 2, 256], strides = [1, 1, 1]} : vector<9x2x256xf32> to vector<1x2x256xf32>
    %65 = vector.shape_cast %64 : vector<1x2x256xf32> to vector<2x256xf32>
    %c0_17 = arith.constant 0 : index
    %c1_18 = arith.constant 1 : index
    %66 = memref.load %arg1[%c0_17, %c1_18] : memref<9x16xf32, #tpu.memory_space<smem>>
    %67 = vector.broadcast %66 : f32 to vector<2x256xf32>
    %68 = arith.mulf %65, %67 : vector<2x256xf32>
    %69 = vector.extract_strided_slice %0 {offsets = [1, 0, 0], sizes = [1, 2, 256], strides = [1, 1, 1]} : vector<9x2x256xf32> to vector<1x2x256xf32>
    %70 = vector.shape_cast %69 : vector<1x2x256xf32> to vector<2x256xf32>
    %c1_19 = arith.constant 1 : index
    %c1_20 = arith.constant 1 : index
    %71 = memref.load %arg1[%c1_19, %c1_20] : memref<9x16xf32, #tpu.memory_space<smem>>
    %72 = vector.broadcast %71 : f32 to vector<2x256xf32>
    %73 = arith.mulf %70, %72 : vector<2x256xf32>
    %74 = arith.addf %68, %73 : vector<2x256xf32>
    %75 = vector.extract_strided_slice %0 {offsets = [2, 0, 0], sizes = [1, 2, 256], strides = [1, 1, 1]} : vector<9x2x256xf32> to vector<1x2x256xf32>
    %76 = vector.shape_cast %75 : vector<1x2x256xf32> to vector<2x256xf32>
    %c2_21 = arith.constant 2 : index
    %c1_22 = arith.constant 1 : index
    %77 = memref.load %arg1[%c2_21, %c1_22] : memref<9x16xf32, #tpu.memory_space<smem>>
    %78 = vector.broadcast %77 : f32 to vector<2x256xf32>
    %79 = arith.mulf %76, %78 : vector<2x256xf32>
    %80 = arith.addf %74, %79 : vector<2x256xf32>
    %81 = vector.extract_strided_slice %0 {offsets = [3, 0, 0], sizes = [1, 2, 256], strides = [1, 1, 1]} : vector<9x2x256xf32> to vector<1x2x256xf32>
    %82 = vector.shape_cast %81 : vector<1x2x256xf32> to vector<2x256xf32>
    %c3_23 = arith.constant 3 : index
    %c1_24 = arith.constant 1 : index
    %83 = memref.load %arg1[%c3_23, %c1_24] : memref<9x16xf32, #tpu.memory_space<smem>>
    %84 = vector.broadcast %83 : f32 to vector<2x256xf32>
    %85 = arith.mulf %82, %84 : vector<2x256xf32>
    %86 = arith.addf %80, %85 : vector<2x256xf32>
    %87 = vector.extract_strided_slice %0 {offsets = [4, 0, 0], sizes = [1, 2, 256], strides = [1, 1, 1]} : vector<9x2x256xf32> to vector<1x2x256xf32>
    %88 = vector.shape_cast %87 : vector<1x2x256xf32> to vector<2x256xf32>
    %c4_25 = arith.constant 4 : index
    %c1_26 = arith.constant 1 : index
    %89 = memref.load %arg1[%c4_25, %c1_26] : memref<9x16xf32, #tpu.memory_space<smem>>
    %90 = vector.broadcast %89 : f32 to vector<2x256xf32>
    %91 = arith.mulf %88, %90 : vector<2x256xf32>
    %92 = arith.addf %86, %91 : vector<2x256xf32>
    %93 = vector.extract_strided_slice %0 {offsets = [5, 0, 0], sizes = [1, 2, 256], strides = [1, 1, 1]} : vector<9x2x256xf32> to vector<1x2x256xf32>
    %94 = vector.shape_cast %93 : vector<1x2x256xf32> to vector<2x256xf32>
    %c5_27 = arith.constant 5 : index
    %c1_28 = arith.constant 1 : index
    %95 = memref.load %arg1[%c5_27, %c1_28] : memref<9x16xf32, #tpu.memory_space<smem>>
    %96 = vector.broadcast %95 : f32 to vector<2x256xf32>
    %97 = arith.mulf %94, %96 : vector<2x256xf32>
    %98 = arith.addf %92, %97 : vector<2x256xf32>
    %99 = vector.extract_strided_slice %0 {offsets = [6, 0, 0], sizes = [1, 2, 256], strides = [1, 1, 1]} : vector<9x2x256xf32> to vector<1x2x256xf32>
    %100 = vector.shape_cast %99 : vector<1x2x256xf32> to vector<2x256xf32>
    %c6_29 = arith.constant 6 : index
    %c1_30 = arith.constant 1 : index
    %101 = memref.load %arg1[%c6_29, %c1_30] : memref<9x16xf32, #tpu.memory_space<smem>>
    %102 = vector.broadcast %101 : f32 to vector<2x256xf32>
    %103 = arith.mulf %100, %102 : vector<2x256xf32>
    %104 = arith.addf %98, %103 : vector<2x256xf32>
    %105 = vector.extract_strided_slice %0 {offsets = [7, 0, 0], sizes = [1, 2, 256], strides = [1, 1, 1]} : vector<9x2x256xf32> to vector<1x2x256xf32>
    %106 = vector.shape_cast %105 : vector<1x2x256xf32> to vector<2x256xf32>
    %c7_31 = arith.constant 7 : index
    %c1_32 = arith.constant 1 : index
    %107 = memref.load %arg1[%c7_31, %c1_32] : memref<9x16xf32, #tpu.memory_space<smem>>
    %108 = vector.broadcast %107 : f32 to vector<2x256xf32>
    %109 = arith.mulf %106, %108 : vector<2x256xf32>
    %110 = arith.addf %104, %109 : vector<2x256xf32>
    %111 = vector.extract_strided_slice %0 {offsets = [8, 0, 0], sizes = [1, 2, 256], strides = [1, 1, 1]} : vector<9x2x256xf32> to vector<1x2x256xf32>
    %112 = vector.shape_cast %111 : vector<1x2x256xf32> to vector<2x256xf32>
    %c8_33 = arith.constant 8 : index
    %c1_34 = arith.constant 1 : index
    %113 = memref.load %arg1[%c8_33, %c1_34] : memref<9x16xf32, #tpu.memory_space<smem>>
    %114 = vector.broadcast %113 : f32 to vector<2x256xf32>
    %115 = arith.mulf %112, %114 : vector<2x256xf32>
    %116 = arith.addf %110, %115 : vector<2x256xf32>
    %c1_35 = arith.constant 1 : index
    %117 = memref.load %arg2[%c1_35] : memref<16xf32, #tpu.memory_space<smem>>
    %118 = vector.broadcast %117 : f32 to vector<2x256xf32>
    %119 = arith.addf %116, %118 : vector<2x256xf32>
    %cst_36 = arith.constant 0.000000e+00 : f32
    %120 = vector.broadcast %cst_36 : f32 to vector<2x256xf32>
    %121 = arith.maximumf %119, %120 : vector<2x256xf32>
    %c0_37 = arith.constant 0 : index
    %c256 = arith.constant 256 : index
    %122 = vector.load %arg3[%c0_37, %c256] : memref<128x4096xbf16, #tpu.memory_space<vmem>>, vector<128x256xbf16>
    %123 = arith.truncf %121 : vector<2x256xf32> to vector<2x256xbf16>
    %cst_38 = arith.constant dense<0.000000e+00> : vector<2x128xf32>
    %124 = tpu.matmul %123, %122, %cst_38 {dimension_numbers = #tpu.dot_dimension_numbers<[1], [1], [0], [0], [0, 0, 1, 0], [], []>} : vector<2x256xbf16>, vector<128x256xbf16>, vector<2x128xf32> -> vector<2x128xf32>
    %125 = arith.addf %63, %124 : vector<2x128xf32>
    %126 = vector.extract_strided_slice %0 {offsets = [0, 0, 0], sizes = [1, 2, 256], strides = [1, 1, 1]} : vector<9x2x256xf32> to vector<1x2x256xf32>
    %127 = vector.shape_cast %126 : vector<1x2x256xf32> to vector<2x256xf32>
    %c0_39 = arith.constant 0 : index
    %c2_40 = arith.constant 2 : index
    %128 = memref.load %arg1[%c0_39, %c2_40] : memref<9x16xf32, #tpu.memory_space<smem>>
    %129 = vector.broadcast %128 : f32 to vector<2x256xf32>
    %130 = arith.mulf %127, %129 : vector<2x256xf32>
    %131 = vector.extract_strided_slice %0 {offsets = [1, 0, 0], sizes = [1, 2, 256], strides = [1, 1, 1]} : vector<9x2x256xf32> to vector<1x2x256xf32>
    %132 = vector.shape_cast %131 : vector<1x2x256xf32> to vector<2x256xf32>
    %c1_41 = arith.constant 1 : index
    %c2_42 = arith.constant 2 : index
    %133 = memref.load %arg1[%c1_41, %c2_42] : memref<9x16xf32, #tpu.memory_space<smem>>
    %134 = vector.broadcast %133 : f32 to vector<2x256xf32>
    %135 = arith.mulf %132, %134 : vector<2x256xf32>
    %136 = arith.addf %130, %135 : vector<2x256xf32>
    %137 = vector.extract_strided_slice %0 {offsets = [2, 0, 0], sizes = [1, 2, 256], strides = [1, 1, 1]} : vector<9x2x256xf32> to vector<1x2x256xf32>
    %138 = vector.shape_cast %137 : vector<1x2x256xf32> to vector<2x256xf32>
    %c2_43 = arith.constant 2 : index
    %c2_44 = arith.constant 2 : index
    %139 = memref.load %arg1[%c2_43, %c2_44] : memref<9x16xf32, #tpu.memory_space<smem>>
    %140 = vector.broadcast %139 : f32 to vector<2x256xf32>
    %141 = arith.mulf %138, %140 : vector<2x256xf32>
    %142 = arith.addf %136, %141 : vector<2x256xf32>
    %143 = vector.extract_strided_slice %0 {offsets = [3, 0, 0], sizes = [1, 2, 256], strides = [1, 1, 1]} : vector<9x2x256xf32> to vector<1x2x256xf32>
    %144 = vector.shape_cast %143 : vector<1x2x256xf32> to vector<2x256xf32>
    %c3_45 = arith.constant 3 : index
    %c2_46 = arith.constant 2 : index
    %145 = memref.load %arg1[%c3_45, %c2_46] : memref<9x16xf32, #tpu.memory_space<smem>>
    %146 = vector.broadcast %145 : f32 to vector<2x256xf32>
    %147 = arith.mulf %144, %146 : vector<2x256xf32>
    %148 = arith.addf %142, %147 : vector<2x256xf32>
    %149 = vector.extract_strided_slice %0 {offsets = [4, 0, 0], sizes = [1, 2, 256], strides = [1, 1, 1]} : vector<9x2x256xf32> to vector<1x2x256xf32>
    %150 = vector.shape_cast %149 : vector<1x2x256xf32> to vector<2x256xf32>
    %c4_47 = arith.constant 4 : index
    %c2_48 = arith.constant 2 : index
    %151 = memref.load %arg1[%c4_47, %c2_48] : memref<9x16xf32, #tpu.memory_space<smem>>
    %152 = vector.broadcast %151 : f32 to vector<2x256xf32>
    %153 = arith.mulf %150, %152 : vector<2x256xf32>
    %154 = arith.addf %148, %153 : vector<2x256xf32>
    %155 = vector.extract_strided_slice %0 {offsets = [5, 0, 0], sizes = [1, 2, 256], strides = [1, 1, 1]} : vector<9x2x256xf32> to vector<1x2x256xf32>
    %156 = vector.shape_cast %155 : vector<1x2x256xf32> to vector<2x256xf32>
    %c5_49 = arith.constant 5 : index
    %c2_50 = arith.constant 2 : index
    %157 = memref.load %arg1[%c5_49, %c2_50] : memref<9x16xf32, #tpu.memory_space<smem>>
    %158 = vector.broadcast %157 : f32 to vector<2x256xf32>
    %159 = arith.mulf %156, %158 : vector<2x256xf32>
    %160 = arith.addf %154, %159 : vector<2x256xf32>
    %161 = vector.extract_strided_slice %0 {offsets = [6, 0, 0], sizes = [1, 2, 256], strides = [1, 1, 1]} : vector<9x2x256xf32> to vector<1x2x256xf32>
    %162 = vector.shape_cast %161 : vector<1x2x256xf32> to vector<2x256xf32>
    %c6_51 = arith.constant 6 : index
    %c2_52 = arith.constant 2 : index
    %163 = memref.load %arg1[%c6_51, %c2_52] : memref<9x16xf32, #tpu.memory_space<smem>>
    %164 = vector.broadcast %163 : f32 to vector<2x256xf32>
    %165 = arith.mulf %162, %164 : vector<2x256xf32>
    %166 = arith.addf %160, %165 : vector<2x256xf32>
    %167 = vector.extract_strided_slice %0 {offsets = [7, 0, 0], sizes = [1, 2, 256], strides = [1, 1, 1]} : vector<9x2x256xf32> to vector<1x2x256xf32>
    %168 = vector.shape_cast %167 : vector<1x2x256xf32> to vector<2x256xf32>
    %c7_53 = arith.constant 7 : index
    %c2_54 = arith.constant 2 : index
    %169 = memref.load %arg1[%c7_53, %c2_54] : memref<9x16xf32, #tpu.memory_space<smem>>
    %170 = vector.broadcast %169 : f32 to vector<2x256xf32>
    %171 = arith.mulf %168, %170 : vector<2x256xf32>
    %172 = arith.addf %166, %171 : vector<2x256xf32>
    %173 = vector.extract_strided_slice %0 {offsets = [8, 0, 0], sizes = [1, 2, 256], strides = [1, 1, 1]} : vector<9x2x256xf32> to vector<1x2x256xf32>
    %174 = vector.shape_cast %173 : vector<1x2x256xf32> to vector<2x256xf32>
    %c8_55 = arith.constant 8 : index
    %c2_56 = arith.constant 2 : index
    %175 = memref.load %arg1[%c8_55, %c2_56] : memref<9x16xf32, #tpu.memory_space<smem>>
    %176 = vector.broadcast %175 : f32 to vector<2x256xf32>
    %177 = arith.mulf %174, %176 : vector<2x256xf32>
    %178 = arith.addf %172, %177 : vector<2x256xf32>
    %c2_57 = arith.constant 2 : index
    %179 = memref.load %arg2[%c2_57] : memref<16xf32, #tpu.memory_space<smem>>
    %180 = vector.broadcast %179 : f32 to vector<2x256xf32>
    %181 = arith.addf %178, %180 : vector<2x256xf32>
    %cst_58 = arith.constant 0.000000e+00 : f32
    %182 = vector.broadcast %cst_58 : f32 to vector<2x256xf32>
    %183 = arith.maximumf %181, %182 : vector<2x256xf32>
    %c0_59 = arith.constant 0 : index
    %c512 = arith.constant 512 : index
    %184 = vector.load %arg3[%c0_59, %c512] : memref<128x4096xbf16, #tpu.memory_space<vmem>>, vector<128x256xbf16>
    %185 = arith.truncf %183 : vector<2x256xf32> to vector<2x256xbf16>
    %cst_60 = arith.constant dense<0.000000e+00> : vector<2x128xf32>
    %186 = tpu.matmul %185, %184, %cst_60 {dimension_numbers = #tpu.dot_dimension_numbers<[1], [1], [0], [0], [0, 0, 1, 0], [], []>} : vector<2x256xbf16>, vector<128x256xbf16>, vector<2x128xf32> -> vector<2x128xf32>
    %187 = arith.addf %125, %186 : vector<2x128xf32>
    %188 = vector.extract_strided_slice %0 {offsets = [0, 0, 0], sizes = [1, 2, 256], strides = [1, 1, 1]} : vector<9x2x256xf32> to vector<1x2x256xf32>
    %189 = vector.shape_cast %188 : vector<1x2x256xf32> to vector<2x256xf32>
    %c0_61 = arith.constant 0 : index
    %c3_62 = arith.constant 3 : index
    %190 = memref.load %arg1[%c0_61, %c3_62] : memref<9x16xf32, #tpu.memory_space<smem>>
    %191 = vector.broadcast %190 : f32 to vector<2x256xf32>
    %192 = arith.mulf %189, %191 : vector<2x256xf32>
    %193 = vector.extract_strided_slice %0 {offsets = [1, 0, 0], sizes = [1, 2, 256], strides = [1, 1, 1]} : vector<9x2x256xf32> to vector<1x2x256xf32>
    %194 = vector.shape_cast %193 : vector<1x2x256xf32> to vector<2x256xf32>
    %c1_63 = arith.constant 1 : index
    %c3_64 = arith.constant 3 : index
    %195 = memref.load %arg1[%c1_63, %c3_64] : memref<9x16xf32, #tpu.memory_space<smem>>
    %196 = vector.broadcast %195 : f32 to vector<2x256xf32>
    %197 = arith.mulf %194, %196 : vector<2x256xf32>
    %198 = arith.addf %192, %197 : vector<2x256xf32>
    %199 = vector.extract_strided_slice %0 {offsets = [2, 0, 0], sizes = [1, 2, 256], strides = [1, 1, 1]} : vector<9x2x256xf32> to vector<1x2x256xf32>
    %200 = vector.shape_cast %199 : vector<1x2x256xf32> to vector<2x256xf32>
    %c2_65 = arith.constant 2 : index
    %c3_66 = arith.constant 3 : index
    %201 = memref.load %arg1[%c2_65, %c3_66] : memref<9x16xf32, #tpu.memory_space<smem>>
    %202 = vector.broadcast %201 : f32 to vector<2x256xf32>
    %203 = arith.mulf %200, %202 : vector<2x256xf32>
    %204 = arith.addf %198, %203 : vector<2x256xf32>
    %205 = vector.extract_strided_slice %0 {offsets = [3, 0, 0], sizes = [1, 2, 256], strides = [1, 1, 1]} : vector<9x2x256xf32> to vector<1x2x256xf32>
    %206 = vector.shape_cast %205 : vector<1x2x256xf32> to vector<2x256xf32>
    %c3_67 = arith.constant 3 : index
    %c3_68 = arith.constant 3 : index
    %207 = memref.load %arg1[%c3_67, %c3_68] : memref<9x16xf32, #tpu.memory_space<smem>>
    %208 = vector.broadcast %207 : f32 to vector<2x256xf32>
    %209 = arith.mulf %206, %208 : vector<2x256xf32>
    %210 = arith.addf %204, %209 : vector<2x256xf32>
    %211 = vector.extract_strided_slice %0 {offsets = [4, 0, 0], sizes = [1, 2, 256], strides = [1, 1, 1]} : vector<9x2x256xf32> to vector<1x2x256xf32>
    %212 = vector.shape_cast %211 : vector<1x2x256xf32> to vector<2x256xf32>
    %c4_69 = arith.constant 4 : index
    %c3_70 = arith.constant 3 : index
    %213 = memref.load %arg1[%c4_69, %c3_70] : memref<9x16xf32, #tpu.memory_space<smem>>
    %214 = vector.broadcast %213 : f32 to vector<2x256xf32>
    %215 = arith.mulf %212, %214 : vector<2x256xf32>
    %216 = arith.addf %210, %215 : vector<2x256xf32>
    %217 = vector.extract_strided_slice %0 {offsets = [5, 0, 0], sizes = [1, 2, 256], strides = [1, 1, 1]} : vector<9x2x256xf32> to vector<1x2x256xf32>
    %218 = vector.shape_cast %217 : vector<1x2x256xf32> to vector<2x256xf32>
    %c5_71 = arith.constant 5 : index
    %c3_72 = arith.constant 3 : index
    %219 = memref.load %arg1[%c5_71, %c3_72] : memref<9x16xf32, #tpu.memory_space<smem>>
    %220 = vector.broadcast %219 : f32 to vector<2x256xf32>
    %221 = arith.mulf %218, %220 : vector<2x256xf32>
    %222 = arith.addf %216, %221 : vector<2x256xf32>
    %223 = vector.extract_strided_slice %0 {offsets = [6, 0, 0], sizes = [1, 2, 256], strides = [1, 1, 1]} : vector<9x2x256xf32> to vector<1x2x256xf32>
    %224 = vector.shape_cast %223 : vector<1x2x256xf32> to vector<2x256xf32>
    %c6_73 = arith.constant 6 : index
    %c3_74 = arith.constant 3 : index
    %225 = memref.load %arg1[%c6_73, %c3_74] : memref<9x16xf32, #tpu.memory_space<smem>>
    %226 = vector.broadcast %225 : f32 to vector<2x256xf32>
    %227 = arith.mulf %224, %226 : vector<2x256xf32>
    %228 = arith.addf %222, %227 : vector<2x256xf32>
    %229 = vector.extract_strided_slice %0 {offsets = [7, 0, 0], sizes = [1, 2, 256], strides = [1, 1, 1]} : vector<9x2x256xf32> to vector<1x2x256xf32>
    %230 = vector.shape_cast %229 : vector<1x2x256xf32> to vector<2x256xf32>
    %c7_75 = arith.constant 7 : index
    %c3_76 = arith.constant 3 : index
    %231 = memref.load %arg1[%c7_75, %c3_76] : memref<9x16xf32, #tpu.memory_space<smem>>
    %232 = vector.broadcast %231 : f32 to vector<2x256xf32>
    %233 = arith.mulf %230, %232 : vector<2x256xf32>
    %234 = arith.addf %228, %233 : vector<2x256xf32>
    %235 = vector.extract_strided_slice %0 {offsets = [8, 0, 0], sizes = [1, 2, 256], strides = [1, 1, 1]} : vector<9x2x256xf32> to vector<1x2x256xf32>
    %236 = vector.shape_cast %235 : vector<1x2x256xf32> to vector<2x256xf32>
    %c8_77 = arith.constant 8 : index
    %c3_78 = arith.constant 3 : index
    %237 = memref.load %arg1[%c8_77, %c3_78] : memref<9x16xf32, #tpu.memory_space<smem>>
    %238 = vector.broadcast %237 : f32 to vector<2x256xf32>
    %239 = arith.mulf %236, %238 : vector<2x256xf32>
    %240 = arith.addf %234, %239 : vector<2x256xf32>
    %c3_79 = arith.constant 3 : index
    %241 = memref.load %arg2[%c3_79] : memref<16xf32, #tpu.memory_space<smem>>
    %242 = vector.broadcast %241 : f32 to vector<2x256xf32>
    %243 = arith.addf %240, %242 : vector<2x256xf32>
    %cst_80 = arith.constant 0.000000e+00 : f32
    %244 = vector.broadcast %cst_80 : f32 to vector<2x256xf32>
    %245 = arith.maximumf %243, %244 : vector<2x256xf32>
    %c0_81 = arith.constant 0 : index
    %c768 = arith.constant 768 : index
    %246 = vector.load %arg3[%c0_81, %c768] : memref<128x4096xbf16, #tpu.memory_space<vmem>>, vector<128x256xbf16>
    %247 = arith.truncf %245 : vector<2x256xf32> to vector<2x256xbf16>
    %cst_82 = arith.constant dense<0.000000e+00> : vector<2x128xf32>
    %248 = tpu.matmul %247, %246, %cst_82 {dimension_numbers = #tpu.dot_dimension_numbers<[1], [1], [0], [0], [0, 0, 1, 0], [], []>} : vector<2x256xbf16>, vector<128x256xbf16>, vector<2x128xf32> -> vector<2x128xf32>
    %249 = arith.addf %187, %248 : vector<2x128xf32>
    %250 = vector.extract_strided_slice %0 {offsets = [0, 0, 0], sizes = [1, 2, 256], strides = [1, 1, 1]} : vector<9x2x256xf32> to vector<1x2x256xf32>
    %251 = vector.shape_cast %250 : vector<1x2x256xf32> to vector<2x256xf32>
    %c0_83 = arith.constant 0 : index
    %c4_84 = arith.constant 4 : index
    %252 = memref.load %arg1[%c0_83, %c4_84] : memref<9x16xf32, #tpu.memory_space<smem>>
    %253 = vector.broadcast %252 : f32 to vector<2x256xf32>
    %254 = arith.mulf %251, %253 : vector<2x256xf32>
    %255 = vector.extract_strided_slice %0 {offsets = [1, 0, 0], sizes = [1, 2, 256], strides = [1, 1, 1]} : vector<9x2x256xf32> to vector<1x2x256xf32>
    %256 = vector.shape_cast %255 : vector<1x2x256xf32> to vector<2x256xf32>
    %c1_85 = arith.constant 1 : index
    %c4_86 = arith.constant 4 : index
    %257 = memref.load %arg1[%c1_85, %c4_86] : memref<9x16xf32, #tpu.memory_space<smem>>
    %258 = vector.broadcast %257 : f32 to vector<2x256xf32>
    %259 = arith.mulf %256, %258 : vector<2x256xf32>
    %260 = arith.addf %254, %259 : vector<2x256xf32>
    %261 = vector.extract_strided_slice %0 {offsets = [2, 0, 0], sizes = [1, 2, 256], strides = [1, 1, 1]} : vector<9x2x256xf32> to vector<1x2x256xf32>
    %262 = vector.shape_cast %261 : vector<1x2x256xf32> to vector<2x256xf32>
    %c2_87 = arith.constant 2 : index
    %c4_88 = arith.constant 4 : index
    %263 = memref.load %arg1[%c2_87, %c4_88] : memref<9x16xf32, #tpu.memory_space<smem>>
    %264 = vector.broadcast %263 : f32 to vector<2x256xf32>
    %265 = arith.mulf %262, %264 : vector<2x256xf32>
    %266 = arith.addf %260, %265 : vector<2x256xf32>
    %267 = vector.extract_strided_slice %0 {offsets = [3, 0, 0], sizes = [1, 2, 256], strides = [1, 1, 1]} : vector<9x2x256xf32> to vector<1x2x256xf32>
    %268 = vector.shape_cast %267 : vector<1x2x256xf32> to vector<2x256xf32>
    %c3_89 = arith.constant 3 : index
    %c4_90 = arith.constant 4 : index
    %269 = memref.load %arg1[%c3_89, %c4_90] : memref<9x16xf32, #tpu.memory_space<smem>>
    %270 = vector.broadcast %269 : f32 to vector<2x256xf32>
    %271 = arith.mulf %268, %270 : vector<2x256xf32>
    %272 = arith.addf %266, %271 : vector<2x256xf32>
    %273 = vector.extract_strided_slice %0 {offsets = [4, 0, 0], sizes = [1, 2, 256], strides = [1, 1, 1]} : vector<9x2x256xf32> to vector<1x2x256xf32>
    %274 = vector.shape_cast %273 : vector<1x2x256xf32> to vector<2x256xf32>
    %c4_91 = arith.constant 4 : index
    %c4_92 = arith.constant 4 : index
    %275 = memref.load %arg1[%c4_91, %c4_92] : memref<9x16xf32, #tpu.memory_space<smem>>
    %276 = vector.broadcast %275 : f32 to vector<2x256xf32>
    %277 = arith.mulf %274, %276 : vector<2x256xf32>
    %278 = arith.addf %272, %277 : vector<2x256xf32>
    %279 = vector.extract_strided_slice %0 {offsets = [5, 0, 0], sizes = [1, 2, 256], strides = [1, 1, 1]} : vector<9x2x256xf32> to vector<1x2x256xf32>
    %280 = vector.shape_cast %279 : vector<1x2x256xf32> to vector<2x256xf32>
    %c5_93 = arith.constant 5 : index
    %c4_94 = arith.constant 4 : index
    %281 = memref.load %arg1[%c5_93, %c4_94] : memref<9x16xf32, #tpu.memory_space<smem>>
    %282 = vector.broadcast %281 : f32 to vector<2x256xf32>
    %283 = arith.mulf %280, %282 : vector<2x256xf32>
    %284 = arith.addf %278, %283 : vector<2x256xf32>
    %285 = vector.extract_strided_slice %0 {offsets = [6, 0, 0], sizes = [1, 2, 256], strides = [1, 1, 1]} : vector<9x2x256xf32> to vector<1x2x256xf32>
    %286 = vector.shape_cast %285 : vector<1x2x256xf32> to vector<2x256xf32>
    %c6_95 = arith.constant 6 : index
    %c4_96 = arith.constant 4 : index
    %287 = memref.load %arg1[%c6_95, %c4_96] : memref<9x16xf32, #tpu.memory_space<smem>>
    %288 = vector.broadcast %287 : f32 to vector<2x256xf32>
    %289 = arith.mulf %286, %288 : vector<2x256xf32>
    %290 = arith.addf %284, %289 : vector<2x256xf32>
    %291 = vector.extract_strided_slice %0 {offsets = [7, 0, 0], sizes = [1, 2, 256], strides = [1, 1, 1]} : vector<9x2x256xf32> to vector<1x2x256xf32>
    %292 = vector.shape_cast %291 : vector<1x2x256xf32> to vector<2x256xf32>
    %c7_97 = arith.constant 7 : index
    %c4_98 = arith.constant 4 : index
    %293 = memref.load %arg1[%c7_97, %c4_98] : memref<9x16xf32, #tpu.memory_space<smem>>
    %294 = vector.broadcast %293 : f32 to vector<2x256xf32>
    %295 = arith.mulf %292, %294 : vector<2x256xf32>
    %296 = arith.addf %290, %295 : vector<2x256xf32>
    %297 = vector.extract_strided_slice %0 {offsets = [8, 0, 0], sizes = [1, 2, 256], strides = [1, 1, 1]} : vector<9x2x256xf32> to vector<1x2x256xf32>
    %298 = vector.shape_cast %297 : vector<1x2x256xf32> to vector<2x256xf32>
    %c8_99 = arith.constant 8 : index
    %c4_100 = arith.constant 4 : index
    %299 = memref.load %arg1[%c8_99, %c4_100] : memref<9x16xf32, #tpu.memory_space<smem>>
    %300 = vector.broadcast %299 : f32 to vector<2x256xf32>
    %301 = arith.mulf %298, %300 : vector<2x256xf32>
    %302 = arith.addf %296, %301 : vector<2x256xf32>
    %c4_101 = arith.constant 4 : index
    %303 = memref.load %arg2[%c4_101] : memref<16xf32, #tpu.memory_space<smem>>
    %304 = vector.broadcast %303 : f32 to vector<2x256xf32>
    %305 = arith.addf %302, %304 : vector<2x256xf32>
    %cst_102 = arith.constant 0.000000e+00 : f32
    %306 = vector.broadcast %cst_102 : f32 to vector<2x256xf32>
    %307 = arith.maximumf %305, %306 : vector<2x256xf32>
    %c0_103 = arith.constant 0 : index
    %c1024 = arith.constant 1024 : index
    %308 = vector.load %arg3[%c0_103, %c1024] : memref<128x4096xbf16, #tpu.memory_space<vmem>>, vector<128x256xbf16>
    %309 = arith.truncf %307 : vector<2x256xf32> to vector<2x256xbf16>
    %cst_104 = arith.constant dense<0.000000e+00> : vector<2x128xf32>
    %310 = tpu.matmul %309, %308, %cst_104 {dimension_numbers = #tpu.dot_dimension_numbers<[1], [1], [0], [0], [0, 0, 1, 0], [], []>} : vector<2x256xbf16>, vector<128x256xbf16>, vector<2x128xf32> -> vector<2x128xf32>
    %311 = arith.addf %249, %310 : vector<2x128xf32>
    %312 = vector.extract_strided_slice %0 {offsets = [0, 0, 0], sizes = [1, 2, 256], strides = [1, 1, 1]} : vector<9x2x256xf32> to vector<1x2x256xf32>
    %313 = vector.shape_cast %312 : vector<1x2x256xf32> to vector<2x256xf32>
    %c0_105 = arith.constant 0 : index
    %c5_106 = arith.constant 5 : index
    %314 = memref.load %arg1[%c0_105, %c5_106] : memref<9x16xf32, #tpu.memory_space<smem>>
    %315 = vector.broadcast %314 : f32 to vector<2x256xf32>
    %316 = arith.mulf %313, %315 : vector<2x256xf32>
    %317 = vector.extract_strided_slice %0 {offsets = [1, 0, 0], sizes = [1, 2, 256], strides = [1, 1, 1]} : vector<9x2x256xf32> to vector<1x2x256xf32>
    %318 = vector.shape_cast %317 : vector<1x2x256xf32> to vector<2x256xf32>
    %c1_107 = arith.constant 1 : index
    %c5_108 = arith.constant 5 : index
    %319 = memref.load %arg1[%c1_107, %c5_108] : memref<9x16xf32, #tpu.memory_space<smem>>
    %320 = vector.broadcast %319 : f32 to vector<2x256xf32>
    %321 = arith.mulf %318, %320 : vector<2x256xf32>
    %322 = arith.addf %316, %321 : vector<2x256xf32>
    %323 = vector.extract_strided_slice %0 {offsets = [2, 0, 0], sizes = [1, 2, 256], strides = [1, 1, 1]} : vector<9x2x256xf32> to vector<1x2x256xf32>
    %324 = vector.shape_cast %323 : vector<1x2x256xf32> to vector<2x256xf32>
    %c2_109 = arith.constant 2 : index
    %c5_110 = arith.constant 5 : index
    %325 = memref.load %arg1[%c2_109, %c5_110] : memref<9x16xf32, #tpu.memory_space<smem>>
    %326 = vector.broadcast %325 : f32 to vector<2x256xf32>
    %327 = arith.mulf %324, %326 : vector<2x256xf32>
    %328 = arith.addf %322, %327 : vector<2x256xf32>
    %329 = vector.extract_strided_slice %0 {offsets = [3, 0, 0], sizes = [1, 2, 256], strides = [1, 1, 1]} : vector<9x2x256xf32> to vector<1x2x256xf32>
    %330 = vector.shape_cast %329 : vector<1x2x256xf32> to vector<2x256xf32>
    %c3_111 = arith.constant 3 : index
    %c5_112 = arith.constant 5 : index
    %331 = memref.load %arg1[%c3_111, %c5_112] : memref<9x16xf32, #tpu.memory_space<smem>>
    %332 = vector.broadcast %331 : f32 to vector<2x256xf32>
    %333 = arith.mulf %330, %332 : vector<2x256xf32>
    %334 = arith.addf %328, %333 : vector<2x256xf32>
    %335 = vector.extract_strided_slice %0 {offsets = [4, 0, 0], sizes = [1, 2, 256], strides = [1, 1, 1]} : vector<9x2x256xf32> to vector<1x2x256xf32>
    %336 = vector.shape_cast %335 : vector<1x2x256xf32> to vector<2x256xf32>
    %c4_113 = arith.constant 4 : index
    %c5_114 = arith.constant 5 : index
    %337 = memref.load %arg1[%c4_113, %c5_114] : memref<9x16xf32, #tpu.memory_space<smem>>
    %338 = vector.broadcast %337 : f32 to vector<2x256xf32>
    %339 = arith.mulf %336, %338 : vector<2x256xf32>
    %340 = arith.addf %334, %339 : vector<2x256xf32>
    %341 = vector.extract_strided_slice %0 {offsets = [5, 0, 0], sizes = [1, 2, 256], strides = [1, 1, 1]} : vector<9x2x256xf32> to vector<1x2x256xf32>
    %342 = vector.shape_cast %341 : vector<1x2x256xf32> to vector<2x256xf32>
    %c5_115 = arith.constant 5 : index
    %c5_116 = arith.constant 5 : index
    %343 = memref.load %arg1[%c5_115, %c5_116] : memref<9x16xf32, #tpu.memory_space<smem>>
    %344 = vector.broadcast %343 : f32 to vector<2x256xf32>
    %345 = arith.mulf %342, %344 : vector<2x256xf32>
    %346 = arith.addf %340, %345 : vector<2x256xf32>
    %347 = vector.extract_strided_slice %0 {offsets = [6, 0, 0], sizes = [1, 2, 256], strides = [1, 1, 1]} : vector<9x2x256xf32> to vector<1x2x256xf32>
    %348 = vector.shape_cast %347 : vector<1x2x256xf32> to vector<2x256xf32>
    %c6_117 = arith.constant 6 : index
    %c5_118 = arith.constant 5 : index
    %349 = memref.load %arg1[%c6_117, %c5_118] : memref<9x16xf32, #tpu.memory_space<smem>>
    %350 = vector.broadcast %349 : f32 to vector<2x256xf32>
    %351 = arith.mulf %348, %350 : vector<2x256xf32>
    %352 = arith.addf %346, %351 : vector<2x256xf32>
    %353 = vector.extract_strided_slice %0 {offsets = [7, 0, 0], sizes = [1, 2, 256], strides = [1, 1, 1]} : vector<9x2x256xf32> to vector<1x2x256xf32>
    %354 = vector.shape_cast %353 : vector<1x2x256xf32> to vector<2x256xf32>
    %c7_119 = arith.constant 7 : index
    %c5_120 = arith.constant 5 : index
    %355 = memref.load %arg1[%c7_119, %c5_120] : memref<9x16xf32, #tpu.memory_space<smem>>
    %356 = vector.broadcast %355 : f32 to vector<2x256xf32>
    %357 = arith.mulf %354, %356 : vector<2x256xf32>
    %358 = arith.addf %352, %357 : vector<2x256xf32>
    %359 = vector.extract_strided_slice %0 {offsets = [8, 0, 0], sizes = [1, 2, 256], strides = [1, 1, 1]} : vector<9x2x256xf32> to vector<1x2x256xf32>
    %360 = vector.shape_cast %359 : vector<1x2x256xf32> to vector<2x256xf32>
    %c8_121 = arith.constant 8 : index
    %c5_122 = arith.constant 5 : index
    %361 = memref.load %arg1[%c8_121, %c5_122] : memref<9x16xf32, #tpu.memory_space<smem>>
    %362 = vector.broadcast %361 : f32 to vector<2x256xf32>
    %363 = arith.mulf %360, %362 : vector<2x256xf32>
    %364 = arith.addf %358, %363 : vector<2x256xf32>
    %c5_123 = arith.constant 5 : index
    %365 = memref.load %arg2[%c5_123] : memref<16xf32, #tpu.memory_space<smem>>
    %366 = vector.broadcast %365 : f32 to vector<2x256xf32>
    %367 = arith.addf %364, %366 : vector<2x256xf32>
    %cst_124 = arith.constant 0.000000e+00 : f32
    %368 = vector.broadcast %cst_124 : f32 to vector<2x256xf32>
    %369 = arith.maximumf %367, %368 : vector<2x256xf32>
    %c0_125 = arith.constant 0 : index
    %c1280 = arith.constant 1280 : index
    %370 = vector.load %arg3[%c0_125, %c1280] : memref<128x4096xbf16, #tpu.memory_space<vmem>>, vector<128x256xbf16>
    %371 = arith.truncf %369 : vector<2x256xf32> to vector<2x256xbf16>
    %cst_126 = arith.constant dense<0.000000e+00> : vector<2x128xf32>
    %372 = tpu.matmul %371, %370, %cst_126 {dimension_numbers = #tpu.dot_dimension_numbers<[1], [1], [0], [0], [0, 0, 1, 0], [], []>} : vector<2x256xbf16>, vector<128x256xbf16>, vector<2x128xf32> -> vector<2x128xf32>
    %373 = arith.addf %311, %372 : vector<2x128xf32>
    %374 = vector.extract_strided_slice %0 {offsets = [0, 0, 0], sizes = [1, 2, 256], strides = [1, 1, 1]} : vector<9x2x256xf32> to vector<1x2x256xf32>
    %375 = vector.shape_cast %374 : vector<1x2x256xf32> to vector<2x256xf32>
    %c0_127 = arith.constant 0 : index
    %c6_128 = arith.constant 6 : index
    %376 = memref.load %arg1[%c0_127, %c6_128] : memref<9x16xf32, #tpu.memory_space<smem>>
    %377 = vector.broadcast %376 : f32 to vector<2x256xf32>
    %378 = arith.mulf %375, %377 : vector<2x256xf32>
    %379 = vector.extract_strided_slice %0 {offsets = [1, 0, 0], sizes = [1, 2, 256], strides = [1, 1, 1]} : vector<9x2x256xf32> to vector<1x2x256xf32>
    %380 = vector.shape_cast %379 : vector<1x2x256xf32> to vector<2x256xf32>
    %c1_129 = arith.constant 1 : index
    %c6_130 = arith.constant 6 : index
    %381 = memref.load %arg1[%c1_129, %c6_130] : memref<9x16xf32, #tpu.memory_space<smem>>
    %382 = vector.broadcast %381 : f32 to vector<2x256xf32>
    %383 = arith.mulf %380, %382 : vector<2x256xf32>
    %384 = arith.addf %378, %383 : vector<2x256xf32>
    %385 = vector.extract_strided_slice %0 {offsets = [2, 0, 0], sizes = [1, 2, 256], strides = [1, 1, 1]} : vector<9x2x256xf32> to vector<1x2x256xf32>
    %386 = vector.shape_cast %385 : vector<1x2x256xf32> to vector<2x256xf32>
    %c2_131 = arith.constant 2 : index
    %c6_132 = arith.constant 6 : index
    %387 = memref.load %arg1[%c2_131, %c6_132] : memref<9x16xf32, #tpu.memory_space<smem>>
    %388 = vector.broadcast %387 : f32 to vector<2x256xf32>
    %389 = arith.mulf %386, %388 : vector<2x256xf32>
    %390 = arith.addf %384, %389 : vector<2x256xf32>
    %391 = vector.extract_strided_slice %0 {offsets = [3, 0, 0], sizes = [1, 2, 256], strides = [1, 1, 1]} : vector<9x2x256xf32> to vector<1x2x256xf32>
    %392 = vector.shape_cast %391 : vector<1x2x256xf32> to vector<2x256xf32>
    %c3_133 = arith.constant 3 : index
    %c6_134 = arith.constant 6 : index
    %393 = memref.load %arg1[%c3_133, %c6_134] : memref<9x16xf32, #tpu.memory_space<smem>>
    %394 = vector.broadcast %393 : f32 to vector<2x256xf32>
    %395 = arith.mulf %392, %394 : vector<2x256xf32>
    %396 = arith.addf %390, %395 : vector<2x256xf32>
    %397 = vector.extract_strided_slice %0 {offsets = [4, 0, 0], sizes = [1, 2, 256], strides = [1, 1, 1]} : vector<9x2x256xf32> to vector<1x2x256xf32>
    %398 = vector.shape_cast %397 : vector<1x2x256xf32> to vector<2x256xf32>
    %c4_135 = arith.constant 4 : index
    %c6_136 = arith.constant 6 : index
    %399 = memref.load %arg1[%c4_135, %c6_136] : memref<9x16xf32, #tpu.memory_space<smem>>
    %400 = vector.broadcast %399 : f32 to vector<2x256xf32>
    %401 = arith.mulf %398, %400 : vector<2x256xf32>
    %402 = arith.addf %396, %401 : vector<2x256xf32>
    %403 = vector.extract_strided_slice %0 {offsets = [5, 0, 0], sizes = [1, 2, 256], strides = [1, 1, 1]} : vector<9x2x256xf32> to vector<1x2x256xf32>
    %404 = vector.shape_cast %403 : vector<1x2x256xf32> to vector<2x256xf32>
    %c5_137 = arith.constant 5 : index
    %c6_138 = arith.constant 6 : index
    %405 = memref.load %arg1[%c5_137, %c6_138] : memref<9x16xf32, #tpu.memory_space<smem>>
    %406 = vector.broadcast %405 : f32 to vector<2x256xf32>
    %407 = arith.mulf %404, %406 : vector<2x256xf32>
    %408 = arith.addf %402, %407 : vector<2x256xf32>
    %409 = vector.extract_strided_slice %0 {offsets = [6, 0, 0], sizes = [1, 2, 256], strides = [1, 1, 1]} : vector<9x2x256xf32> to vector<1x2x256xf32>
    %410 = vector.shape_cast %409 : vector<1x2x256xf32> to vector<2x256xf32>
    %c6_139 = arith.constant 6 : index
    %c6_140 = arith.constant 6 : index
    %411 = memref.load %arg1[%c6_139, %c6_140] : memref<9x16xf32, #tpu.memory_space<smem>>
    %412 = vector.broadcast %411 : f32 to vector<2x256xf32>
    %413 = arith.mulf %410, %412 : vector<2x256xf32>
    %414 = arith.addf %408, %413 : vector<2x256xf32>
    %415 = vector.extract_strided_slice %0 {offsets = [7, 0, 0], sizes = [1, 2, 256], strides = [1, 1, 1]} : vector<9x2x256xf32> to vector<1x2x256xf32>
    %416 = vector.shape_cast %415 : vector<1x2x256xf32> to vector<2x256xf32>
    %c7_141 = arith.constant 7 : index
    %c6_142 = arith.constant 6 : index
    %417 = memref.load %arg1[%c7_141, %c6_142] : memref<9x16xf32, #tpu.memory_space<smem>>
    %418 = vector.broadcast %417 : f32 to vector<2x256xf32>
    %419 = arith.mulf %416, %418 : vector<2x256xf32>
    %420 = arith.addf %414, %419 : vector<2x256xf32>
    %421 = vector.extract_strided_slice %0 {offsets = [8, 0, 0], sizes = [1, 2, 256], strides = [1, 1, 1]} : vector<9x2x256xf32> to vector<1x2x256xf32>
    %422 = vector.shape_cast %421 : vector<1x2x256xf32> to vector<2x256xf32>
    %c8_143 = arith.constant 8 : index
    %c6_144 = arith.constant 6 : index
    %423 = memref.load %arg1[%c8_143, %c6_144] : memref<9x16xf32, #tpu.memory_space<smem>>
    %424 = vector.broadcast %423 : f32 to vector<2x256xf32>
    %425 = arith.mulf %422, %424 : vector<2x256xf32>
    %426 = arith.addf %420, %425 : vector<2x256xf32>
    %c6_145 = arith.constant 6 : index
    %427 = memref.load %arg2[%c6_145] : memref<16xf32, #tpu.memory_space<smem>>
    %428 = vector.broadcast %427 : f32 to vector<2x256xf32>
    %429 = arith.addf %426, %428 : vector<2x256xf32>
    %cst_146 = arith.constant 0.000000e+00 : f32
    %430 = vector.broadcast %cst_146 : f32 to vector<2x256xf32>
    %431 = arith.maximumf %429, %430 : vector<2x256xf32>
    %c0_147 = arith.constant 0 : index
    %c1536 = arith.constant 1536 : index
    %432 = vector.load %arg3[%c0_147, %c1536] : memref<128x4096xbf16, #tpu.memory_space<vmem>>, vector<128x256xbf16>
    %433 = arith.truncf %431 : vector<2x256xf32> to vector<2x256xbf16>
    %cst_148 = arith.constant dense<0.000000e+00> : vector<2x128xf32>
    %434 = tpu.matmul %433, %432, %cst_148 {dimension_numbers = #tpu.dot_dimension_numbers<[1], [1], [0], [0], [0, 0, 1, 0], [], []>} : vector<2x256xbf16>, vector<128x256xbf16>, vector<2x128xf32> -> vector<2x128xf32>
    %435 = arith.addf %373, %434 : vector<2x128xf32>
    %436 = vector.extract_strided_slice %0 {offsets = [0, 0, 0], sizes = [1, 2, 256], strides = [1, 1, 1]} : vector<9x2x256xf32> to vector<1x2x256xf32>
    %437 = vector.shape_cast %436 : vector<1x2x256xf32> to vector<2x256xf32>
    %c0_149 = arith.constant 0 : index
    %c7_150 = arith.constant 7 : index
    %438 = memref.load %arg1[%c0_149, %c7_150] : memref<9x16xf32, #tpu.memory_space<smem>>
    %439 = vector.broadcast %438 : f32 to vector<2x256xf32>
    %440 = arith.mulf %437, %439 : vector<2x256xf32>
    %441 = vector.extract_strided_slice %0 {offsets = [1, 0, 0], sizes = [1, 2, 256], strides = [1, 1, 1]} : vector<9x2x256xf32> to vector<1x2x256xf32>
    %442 = vector.shape_cast %441 : vector<1x2x256xf32> to vector<2x256xf32>
    %c1_151 = arith.constant 1 : index
    %c7_152 = arith.constant 7 : index
    %443 = memref.load %arg1[%c1_151, %c7_152] : memref<9x16xf32, #tpu.memory_space<smem>>
    %444 = vector.broadcast %443 : f32 to vector<2x256xf32>
    %445 = arith.mulf %442, %444 : vector<2x256xf32>
    %446 = arith.addf %440, %445 : vector<2x256xf32>
    %447 = vector.extract_strided_slice %0 {offsets = [2, 0, 0], sizes = [1, 2, 256], strides = [1, 1, 1]} : vector<9x2x256xf32> to vector<1x2x256xf32>
    %448 = vector.shape_cast %447 : vector<1x2x256xf32> to vector<2x256xf32>
    %c2_153 = arith.constant 2 : index
    %c7_154 = arith.constant 7 : index
    %449 = memref.load %arg1[%c2_153, %c7_154] : memref<9x16xf32, #tpu.memory_space<smem>>
    %450 = vector.broadcast %449 : f32 to vector<2x256xf32>
    %451 = arith.mulf %448, %450 : vector<2x256xf32>
    %452 = arith.addf %446, %451 : vector<2x256xf32>
    %453 = vector.extract_strided_slice %0 {offsets = [3, 0, 0], sizes = [1, 2, 256], strides = [1, 1, 1]} : vector<9x2x256xf32> to vector<1x2x256xf32>
    %454 = vector.shape_cast %453 : vector<1x2x256xf32> to vector<2x256xf32>
    %c3_155 = arith.constant 3 : index
    %c7_156 = arith.constant 7 : index
    %455 = memref.load %arg1[%c3_155, %c7_156] : memref<9x16xf32, #tpu.memory_space<smem>>
    %456 = vector.broadcast %455 : f32 to vector<2x256xf32>
    %457 = arith.mulf %454, %456 : vector<2x256xf32>
    %458 = arith.addf %452, %457 : vector<2x256xf32>
    %459 = vector.extract_strided_slice %0 {offsets = [4, 0, 0], sizes = [1, 2, 256], strides = [1, 1, 1]} : vector<9x2x256xf32> to vector<1x2x256xf32>
    %460 = vector.shape_cast %459 : vector<1x2x256xf32> to vector<2x256xf32>
    %c4_157 = arith.constant 4 : index
    %c7_158 = arith.constant 7 : index
    %461 = memref.load %arg1[%c4_157, %c7_158] : memref<9x16xf32, #tpu.memory_space<smem>>
    %462 = vector.broadcast %461 : f32 to vector<2x256xf32>
    %463 = arith.mulf %460, %462 : vector<2x256xf32>
    %464 = arith.addf %458, %463 : vector<2x256xf32>
    %465 = vector.extract_strided_slice %0 {offsets = [5, 0, 0], sizes = [1, 2, 256], strides = [1, 1, 1]} : vector<9x2x256xf32> to vector<1x2x256xf32>
    %466 = vector.shape_cast %465 : vector<1x2x256xf32> to vector<2x256xf32>
    %c5_159 = arith.constant 5 : index
    %c7_160 = arith.constant 7 : index
    %467 = memref.load %arg1[%c5_159, %c7_160] : memref<9x16xf32, #tpu.memory_space<smem>>
    %468 = vector.broadcast %467 : f32 to vector<2x256xf32>
    %469 = arith.mulf %466, %468 : vector<2x256xf32>
    %470 = arith.addf %464, %469 : vector<2x256xf32>
    %471 = vector.extract_strided_slice %0 {offsets = [6, 0, 0], sizes = [1, 2, 256], strides = [1, 1, 1]} : vector<9x2x256xf32> to vector<1x2x256xf32>
    %472 = vector.shape_cast %471 : vector<1x2x256xf32> to vector<2x256xf32>
    %c6_161 = arith.constant 6 : index
    %c7_162 = arith.constant 7 : index
    %473 = memref.load %arg1[%c6_161, %c7_162] : memref<9x16xf32, #tpu.memory_space<smem>>
    %474 = vector.broadcast %473 : f32 to vector<2x256xf32>
    %475 = arith.mulf %472, %474 : vector<2x256xf32>
    %476 = arith.addf %470, %475 : vector<2x256xf32>
    %477 = vector.extract_strided_slice %0 {offsets = [7, 0, 0], sizes = [1, 2, 256], strides = [1, 1, 1]} : vector<9x2x256xf32> to vector<1x2x256xf32>
    %478 = vector.shape_cast %477 : vector<1x2x256xf32> to vector<2x256xf32>
    %c7_163 = arith.constant 7 : index
    %c7_164 = arith.constant 7 : index
    %479 = memref.load %arg1[%c7_163, %c7_164] : memref<9x16xf32, #tpu.memory_space<smem>>
    %480 = vector.broadcast %479 : f32 to vector<2x256xf32>
    %481 = arith.mulf %478, %480 : vector<2x256xf32>
    %482 = arith.addf %476, %481 : vector<2x256xf32>
    %483 = vector.extract_strided_slice %0 {offsets = [8, 0, 0], sizes = [1, 2, 256], strides = [1, 1, 1]} : vector<9x2x256xf32> to vector<1x2x256xf32>
    %484 = vector.shape_cast %483 : vector<1x2x256xf32> to vector<2x256xf32>
    %c8_165 = arith.constant 8 : index
    %c7_166 = arith.constant 7 : index
    %485 = memref.load %arg1[%c8_165, %c7_166] : memref<9x16xf32, #tpu.memory_space<smem>>
    %486 = vector.broadcast %485 : f32 to vector<2x256xf32>
    %487 = arith.mulf %484, %486 : vector<2x256xf32>
    %488 = arith.addf %482, %487 : vector<2x256xf32>
    %c7_167 = arith.constant 7 : index
    %489 = memref.load %arg2[%c7_167] : memref<16xf32, #tpu.memory_space<smem>>
    %490 = vector.broadcast %489 : f32 to vector<2x256xf32>
    %491 = arith.addf %488, %490 : vector<2x256xf32>
    %cst_168 = arith.constant 0.000000e+00 : f32
    %492 = vector.broadcast %cst_168 : f32 to vector<2x256xf32>
    %493 = arith.maximumf %491, %492 : vector<2x256xf32>
    %c0_169 = arith.constant 0 : index
    %c1792 = arith.constant 1792 : index
    %494 = vector.load %arg3[%c0_169, %c1792] : memref<128x4096xbf16, #tpu.memory_space<vmem>>, vector<128x256xbf16>
    %495 = arith.truncf %493 : vector<2x256xf32> to vector<2x256xbf16>
    %cst_170 = arith.constant dense<0.000000e+00> : vector<2x128xf32>
    %496 = tpu.matmul %495, %494, %cst_170 {dimension_numbers = #tpu.dot_dimension_numbers<[1], [1], [0], [0], [0, 0, 1, 0], [], []>} : vector<2x256xbf16>, vector<128x256xbf16>, vector<2x128xf32> -> vector<2x128xf32>
    %497 = arith.addf %435, %496 : vector<2x128xf32>
    %498 = vector.extract_strided_slice %0 {offsets = [0, 0, 0], sizes = [1, 2, 256], strides = [1, 1, 1]} : vector<9x2x256xf32> to vector<1x2x256xf32>
    %499 = vector.shape_cast %498 : vector<1x2x256xf32> to vector<2x256xf32>
    %c0_171 = arith.constant 0 : index
    %c8_172 = arith.constant 8 : index
    %500 = memref.load %arg1[%c0_171, %c8_172] : memref<9x16xf32, #tpu.memory_space<smem>>
    %501 = vector.broadcast %500 : f32 to vector<2x256xf32>
    %502 = arith.mulf %499, %501 : vector<2x256xf32>
    %503 = vector.extract_strided_slice %0 {offsets = [1, 0, 0], sizes = [1, 2, 256], strides = [1, 1, 1]} : vector<9x2x256xf32> to vector<1x2x256xf32>
    %504 = vector.shape_cast %503 : vector<1x2x256xf32> to vector<2x256xf32>
    %c1_173 = arith.constant 1 : index
    %c8_174 = arith.constant 8 : index
    %505 = memref.load %arg1[%c1_173, %c8_174] : memref<9x16xf32, #tpu.memory_space<smem>>
    %506 = vector.broadcast %505 : f32 to vector<2x256xf32>
    %507 = arith.mulf %504, %506 : vector<2x256xf32>
    %508 = arith.addf %502, %507 : vector<2x256xf32>
    %509 = vector.extract_strided_slice %0 {offsets = [2, 0, 0], sizes = [1, 2, 256], strides = [1, 1, 1]} : vector<9x2x256xf32> to vector<1x2x256xf32>
    %510 = vector.shape_cast %509 : vector<1x2x256xf32> to vector<2x256xf32>
    %c2_175 = arith.constant 2 : index
    %c8_176 = arith.constant 8 : index
    %511 = memref.load %arg1[%c2_175, %c8_176] : memref<9x16xf32, #tpu.memory_space<smem>>
    %512 = vector.broadcast %511 : f32 to vector<2x256xf32>
    %513 = arith.mulf %510, %512 : vector<2x256xf32>
    %514 = arith.addf %508, %513 : vector<2x256xf32>
    %515 = vector.extract_strided_slice %0 {offsets = [3, 0, 0], sizes = [1, 2, 256], strides = [1, 1, 1]} : vector<9x2x256xf32> to vector<1x2x256xf32>
    %516 = vector.shape_cast %515 : vector<1x2x256xf32> to vector<2x256xf32>
    %c3_177 = arith.constant 3 : index
    %c8_178 = arith.constant 8 : index
    %517 = memref.load %arg1[%c3_177, %c8_178] : memref<9x16xf32, #tpu.memory_space<smem>>
    %518 = vector.broadcast %517 : f32 to vector<2x256xf32>
    %519 = arith.mulf %516, %518 : vector<2x256xf32>
    %520 = arith.addf %514, %519 : vector<2x256xf32>
    %521 = vector.extract_strided_slice %0 {offsets = [4, 0, 0], sizes = [1, 2, 256], strides = [1, 1, 1]} : vector<9x2x256xf32> to vector<1x2x256xf32>
    %522 = vector.shape_cast %521 : vector<1x2x256xf32> to vector<2x256xf32>
    %c4_179 = arith.constant 4 : index
    %c8_180 = arith.constant 8 : index
    %523 = memref.load %arg1[%c4_179, %c8_180] : memref<9x16xf32, #tpu.memory_space<smem>>
    %524 = vector.broadcast %523 : f32 to vector<2x256xf32>
    %525 = arith.mulf %522, %524 : vector<2x256xf32>
    %526 = arith.addf %520, %525 : vector<2x256xf32>
    %527 = vector.extract_strided_slice %0 {offsets = [5, 0, 0], sizes = [1, 2, 256], strides = [1, 1, 1]} : vector<9x2x256xf32> to vector<1x2x256xf32>
    %528 = vector.shape_cast %527 : vector<1x2x256xf32> to vector<2x256xf32>
    %c5_181 = arith.constant 5 : index
    %c8_182 = arith.constant 8 : index
    %529 = memref.load %arg1[%c5_181, %c8_182] : memref<9x16xf32, #tpu.memory_space<smem>>
    %530 = vector.broadcast %529 : f32 to vector<2x256xf32>
    %531 = arith.mulf %528, %530 : vector<2x256xf32>
    %532 = arith.addf %526, %531 : vector<2x256xf32>
    %533 = vector.extract_strided_slice %0 {offsets = [6, 0, 0], sizes = [1, 2, 256], strides = [1, 1, 1]} : vector<9x2x256xf32> to vector<1x2x256xf32>
    %534 = vector.shape_cast %533 : vector<1x2x256xf32> to vector<2x256xf32>
    %c6_183 = arith.constant 6 : index
    %c8_184 = arith.constant 8 : index
    %535 = memref.load %arg1[%c6_183, %c8_184] : memref<9x16xf32, #tpu.memory_space<smem>>
    %536 = vector.broadcast %535 : f32 to vector<2x256xf32>
    %537 = arith.mulf %534, %536 : vector<2x256xf32>
    %538 = arith.addf %532, %537 : vector<2x256xf32>
    %539 = vector.extract_strided_slice %0 {offsets = [7, 0, 0], sizes = [1, 2, 256], strides = [1, 1, 1]} : vector<9x2x256xf32> to vector<1x2x256xf32>
    %540 = vector.shape_cast %539 : vector<1x2x256xf32> to vector<2x256xf32>
    %c7_185 = arith.constant 7 : index
    %c8_186 = arith.constant 8 : index
    %541 = memref.load %arg1[%c7_185, %c8_186] : memref<9x16xf32, #tpu.memory_space<smem>>
    %542 = vector.broadcast %541 : f32 to vector<2x256xf32>
    %543 = arith.mulf %540, %542 : vector<2x256xf32>
    %544 = arith.addf %538, %543 : vector<2x256xf32>
    %545 = vector.extract_strided_slice %0 {offsets = [8, 0, 0], sizes = [1, 2, 256], strides = [1, 1, 1]} : vector<9x2x256xf32> to vector<1x2x256xf32>
    %546 = vector.shape_cast %545 : vector<1x2x256xf32> to vector<2x256xf32>
    %c8_187 = arith.constant 8 : index
    %c8_188 = arith.constant 8 : index
    %547 = memref.load %arg1[%c8_187, %c8_188] : memref<9x16xf32, #tpu.memory_space<smem>>
    %548 = vector.broadcast %547 : f32 to vector<2x256xf32>
    %549 = arith.mulf %546, %548 : vector<2x256xf32>
    %550 = arith.addf %544, %549 : vector<2x256xf32>
    %c8_189 = arith.constant 8 : index
    %551 = memref.load %arg2[%c8_189] : memref<16xf32, #tpu.memory_space<smem>>
    %552 = vector.broadcast %551 : f32 to vector<2x256xf32>
    %553 = arith.addf %550, %552 : vector<2x256xf32>
    %cst_190 = arith.constant 0.000000e+00 : f32
    %554 = vector.broadcast %cst_190 : f32 to vector<2x256xf32>
    %555 = arith.maximumf %553, %554 : vector<2x256xf32>
    %c0_191 = arith.constant 0 : index
    %c2048 = arith.constant 2048 : index
    %556 = vector.load %arg3[%c0_191, %c2048] : memref<128x4096xbf16, #tpu.memory_space<vmem>>, vector<128x256xbf16>
    %557 = arith.truncf %555 : vector<2x256xf32> to vector<2x256xbf16>
    %cst_192 = arith.constant dense<0.000000e+00> : vector<2x128xf32>
    %558 = tpu.matmul %557, %556, %cst_192 {dimension_numbers = #tpu.dot_dimension_numbers<[1], [1], [0], [0], [0, 0, 1, 0], [], []>} : vector<2x256xbf16>, vector<128x256xbf16>, vector<2x128xf32> -> vector<2x128xf32>
    %559 = arith.addf %497, %558 : vector<2x128xf32>
    %560 = vector.extract_strided_slice %0 {offsets = [0, 0, 0], sizes = [1, 2, 256], strides = [1, 1, 1]} : vector<9x2x256xf32> to vector<1x2x256xf32>
    %561 = vector.shape_cast %560 : vector<1x2x256xf32> to vector<2x256xf32>
    %c0_193 = arith.constant 0 : index
    %c9 = arith.constant 9 : index
    %562 = memref.load %arg1[%c0_193, %c9] : memref<9x16xf32, #tpu.memory_space<smem>>
    %563 = vector.broadcast %562 : f32 to vector<2x256xf32>
    %564 = arith.mulf %561, %563 : vector<2x256xf32>
    %565 = vector.extract_strided_slice %0 {offsets = [1, 0, 0], sizes = [1, 2, 256], strides = [1, 1, 1]} : vector<9x2x256xf32> to vector<1x2x256xf32>
    %566 = vector.shape_cast %565 : vector<1x2x256xf32> to vector<2x256xf32>
    %c1_194 = arith.constant 1 : index
    %c9_195 = arith.constant 9 : index
    %567 = memref.load %arg1[%c1_194, %c9_195] : memref<9x16xf32, #tpu.memory_space<smem>>
    %568 = vector.broadcast %567 : f32 to vector<2x256xf32>
    %569 = arith.mulf %566, %568 : vector<2x256xf32>
    %570 = arith.addf %564, %569 : vector<2x256xf32>
    %571 = vector.extract_strided_slice %0 {offsets = [2, 0, 0], sizes = [1, 2, 256], strides = [1, 1, 1]} : vector<9x2x256xf32> to vector<1x2x256xf32>
    %572 = vector.shape_cast %571 : vector<1x2x256xf32> to vector<2x256xf32>
    %c2_196 = arith.constant 2 : index
    %c9_197 = arith.constant 9 : index
    %573 = memref.load %arg1[%c2_196, %c9_197] : memref<9x16xf32, #tpu.memory_space<smem>>
    %574 = vector.broadcast %573 : f32 to vector<2x256xf32>
    %575 = arith.mulf %572, %574 : vector<2x256xf32>
    %576 = arith.addf %570, %575 : vector<2x256xf32>
    %577 = vector.extract_strided_slice %0 {offsets = [3, 0, 0], sizes = [1, 2, 256], strides = [1, 1, 1]} : vector<9x2x256xf32> to vector<1x2x256xf32>
    %578 = vector.shape_cast %577 : vector<1x2x256xf32> to vector<2x256xf32>
    %c3_198 = arith.constant 3 : index
    %c9_199 = arith.constant 9 : index
    %579 = memref.load %arg1[%c3_198, %c9_199] : memref<9x16xf32, #tpu.memory_space<smem>>
    %580 = vector.broadcast %579 : f32 to vector<2x256xf32>
    %581 = arith.mulf %578, %580 : vector<2x256xf32>
    %582 = arith.addf %576, %581 : vector<2x256xf32>
    %583 = vector.extract_strided_slice %0 {offsets = [4, 0, 0], sizes = [1, 2, 256], strides = [1, 1, 1]} : vector<9x2x256xf32> to vector<1x2x256xf32>
    %584 = vector.shape_cast %583 : vector<1x2x256xf32> to vector<2x256xf32>
    %c4_200 = arith.constant 4 : index
    %c9_201 = arith.constant 9 : index
    %585 = memref.load %arg1[%c4_200, %c9_201] : memref<9x16xf32, #tpu.memory_space<smem>>
    %586 = vector.broadcast %585 : f32 to vector<2x256xf32>
    %587 = arith.mulf %584, %586 : vector<2x256xf32>
    %588 = arith.addf %582, %587 : vector<2x256xf32>
    %589 = vector.extract_strided_slice %0 {offsets = [5, 0, 0], sizes = [1, 2, 256], strides = [1, 1, 1]} : vector<9x2x256xf32> to vector<1x2x256xf32>
    %590 = vector.shape_cast %589 : vector<1x2x256xf32> to vector<2x256xf32>
    %c5_202 = arith.constant 5 : index
    %c9_203 = arith.constant 9 : index
    %591 = memref.load %arg1[%c5_202, %c9_203] : memref<9x16xf32, #tpu.memory_space<smem>>
    %592 = vector.broadcast %591 : f32 to vector<2x256xf32>
    %593 = arith.mulf %590, %592 : vector<2x256xf32>
    %594 = arith.addf %588, %593 : vector<2x256xf32>
    %595 = vector.extract_strided_slice %0 {offsets = [6, 0, 0], sizes = [1, 2, 256], strides = [1, 1, 1]} : vector<9x2x256xf32> to vector<1x2x256xf32>
    %596 = vector.shape_cast %595 : vector<1x2x256xf32> to vector<2x256xf32>
    %c6_204 = arith.constant 6 : index
    %c9_205 = arith.constant 9 : index
    %597 = memref.load %arg1[%c6_204, %c9_205] : memref<9x16xf32, #tpu.memory_space<smem>>
    %598 = vector.broadcast %597 : f32 to vector<2x256xf32>
    %599 = arith.mulf %596, %598 : vector<2x256xf32>
    %600 = arith.addf %594, %599 : vector<2x256xf32>
    %601 = vector.extract_strided_slice %0 {offsets = [7, 0, 0], sizes = [1, 2, 256], strides = [1, 1, 1]} : vector<9x2x256xf32> to vector<1x2x256xf32>
    %602 = vector.shape_cast %601 : vector<1x2x256xf32> to vector<2x256xf32>
    %c7_206 = arith.constant 7 : index
    %c9_207 = arith.constant 9 : index
    %603 = memref.load %arg1[%c7_206, %c9_207] : memref<9x16xf32, #tpu.memory_space<smem>>
    %604 = vector.broadcast %603 : f32 to vector<2x256xf32>
    %605 = arith.mulf %602, %604 : vector<2x256xf32>
    %606 = arith.addf %600, %605 : vector<2x256xf32>
    %607 = vector.extract_strided_slice %0 {offsets = [8, 0, 0], sizes = [1, 2, 256], strides = [1, 1, 1]} : vector<9x2x256xf32> to vector<1x2x256xf32>
    %608 = vector.shape_cast %607 : vector<1x2x256xf32> to vector<2x256xf32>
    %c8_208 = arith.constant 8 : index
    %c9_209 = arith.constant 9 : index
    %609 = memref.load %arg1[%c8_208, %c9_209] : memref<9x16xf32, #tpu.memory_space<smem>>
    %610 = vector.broadcast %609 : f32 to vector<2x256xf32>
    %611 = arith.mulf %608, %610 : vector<2x256xf32>
    %612 = arith.addf %606, %611 : vector<2x256xf32>
    %c9_210 = arith.constant 9 : index
    %613 = memref.load %arg2[%c9_210] : memref<16xf32, #tpu.memory_space<smem>>
    %614 = vector.broadcast %613 : f32 to vector<2x256xf32>
    %615 = arith.addf %612, %614 : vector<2x256xf32>
    %cst_211 = arith.constant 0.000000e+00 : f32
    %616 = vector.broadcast %cst_211 : f32 to vector<2x256xf32>
    %617 = arith.maximumf %615, %616 : vector<2x256xf32>
    %c0_212 = arith.constant 0 : index
    %c2304 = arith.constant 2304 : index
    %618 = vector.load %arg3[%c0_212, %c2304] : memref<128x4096xbf16, #tpu.memory_space<vmem>>, vector<128x256xbf16>
    %619 = arith.truncf %617 : vector<2x256xf32> to vector<2x256xbf16>
    %cst_213 = arith.constant dense<0.000000e+00> : vector<2x128xf32>
    %620 = tpu.matmul %619, %618, %cst_213 {dimension_numbers = #tpu.dot_dimension_numbers<[1], [1], [0], [0], [0, 0, 1, 0], [], []>} : vector<2x256xbf16>, vector<128x256xbf16>, vector<2x128xf32> -> vector<2x128xf32>
    %621 = arith.addf %559, %620 : vector<2x128xf32>
    %622 = vector.extract_strided_slice %0 {offsets = [0, 0, 0], sizes = [1, 2, 256], strides = [1, 1, 1]} : vector<9x2x256xf32> to vector<1x2x256xf32>
    %623 = vector.shape_cast %622 : vector<1x2x256xf32> to vector<2x256xf32>
    %c0_214 = arith.constant 0 : index
    %c10 = arith.constant 10 : index
    %624 = memref.load %arg1[%c0_214, %c10] : memref<9x16xf32, #tpu.memory_space<smem>>
    %625 = vector.broadcast %624 : f32 to vector<2x256xf32>
    %626 = arith.mulf %623, %625 : vector<2x256xf32>
    %627 = vector.extract_strided_slice %0 {offsets = [1, 0, 0], sizes = [1, 2, 256], strides = [1, 1, 1]} : vector<9x2x256xf32> to vector<1x2x256xf32>
    %628 = vector.shape_cast %627 : vector<1x2x256xf32> to vector<2x256xf32>
    %c1_215 = arith.constant 1 : index
    %c10_216 = arith.constant 10 : index
    %629 = memref.load %arg1[%c1_215, %c10_216] : memref<9x16xf32, #tpu.memory_space<smem>>
    %630 = vector.broadcast %629 : f32 to vector<2x256xf32>
    %631 = arith.mulf %628, %630 : vector<2x256xf32>
    %632 = arith.addf %626, %631 : vector<2x256xf32>
    %633 = vector.extract_strided_slice %0 {offsets = [2, 0, 0], sizes = [1, 2, 256], strides = [1, 1, 1]} : vector<9x2x256xf32> to vector<1x2x256xf32>
    %634 = vector.shape_cast %633 : vector<1x2x256xf32> to vector<2x256xf32>
    %c2_217 = arith.constant 2 : index
    %c10_218 = arith.constant 10 : index
    %635 = memref.load %arg1[%c2_217, %c10_218] : memref<9x16xf32, #tpu.memory_space<smem>>
    %636 = vector.broadcast %635 : f32 to vector<2x256xf32>
    %637 = arith.mulf %634, %636 : vector<2x256xf32>
    %638 = arith.addf %632, %637 : vector<2x256xf32>
    %639 = vector.extract_strided_slice %0 {offsets = [3, 0, 0], sizes = [1, 2, 256], strides = [1, 1, 1]} : vector<9x2x256xf32> to vector<1x2x256xf32>
    %640 = vector.shape_cast %639 : vector<1x2x256xf32> to vector<2x256xf32>
    %c3_219 = arith.constant 3 : index
    %c10_220 = arith.constant 10 : index
    %641 = memref.load %arg1[%c3_219, %c10_220] : memref<9x16xf32, #tpu.memory_space<smem>>
    %642 = vector.broadcast %641 : f32 to vector<2x256xf32>
    %643 = arith.mulf %640, %642 : vector<2x256xf32>
    %644 = arith.addf %638, %643 : vector<2x256xf32>
    %645 = vector.extract_strided_slice %0 {offsets = [4, 0, 0], sizes = [1, 2, 256], strides = [1, 1, 1]} : vector<9x2x256xf32> to vector<1x2x256xf32>
    %646 = vector.shape_cast %645 : vector<1x2x256xf32> to vector<2x256xf32>
    %c4_221 = arith.constant 4 : index
    %c10_222 = arith.constant 10 : index
    %647 = memref.load %arg1[%c4_221, %c10_222] : memref<9x16xf32, #tpu.memory_space<smem>>
    %648 = vector.broadcast %647 : f32 to vector<2x256xf32>
    %649 = arith.mulf %646, %648 : vector<2x256xf32>
    %650 = arith.addf %644, %649 : vector<2x256xf32>
    %651 = vector.extract_strided_slice %0 {offsets = [5, 0, 0], sizes = [1, 2, 256], strides = [1, 1, 1]} : vector<9x2x256xf32> to vector<1x2x256xf32>
    %652 = vector.shape_cast %651 : vector<1x2x256xf32> to vector<2x256xf32>
    %c5_223 = arith.constant 5 : index
    %c10_224 = arith.constant 10 : index
    %653 = memref.load %arg1[%c5_223, %c10_224] : memref<9x16xf32, #tpu.memory_space<smem>>
    %654 = vector.broadcast %653 : f32 to vector<2x256xf32>
    %655 = arith.mulf %652, %654 : vector<2x256xf32>
    %656 = arith.addf %650, %655 : vector<2x256xf32>
    %657 = vector.extract_strided_slice %0 {offsets = [6, 0, 0], sizes = [1, 2, 256], strides = [1, 1, 1]} : vector<9x2x256xf32> to vector<1x2x256xf32>
    %658 = vector.shape_cast %657 : vector<1x2x256xf32> to vector<2x256xf32>
    %c6_225 = arith.constant 6 : index
    %c10_226 = arith.constant 10 : index
    %659 = memref.load %arg1[%c6_225, %c10_226] : memref<9x16xf32, #tpu.memory_space<smem>>
    %660 = vector.broadcast %659 : f32 to vector<2x256xf32>
    %661 = arith.mulf %658, %660 : vector<2x256xf32>
    %662 = arith.addf %656, %661 : vector<2x256xf32>
    %663 = vector.extract_strided_slice %0 {offsets = [7, 0, 0], sizes = [1, 2, 256], strides = [1, 1, 1]} : vector<9x2x256xf32> to vector<1x2x256xf32>
    %664 = vector.shape_cast %663 : vector<1x2x256xf32> to vector<2x256xf32>
    %c7_227 = arith.constant 7 : index
    %c10_228 = arith.constant 10 : index
    %665 = memref.load %arg1[%c7_227, %c10_228] : memref<9x16xf32, #tpu.memory_space<smem>>
    %666 = vector.broadcast %665 : f32 to vector<2x256xf32>
    %667 = arith.mulf %664, %666 : vector<2x256xf32>
    %668 = arith.addf %662, %667 : vector<2x256xf32>
    %669 = vector.extract_strided_slice %0 {offsets = [8, 0, 0], sizes = [1, 2, 256], strides = [1, 1, 1]} : vector<9x2x256xf32> to vector<1x2x256xf32>
    %670 = vector.shape_cast %669 : vector<1x2x256xf32> to vector<2x256xf32>
    %c8_229 = arith.constant 8 : index
    %c10_230 = arith.constant 10 : index
    %671 = memref.load %arg1[%c8_229, %c10_230] : memref<9x16xf32, #tpu.memory_space<smem>>
    %672 = vector.broadcast %671 : f32 to vector<2x256xf32>
    %673 = arith.mulf %670, %672 : vector<2x256xf32>
    %674 = arith.addf %668, %673 : vector<2x256xf32>
    %c10_231 = arith.constant 10 : index
    %675 = memref.load %arg2[%c10_231] : memref<16xf32, #tpu.memory_space<smem>>
    %676 = vector.broadcast %675 : f32 to vector<2x256xf32>
    %677 = arith.addf %674, %676 : vector<2x256xf32>
    %cst_232 = arith.constant 0.000000e+00 : f32
    %678 = vector.broadcast %cst_232 : f32 to vector<2x256xf32>
    %679 = arith.maximumf %677, %678 : vector<2x256xf32>
    %c0_233 = arith.constant 0 : index
    %c2560 = arith.constant 2560 : index
    %680 = vector.load %arg3[%c0_233, %c2560] : memref<128x4096xbf16, #tpu.memory_space<vmem>>, vector<128x256xbf16>
    %681 = arith.truncf %679 : vector<2x256xf32> to vector<2x256xbf16>
    %cst_234 = arith.constant dense<0.000000e+00> : vector<2x128xf32>
    %682 = tpu.matmul %681, %680, %cst_234 {dimension_numbers = #tpu.dot_dimension_numbers<[1], [1], [0], [0], [0, 0, 1, 0], [], []>} : vector<2x256xbf16>, vector<128x256xbf16>, vector<2x128xf32> -> vector<2x128xf32>
    %683 = arith.addf %621, %682 : vector<2x128xf32>
    %684 = vector.extract_strided_slice %0 {offsets = [0, 0, 0], sizes = [1, 2, 256], strides = [1, 1, 1]} : vector<9x2x256xf32> to vector<1x2x256xf32>
    %685 = vector.shape_cast %684 : vector<1x2x256xf32> to vector<2x256xf32>
    %c0_235 = arith.constant 0 : index
    %c11 = arith.constant 11 : index
    %686 = memref.load %arg1[%c0_235, %c11] : memref<9x16xf32, #tpu.memory_space<smem>>
    %687 = vector.broadcast %686 : f32 to vector<2x256xf32>
    %688 = arith.mulf %685, %687 : vector<2x256xf32>
    %689 = vector.extract_strided_slice %0 {offsets = [1, 0, 0], sizes = [1, 2, 256], strides = [1, 1, 1]} : vector<9x2x256xf32> to vector<1x2x256xf32>
    %690 = vector.shape_cast %689 : vector<1x2x256xf32> to vector<2x256xf32>
    %c1_236 = arith.constant 1 : index
    %c11_237 = arith.constant 11 : index
    %691 = memref.load %arg1[%c1_236, %c11_237] : memref<9x16xf32, #tpu.memory_space<smem>>
    %692 = vector.broadcast %691 : f32 to vector<2x256xf32>
    %693 = arith.mulf %690, %692 : vector<2x256xf32>
    %694 = arith.addf %688, %693 : vector<2x256xf32>
    %695 = vector.extract_strided_slice %0 {offsets = [2, 0, 0], sizes = [1, 2, 256], strides = [1, 1, 1]} : vector<9x2x256xf32> to vector<1x2x256xf32>
    %696 = vector.shape_cast %695 : vector<1x2x256xf32> to vector<2x256xf32>
    %c2_238 = arith.constant 2 : index
    %c11_239 = arith.constant 11 : index
    %697 = memref.load %arg1[%c2_238, %c11_239] : memref<9x16xf32, #tpu.memory_space<smem>>
    %698 = vector.broadcast %697 : f32 to vector<2x256xf32>
    %699 = arith.mulf %696, %698 : vector<2x256xf32>
    %700 = arith.addf %694, %699 : vector<2x256xf32>
    %701 = vector.extract_strided_slice %0 {offsets = [3, 0, 0], sizes = [1, 2, 256], strides = [1, 1, 1]} : vector<9x2x256xf32> to vector<1x2x256xf32>
    %702 = vector.shape_cast %701 : vector<1x2x256xf32> to vector<2x256xf32>
    %c3_240 = arith.constant 3 : index
    %c11_241 = arith.constant 11 : index
    %703 = memref.load %arg1[%c3_240, %c11_241] : memref<9x16xf32, #tpu.memory_space<smem>>
    %704 = vector.broadcast %703 : f32 to vector<2x256xf32>
    %705 = arith.mulf %702, %704 : vector<2x256xf32>
    %706 = arith.addf %700, %705 : vector<2x256xf32>
    %707 = vector.extract_strided_slice %0 {offsets = [4, 0, 0], sizes = [1, 2, 256], strides = [1, 1, 1]} : vector<9x2x256xf32> to vector<1x2x256xf32>
    %708 = vector.shape_cast %707 : vector<1x2x256xf32> to vector<2x256xf32>
    %c4_242 = arith.constant 4 : index
    %c11_243 = arith.constant 11 : index
    %709 = memref.load %arg1[%c4_242, %c11_243] : memref<9x16xf32, #tpu.memory_space<smem>>
    %710 = vector.broadcast %709 : f32 to vector<2x256xf32>
    %711 = arith.mulf %708, %710 : vector<2x256xf32>
    %712 = arith.addf %706, %711 : vector<2x256xf32>
    %713 = vector.extract_strided_slice %0 {offsets = [5, 0, 0], sizes = [1, 2, 256], strides = [1, 1, 1]} : vector<9x2x256xf32> to vector<1x2x256xf32>
    %714 = vector.shape_cast %713 : vector<1x2x256xf32> to vector<2x256xf32>
    %c5_244 = arith.constant 5 : index
    %c11_245 = arith.constant 11 : index
    %715 = memref.load %arg1[%c5_244, %c11_245] : memref<9x16xf32, #tpu.memory_space<smem>>
    %716 = vector.broadcast %715 : f32 to vector<2x256xf32>
    %717 = arith.mulf %714, %716 : vector<2x256xf32>
    %718 = arith.addf %712, %717 : vector<2x256xf32>
    %719 = vector.extract_strided_slice %0 {offsets = [6, 0, 0], sizes = [1, 2, 256], strides = [1, 1, 1]} : vector<9x2x256xf32> to vector<1x2x256xf32>
    %720 = vector.shape_cast %719 : vector<1x2x256xf32> to vector<2x256xf32>
    %c6_246 = arith.constant 6 : index
    %c11_247 = arith.constant 11 : index
    %721 = memref.load %arg1[%c6_246, %c11_247] : memref<9x16xf32, #tpu.memory_space<smem>>
    %722 = vector.broadcast %721 : f32 to vector<2x256xf32>
    %723 = arith.mulf %720, %722 : vector<2x256xf32>
    %724 = arith.addf %718, %723 : vector<2x256xf32>
    %725 = vector.extract_strided_slice %0 {offsets = [7, 0, 0], sizes = [1, 2, 256], strides = [1, 1, 1]} : vector<9x2x256xf32> to vector<1x2x256xf32>
    %726 = vector.shape_cast %725 : vector<1x2x256xf32> to vector<2x256xf32>
    %c7_248 = arith.constant 7 : index
    %c11_249 = arith.constant 11 : index
    %727 = memref.load %arg1[%c7_248, %c11_249] : memref<9x16xf32, #tpu.memory_space<smem>>
    %728 = vector.broadcast %727 : f32 to vector<2x256xf32>
    %729 = arith.mulf %726, %728 : vector<2x256xf32>
    %730 = arith.addf %724, %729 : vector<2x256xf32>
    %731 = vector.extract_strided_slice %0 {offsets = [8, 0, 0], sizes = [1, 2, 256], strides = [1, 1, 1]} : vector<9x2x256xf32> to vector<1x2x256xf32>
    %732 = vector.shape_cast %731 : vector<1x2x256xf32> to vector<2x256xf32>
    %c8_250 = arith.constant 8 : index
    %c11_251 = arith.constant 11 : index
    %733 = memref.load %arg1[%c8_250, %c11_251] : memref<9x16xf32, #tpu.memory_space<smem>>
    %734 = vector.broadcast %733 : f32 to vector<2x256xf32>
    %735 = arith.mulf %732, %734 : vector<2x256xf32>
    %736 = arith.addf %730, %735 : vector<2x256xf32>
    %c11_252 = arith.constant 11 : index
    %737 = memref.load %arg2[%c11_252] : memref<16xf32, #tpu.memory_space<smem>>
    %738 = vector.broadcast %737 : f32 to vector<2x256xf32>
    %739 = arith.addf %736, %738 : vector<2x256xf32>
    %cst_253 = arith.constant 0.000000e+00 : f32
    %740 = vector.broadcast %cst_253 : f32 to vector<2x256xf32>
    %741 = arith.maximumf %739, %740 : vector<2x256xf32>
    %c0_254 = arith.constant 0 : index
    %c2816 = arith.constant 2816 : index
    %742 = vector.load %arg3[%c0_254, %c2816] : memref<128x4096xbf16, #tpu.memory_space<vmem>>, vector<128x256xbf16>
    %743 = arith.truncf %741 : vector<2x256xf32> to vector<2x256xbf16>
    %cst_255 = arith.constant dense<0.000000e+00> : vector<2x128xf32>
    %744 = tpu.matmul %743, %742, %cst_255 {dimension_numbers = #tpu.dot_dimension_numbers<[1], [1], [0], [0], [0, 0, 1, 0], [], []>} : vector<2x256xbf16>, vector<128x256xbf16>, vector<2x128xf32> -> vector<2x128xf32>
    %745 = arith.addf %683, %744 : vector<2x128xf32>
    %746 = vector.extract_strided_slice %0 {offsets = [0, 0, 0], sizes = [1, 2, 256], strides = [1, 1, 1]} : vector<9x2x256xf32> to vector<1x2x256xf32>
    %747 = vector.shape_cast %746 : vector<1x2x256xf32> to vector<2x256xf32>
    %c0_256 = arith.constant 0 : index
    %c12 = arith.constant 12 : index
    %748 = memref.load %arg1[%c0_256, %c12] : memref<9x16xf32, #tpu.memory_space<smem>>
    %749 = vector.broadcast %748 : f32 to vector<2x256xf32>
    %750 = arith.mulf %747, %749 : vector<2x256xf32>
    %751 = vector.extract_strided_slice %0 {offsets = [1, 0, 0], sizes = [1, 2, 256], strides = [1, 1, 1]} : vector<9x2x256xf32> to vector<1x2x256xf32>
    %752 = vector.shape_cast %751 : vector<1x2x256xf32> to vector<2x256xf32>
    %c1_257 = arith.constant 1 : index
    %c12_258 = arith.constant 12 : index
    %753 = memref.load %arg1[%c1_257, %c12_258] : memref<9x16xf32, #tpu.memory_space<smem>>
    %754 = vector.broadcast %753 : f32 to vector<2x256xf32>
    %755 = arith.mulf %752, %754 : vector<2x256xf32>
    %756 = arith.addf %750, %755 : vector<2x256xf32>
    %757 = vector.extract_strided_slice %0 {offsets = [2, 0, 0], sizes = [1, 2, 256], strides = [1, 1, 1]} : vector<9x2x256xf32> to vector<1x2x256xf32>
    %758 = vector.shape_cast %757 : vector<1x2x256xf32> to vector<2x256xf32>
    %c2_259 = arith.constant 2 : index
    %c12_260 = arith.constant 12 : index
    %759 = memref.load %arg1[%c2_259, %c12_260] : memref<9x16xf32, #tpu.memory_space<smem>>
    %760 = vector.broadcast %759 : f32 to vector<2x256xf32>
    %761 = arith.mulf %758, %760 : vector<2x256xf32>
    %762 = arith.addf %756, %761 : vector<2x256xf32>
    %763 = vector.extract_strided_slice %0 {offsets = [3, 0, 0], sizes = [1, 2, 256], strides = [1, 1, 1]} : vector<9x2x256xf32> to vector<1x2x256xf32>
    %764 = vector.shape_cast %763 : vector<1x2x256xf32> to vector<2x256xf32>
    %c3_261 = arith.constant 3 : index
    %c12_262 = arith.constant 12 : index
    %765 = memref.load %arg1[%c3_261, %c12_262] : memref<9x16xf32, #tpu.memory_space<smem>>
    %766 = vector.broadcast %765 : f32 to vector<2x256xf32>
    %767 = arith.mulf %764, %766 : vector<2x256xf32>
    %768 = arith.addf %762, %767 : vector<2x256xf32>
    %769 = vector.extract_strided_slice %0 {offsets = [4, 0, 0], sizes = [1, 2, 256], strides = [1, 1, 1]} : vector<9x2x256xf32> to vector<1x2x256xf32>
    %770 = vector.shape_cast %769 : vector<1x2x256xf32> to vector<2x256xf32>
    %c4_263 = arith.constant 4 : index
    %c12_264 = arith.constant 12 : index
    %771 = memref.load %arg1[%c4_263, %c12_264] : memref<9x16xf32, #tpu.memory_space<smem>>
    %772 = vector.broadcast %771 : f32 to vector<2x256xf32>
    %773 = arith.mulf %770, %772 : vector<2x256xf32>
    %774 = arith.addf %768, %773 : vector<2x256xf32>
    %775 = vector.extract_strided_slice %0 {offsets = [5, 0, 0], sizes = [1, 2, 256], strides = [1, 1, 1]} : vector<9x2x256xf32> to vector<1x2x256xf32>
    %776 = vector.shape_cast %775 : vector<1x2x256xf32> to vector<2x256xf32>
    %c5_265 = arith.constant 5 : index
    %c12_266 = arith.constant 12 : index
    %777 = memref.load %arg1[%c5_265, %c12_266] : memref<9x16xf32, #tpu.memory_space<smem>>
    %778 = vector.broadcast %777 : f32 to vector<2x256xf32>
    %779 = arith.mulf %776, %778 : vector<2x256xf32>
    %780 = arith.addf %774, %779 : vector<2x256xf32>
    %781 = vector.extract_strided_slice %0 {offsets = [6, 0, 0], sizes = [1, 2, 256], strides = [1, 1, 1]} : vector<9x2x256xf32> to vector<1x2x256xf32>
    %782 = vector.shape_cast %781 : vector<1x2x256xf32> to vector<2x256xf32>
    %c6_267 = arith.constant 6 : index
    %c12_268 = arith.constant 12 : index
    %783 = memref.load %arg1[%c6_267, %c12_268] : memref<9x16xf32, #tpu.memory_space<smem>>
    %784 = vector.broadcast %783 : f32 to vector<2x256xf32>
    %785 = arith.mulf %782, %784 : vector<2x256xf32>
    %786 = arith.addf %780, %785 : vector<2x256xf32>
    %787 = vector.extract_strided_slice %0 {offsets = [7, 0, 0], sizes = [1, 2, 256], strides = [1, 1, 1]} : vector<9x2x256xf32> to vector<1x2x256xf32>
    %788 = vector.shape_cast %787 : vector<1x2x256xf32> to vector<2x256xf32>
    %c7_269 = arith.constant 7 : index
    %c12_270 = arith.constant 12 : index
    %789 = memref.load %arg1[%c7_269, %c12_270] : memref<9x16xf32, #tpu.memory_space<smem>>
    %790 = vector.broadcast %789 : f32 to vector<2x256xf32>
    %791 = arith.mulf %788, %790 : vector<2x256xf32>
    %792 = arith.addf %786, %791 : vector<2x256xf32>
    %793 = vector.extract_strided_slice %0 {offsets = [8, 0, 0], sizes = [1, 2, 256], strides = [1, 1, 1]} : vector<9x2x256xf32> to vector<1x2x256xf32>
    %794 = vector.shape_cast %793 : vector<1x2x256xf32> to vector<2x256xf32>
    %c8_271 = arith.constant 8 : index
    %c12_272 = arith.constant 12 : index
    %795 = memref.load %arg1[%c8_271, %c12_272] : memref<9x16xf32, #tpu.memory_space<smem>>
    %796 = vector.broadcast %795 : f32 to vector<2x256xf32>
    %797 = arith.mulf %794, %796 : vector<2x256xf32>
    %798 = arith.addf %792, %797 : vector<2x256xf32>
    %c12_273 = arith.constant 12 : index
    %799 = memref.load %arg2[%c12_273] : memref<16xf32, #tpu.memory_space<smem>>
    %800 = vector.broadcast %799 : f32 to vector<2x256xf32>
    %801 = arith.addf %798, %800 : vector<2x256xf32>
    %cst_274 = arith.constant 0.000000e+00 : f32
    %802 = vector.broadcast %cst_274 : f32 to vector<2x256xf32>
    %803 = arith.maximumf %801, %802 : vector<2x256xf32>
    %c0_275 = arith.constant 0 : index
    %c3072 = arith.constant 3072 : index
    %804 = vector.load %arg3[%c0_275, %c3072] : memref<128x4096xbf16, #tpu.memory_space<vmem>>, vector<128x256xbf16>
    %805 = arith.truncf %803 : vector<2x256xf32> to vector<2x256xbf16>
    %cst_276 = arith.constant dense<0.000000e+00> : vector<2x128xf32>
    %806 = tpu.matmul %805, %804, %cst_276 {dimension_numbers = #tpu.dot_dimension_numbers<[1], [1], [0], [0], [0, 0, 1, 0], [], []>} : vector<2x256xbf16>, vector<128x256xbf16>, vector<2x128xf32> -> vector<2x128xf32>
    %807 = arith.addf %745, %806 : vector<2x128xf32>
    %808 = vector.extract_strided_slice %0 {offsets = [0, 0, 0], sizes = [1, 2, 256], strides = [1, 1, 1]} : vector<9x2x256xf32> to vector<1x2x256xf32>
    %809 = vector.shape_cast %808 : vector<1x2x256xf32> to vector<2x256xf32>
    %c0_277 = arith.constant 0 : index
    %c13 = arith.constant 13 : index
    %810 = memref.load %arg1[%c0_277, %c13] : memref<9x16xf32, #tpu.memory_space<smem>>
    %811 = vector.broadcast %810 : f32 to vector<2x256xf32>
    %812 = arith.mulf %809, %811 : vector<2x256xf32>
    %813 = vector.extract_strided_slice %0 {offsets = [1, 0, 0], sizes = [1, 2, 256], strides = [1, 1, 1]} : vector<9x2x256xf32> to vector<1x2x256xf32>
    %814 = vector.shape_cast %813 : vector<1x2x256xf32> to vector<2x256xf32>
    %c1_278 = arith.constant 1 : index
    %c13_279 = arith.constant 13 : index
    %815 = memref.load %arg1[%c1_278, %c13_279] : memref<9x16xf32, #tpu.memory_space<smem>>
    %816 = vector.broadcast %815 : f32 to vector<2x256xf32>
    %817 = arith.mulf %814, %816 : vector<2x256xf32>
    %818 = arith.addf %812, %817 : vector<2x256xf32>
    %819 = vector.extract_strided_slice %0 {offsets = [2, 0, 0], sizes = [1, 2, 256], strides = [1, 1, 1]} : vector<9x2x256xf32> to vector<1x2x256xf32>
    %820 = vector.shape_cast %819 : vector<1x2x256xf32> to vector<2x256xf32>
    %c2_280 = arith.constant 2 : index
    %c13_281 = arith.constant 13 : index
    %821 = memref.load %arg1[%c2_280, %c13_281] : memref<9x16xf32, #tpu.memory_space<smem>>
    %822 = vector.broadcast %821 : f32 to vector<2x256xf32>
    %823 = arith.mulf %820, %822 : vector<2x256xf32>
    %824 = arith.addf %818, %823 : vector<2x256xf32>
    %825 = vector.extract_strided_slice %0 {offsets = [3, 0, 0], sizes = [1, 2, 256], strides = [1, 1, 1]} : vector<9x2x256xf32> to vector<1x2x256xf32>
    %826 = vector.shape_cast %825 : vector<1x2x256xf32> to vector<2x256xf32>
    %c3_282 = arith.constant 3 : index
    %c13_283 = arith.constant 13 : index
    %827 = memref.load %arg1[%c3_282, %c13_283] : memref<9x16xf32, #tpu.memory_space<smem>>
    %828 = vector.broadcast %827 : f32 to vector<2x256xf32>
    %829 = arith.mulf %826, %828 : vector<2x256xf32>
    %830 = arith.addf %824, %829 : vector<2x256xf32>
    %831 = vector.extract_strided_slice %0 {offsets = [4, 0, 0], sizes = [1, 2, 256], strides = [1, 1, 1]} : vector<9x2x256xf32> to vector<1x2x256xf32>
    %832 = vector.shape_cast %831 : vector<1x2x256xf32> to vector<2x256xf32>
    %c4_284 = arith.constant 4 : index
    %c13_285 = arith.constant 13 : index
    %833 = memref.load %arg1[%c4_284, %c13_285] : memref<9x16xf32, #tpu.memory_space<smem>>
    %834 = vector.broadcast %833 : f32 to vector<2x256xf32>
    %835 = arith.mulf %832, %834 : vector<2x256xf32>
    %836 = arith.addf %830, %835 : vector<2x256xf32>
    %837 = vector.extract_strided_slice %0 {offsets = [5, 0, 0], sizes = [1, 2, 256], strides = [1, 1, 1]} : vector<9x2x256xf32> to vector<1x2x256xf32>
    %838 = vector.shape_cast %837 : vector<1x2x256xf32> to vector<2x256xf32>
    %c5_286 = arith.constant 5 : index
    %c13_287 = arith.constant 13 : index
    %839 = memref.load %arg1[%c5_286, %c13_287] : memref<9x16xf32, #tpu.memory_space<smem>>
    %840 = vector.broadcast %839 : f32 to vector<2x256xf32>
    %841 = arith.mulf %838, %840 : vector<2x256xf32>
    %842 = arith.addf %836, %841 : vector<2x256xf32>
    %843 = vector.extract_strided_slice %0 {offsets = [6, 0, 0], sizes = [1, 2, 256], strides = [1, 1, 1]} : vector<9x2x256xf32> to vector<1x2x256xf32>
    %844 = vector.shape_cast %843 : vector<1x2x256xf32> to vector<2x256xf32>
    %c6_288 = arith.constant 6 : index
    %c13_289 = arith.constant 13 : index
    %845 = memref.load %arg1[%c6_288, %c13_289] : memref<9x16xf32, #tpu.memory_space<smem>>
    %846 = vector.broadcast %845 : f32 to vector<2x256xf32>
    %847 = arith.mulf %844, %846 : vector<2x256xf32>
    %848 = arith.addf %842, %847 : vector<2x256xf32>
    %849 = vector.extract_strided_slice %0 {offsets = [7, 0, 0], sizes = [1, 2, 256], strides = [1, 1, 1]} : vector<9x2x256xf32> to vector<1x2x256xf32>
    %850 = vector.shape_cast %849 : vector<1x2x256xf32> to vector<2x256xf32>
    %c7_290 = arith.constant 7 : index
    %c13_291 = arith.constant 13 : index
    %851 = memref.load %arg1[%c7_290, %c13_291] : memref<9x16xf32, #tpu.memory_space<smem>>
    %852 = vector.broadcast %851 : f32 to vector<2x256xf32>
    %853 = arith.mulf %850, %852 : vector<2x256xf32>
    %854 = arith.addf %848, %853 : vector<2x256xf32>
    %855 = vector.extract_strided_slice %0 {offsets = [8, 0, 0], sizes = [1, 2, 256], strides = [1, 1, 1]} : vector<9x2x256xf32> to vector<1x2x256xf32>
    %856 = vector.shape_cast %855 : vector<1x2x256xf32> to vector<2x256xf32>
    %c8_292 = arith.constant 8 : index
    %c13_293 = arith.constant 13 : index
    %857 = memref.load %arg1[%c8_292, %c13_293] : memref<9x16xf32, #tpu.memory_space<smem>>
    %858 = vector.broadcast %857 : f32 to vector<2x256xf32>
    %859 = arith.mulf %856, %858 : vector<2x256xf32>
    %860 = arith.addf %854, %859 : vector<2x256xf32>
    %c13_294 = arith.constant 13 : index
    %861 = memref.load %arg2[%c13_294] : memref<16xf32, #tpu.memory_space<smem>>
    %862 = vector.broadcast %861 : f32 to vector<2x256xf32>
    %863 = arith.addf %860, %862 : vector<2x256xf32>
    %cst_295 = arith.constant 0.000000e+00 : f32
    %864 = vector.broadcast %cst_295 : f32 to vector<2x256xf32>
    %865 = arith.maximumf %863, %864 : vector<2x256xf32>
    %c0_296 = arith.constant 0 : index
    %c3328 = arith.constant 3328 : index
    %866 = vector.load %arg3[%c0_296, %c3328] : memref<128x4096xbf16, #tpu.memory_space<vmem>>, vector<128x256xbf16>
    %867 = arith.truncf %865 : vector<2x256xf32> to vector<2x256xbf16>
    %cst_297 = arith.constant dense<0.000000e+00> : vector<2x128xf32>
    %868 = tpu.matmul %867, %866, %cst_297 {dimension_numbers = #tpu.dot_dimension_numbers<[1], [1], [0], [0], [0, 0, 1, 0], [], []>} : vector<2x256xbf16>, vector<128x256xbf16>, vector<2x128xf32> -> vector<2x128xf32>
    %869 = arith.addf %807, %868 : vector<2x128xf32>
    %870 = vector.extract_strided_slice %0 {offsets = [0, 0, 0], sizes = [1, 2, 256], strides = [1, 1, 1]} : vector<9x2x256xf32> to vector<1x2x256xf32>
    %871 = vector.shape_cast %870 : vector<1x2x256xf32> to vector<2x256xf32>
    %c0_298 = arith.constant 0 : index
    %c14 = arith.constant 14 : index
    %872 = memref.load %arg1[%c0_298, %c14] : memref<9x16xf32, #tpu.memory_space<smem>>
    %873 = vector.broadcast %872 : f32 to vector<2x256xf32>
    %874 = arith.mulf %871, %873 : vector<2x256xf32>
    %875 = vector.extract_strided_slice %0 {offsets = [1, 0, 0], sizes = [1, 2, 256], strides = [1, 1, 1]} : vector<9x2x256xf32> to vector<1x2x256xf32>
    %876 = vector.shape_cast %875 : vector<1x2x256xf32> to vector<2x256xf32>
    %c1_299 = arith.constant 1 : index
    %c14_300 = arith.constant 14 : index
    %877 = memref.load %arg1[%c1_299, %c14_300] : memref<9x16xf32, #tpu.memory_space<smem>>
    %878 = vector.broadcast %877 : f32 to vector<2x256xf32>
    %879 = arith.mulf %876, %878 : vector<2x256xf32>
    %880 = arith.addf %874, %879 : vector<2x256xf32>
    %881 = vector.extract_strided_slice %0 {offsets = [2, 0, 0], sizes = [1, 2, 256], strides = [1, 1, 1]} : vector<9x2x256xf32> to vector<1x2x256xf32>
    %882 = vector.shape_cast %881 : vector<1x2x256xf32> to vector<2x256xf32>
    %c2_301 = arith.constant 2 : index
    %c14_302 = arith.constant 14 : index
    %883 = memref.load %arg1[%c2_301, %c14_302] : memref<9x16xf32, #tpu.memory_space<smem>>
    %884 = vector.broadcast %883 : f32 to vector<2x256xf32>
    %885 = arith.mulf %882, %884 : vector<2x256xf32>
    %886 = arith.addf %880, %885 : vector<2x256xf32>
    %887 = vector.extract_strided_slice %0 {offsets = [3, 0, 0], sizes = [1, 2, 256], strides = [1, 1, 1]} : vector<9x2x256xf32> to vector<1x2x256xf32>
    %888 = vector.shape_cast %887 : vector<1x2x256xf32> to vector<2x256xf32>
    %c3_303 = arith.constant 3 : index
    %c14_304 = arith.constant 14 : index
    %889 = memref.load %arg1[%c3_303, %c14_304] : memref<9x16xf32, #tpu.memory_space<smem>>
    %890 = vector.broadcast %889 : f32 to vector<2x256xf32>
    %891 = arith.mulf %888, %890 : vector<2x256xf32>
    %892 = arith.addf %886, %891 : vector<2x256xf32>
    %893 = vector.extract_strided_slice %0 {offsets = [4, 0, 0], sizes = [1, 2, 256], strides = [1, 1, 1]} : vector<9x2x256xf32> to vector<1x2x256xf32>
    %894 = vector.shape_cast %893 : vector<1x2x256xf32> to vector<2x256xf32>
    %c4_305 = arith.constant 4 : index
    %c14_306 = arith.constant 14 : index
    %895 = memref.load %arg1[%c4_305, %c14_306] : memref<9x16xf32, #tpu.memory_space<smem>>
    %896 = vector.broadcast %895 : f32 to vector<2x256xf32>
    %897 = arith.mulf %894, %896 : vector<2x256xf32>
    %898 = arith.addf %892, %897 : vector<2x256xf32>
    %899 = vector.extract_strided_slice %0 {offsets = [5, 0, 0], sizes = [1, 2, 256], strides = [1, 1, 1]} : vector<9x2x256xf32> to vector<1x2x256xf32>
    %900 = vector.shape_cast %899 : vector<1x2x256xf32> to vector<2x256xf32>
    %c5_307 = arith.constant 5 : index
    %c14_308 = arith.constant 14 : index
    %901 = memref.load %arg1[%c5_307, %c14_308] : memref<9x16xf32, #tpu.memory_space<smem>>
    %902 = vector.broadcast %901 : f32 to vector<2x256xf32>
    %903 = arith.mulf %900, %902 : vector<2x256xf32>
    %904 = arith.addf %898, %903 : vector<2x256xf32>
    %905 = vector.extract_strided_slice %0 {offsets = [6, 0, 0], sizes = [1, 2, 256], strides = [1, 1, 1]} : vector<9x2x256xf32> to vector<1x2x256xf32>
    %906 = vector.shape_cast %905 : vector<1x2x256xf32> to vector<2x256xf32>
    %c6_309 = arith.constant 6 : index
    %c14_310 = arith.constant 14 : index
    %907 = memref.load %arg1[%c6_309, %c14_310] : memref<9x16xf32, #tpu.memory_space<smem>>
    %908 = vector.broadcast %907 : f32 to vector<2x256xf32>
    %909 = arith.mulf %906, %908 : vector<2x256xf32>
    %910 = arith.addf %904, %909 : vector<2x256xf32>
    %911 = vector.extract_strided_slice %0 {offsets = [7, 0, 0], sizes = [1, 2, 256], strides = [1, 1, 1]} : vector<9x2x256xf32> to vector<1x2x256xf32>
    %912 = vector.shape_cast %911 : vector<1x2x256xf32> to vector<2x256xf32>
    %c7_311 = arith.constant 7 : index
    %c14_312 = arith.constant 14 : index
    %913 = memref.load %arg1[%c7_311, %c14_312] : memref<9x16xf32, #tpu.memory_space<smem>>
    %914 = vector.broadcast %913 : f32 to vector<2x256xf32>
    %915 = arith.mulf %912, %914 : vector<2x256xf32>
    %916 = arith.addf %910, %915 : vector<2x256xf32>
    %917 = vector.extract_strided_slice %0 {offsets = [8, 0, 0], sizes = [1, 2, 256], strides = [1, 1, 1]} : vector<9x2x256xf32> to vector<1x2x256xf32>
    %918 = vector.shape_cast %917 : vector<1x2x256xf32> to vector<2x256xf32>
    %c8_313 = arith.constant 8 : index
    %c14_314 = arith.constant 14 : index
    %919 = memref.load %arg1[%c8_313, %c14_314] : memref<9x16xf32, #tpu.memory_space<smem>>
    %920 = vector.broadcast %919 : f32 to vector<2x256xf32>
    %921 = arith.mulf %918, %920 : vector<2x256xf32>
    %922 = arith.addf %916, %921 : vector<2x256xf32>
    %c14_315 = arith.constant 14 : index
    %923 = memref.load %arg2[%c14_315] : memref<16xf32, #tpu.memory_space<smem>>
    %924 = vector.broadcast %923 : f32 to vector<2x256xf32>
    %925 = arith.addf %922, %924 : vector<2x256xf32>
    %cst_316 = arith.constant 0.000000e+00 : f32
    %926 = vector.broadcast %cst_316 : f32 to vector<2x256xf32>
    %927 = arith.maximumf %925, %926 : vector<2x256xf32>
    %c0_317 = arith.constant 0 : index
    %c3584 = arith.constant 3584 : index
    %928 = vector.load %arg3[%c0_317, %c3584] : memref<128x4096xbf16, #tpu.memory_space<vmem>>, vector<128x256xbf16>
    %929 = arith.truncf %927 : vector<2x256xf32> to vector<2x256xbf16>
    %cst_318 = arith.constant dense<0.000000e+00> : vector<2x128xf32>
    %930 = tpu.matmul %929, %928, %cst_318 {dimension_numbers = #tpu.dot_dimension_numbers<[1], [1], [0], [0], [0, 0, 1, 0], [], []>} : vector<2x256xbf16>, vector<128x256xbf16>, vector<2x128xf32> -> vector<2x128xf32>
    %931 = arith.addf %869, %930 : vector<2x128xf32>
    %932 = vector.extract_strided_slice %0 {offsets = [0, 0, 0], sizes = [1, 2, 256], strides = [1, 1, 1]} : vector<9x2x256xf32> to vector<1x2x256xf32>
    %933 = vector.shape_cast %932 : vector<1x2x256xf32> to vector<2x256xf32>
    %c0_319 = arith.constant 0 : index
    %c15 = arith.constant 15 : index
    %934 = memref.load %arg1[%c0_319, %c15] : memref<9x16xf32, #tpu.memory_space<smem>>
    %935 = vector.broadcast %934 : f32 to vector<2x256xf32>
    %936 = arith.mulf %933, %935 : vector<2x256xf32>
    %937 = vector.extract_strided_slice %0 {offsets = [1, 0, 0], sizes = [1, 2, 256], strides = [1, 1, 1]} : vector<9x2x256xf32> to vector<1x2x256xf32>
    %938 = vector.shape_cast %937 : vector<1x2x256xf32> to vector<2x256xf32>
    %c1_320 = arith.constant 1 : index
    %c15_321 = arith.constant 15 : index
    %939 = memref.load %arg1[%c1_320, %c15_321] : memref<9x16xf32, #tpu.memory_space<smem>>
    %940 = vector.broadcast %939 : f32 to vector<2x256xf32>
    %941 = arith.mulf %938, %940 : vector<2x256xf32>
    %942 = arith.addf %936, %941 : vector<2x256xf32>
    %943 = vector.extract_strided_slice %0 {offsets = [2, 0, 0], sizes = [1, 2, 256], strides = [1, 1, 1]} : vector<9x2x256xf32> to vector<1x2x256xf32>
    %944 = vector.shape_cast %943 : vector<1x2x256xf32> to vector<2x256xf32>
    %c2_322 = arith.constant 2 : index
    %c15_323 = arith.constant 15 : index
    %945 = memref.load %arg1[%c2_322, %c15_323] : memref<9x16xf32, #tpu.memory_space<smem>>
    %946 = vector.broadcast %945 : f32 to vector<2x256xf32>
    %947 = arith.mulf %944, %946 : vector<2x256xf32>
    %948 = arith.addf %942, %947 : vector<2x256xf32>
    %949 = vector.extract_strided_slice %0 {offsets = [3, 0, 0], sizes = [1, 2, 256], strides = [1, 1, 1]} : vector<9x2x256xf32> to vector<1x2x256xf32>
    %950 = vector.shape_cast %949 : vector<1x2x256xf32> to vector<2x256xf32>
    %c3_324 = arith.constant 3 : index
    %c15_325 = arith.constant 15 : index
    %951 = memref.load %arg1[%c3_324, %c15_325] : memref<9x16xf32, #tpu.memory_space<smem>>
    %952 = vector.broadcast %951 : f32 to vector<2x256xf32>
    %953 = arith.mulf %950, %952 : vector<2x256xf32>
    %954 = arith.addf %948, %953 : vector<2x256xf32>
    %955 = vector.extract_strided_slice %0 {offsets = [4, 0, 0], sizes = [1, 2, 256], strides = [1, 1, 1]} : vector<9x2x256xf32> to vector<1x2x256xf32>
    %956 = vector.shape_cast %955 : vector<1x2x256xf32> to vector<2x256xf32>
    %c4_326 = arith.constant 4 : index
    %c15_327 = arith.constant 15 : index
    %957 = memref.load %arg1[%c4_326, %c15_327] : memref<9x16xf32, #tpu.memory_space<smem>>
    %958 = vector.broadcast %957 : f32 to vector<2x256xf32>
    %959 = arith.mulf %956, %958 : vector<2x256xf32>
    %960 = arith.addf %954, %959 : vector<2x256xf32>
    %961 = vector.extract_strided_slice %0 {offsets = [5, 0, 0], sizes = [1, 2, 256], strides = [1, 1, 1]} : vector<9x2x256xf32> to vector<1x2x256xf32>
    %962 = vector.shape_cast %961 : vector<1x2x256xf32> to vector<2x256xf32>
    %c5_328 = arith.constant 5 : index
    %c15_329 = arith.constant 15 : index
    %963 = memref.load %arg1[%c5_328, %c15_329] : memref<9x16xf32, #tpu.memory_space<smem>>
    %964 = vector.broadcast %963 : f32 to vector<2x256xf32>
    %965 = arith.mulf %962, %964 : vector<2x256xf32>
    %966 = arith.addf %960, %965 : vector<2x256xf32>
    %967 = vector.extract_strided_slice %0 {offsets = [6, 0, 0], sizes = [1, 2, 256], strides = [1, 1, 1]} : vector<9x2x256xf32> to vector<1x2x256xf32>
    %968 = vector.shape_cast %967 : vector<1x2x256xf32> to vector<2x256xf32>
    %c6_330 = arith.constant 6 : index
    %c15_331 = arith.constant 15 : index
    %969 = memref.load %arg1[%c6_330, %c15_331] : memref<9x16xf32, #tpu.memory_space<smem>>
    %970 = vector.broadcast %969 : f32 to vector<2x256xf32>
    %971 = arith.mulf %968, %970 : vector<2x256xf32>
    %972 = arith.addf %966, %971 : vector<2x256xf32>
    %973 = vector.extract_strided_slice %0 {offsets = [7, 0, 0], sizes = [1, 2, 256], strides = [1, 1, 1]} : vector<9x2x256xf32> to vector<1x2x256xf32>
    %974 = vector.shape_cast %973 : vector<1x2x256xf32> to vector<2x256xf32>
    %c7_332 = arith.constant 7 : index
    %c15_333 = arith.constant 15 : index
    %975 = memref.load %arg1[%c7_332, %c15_333] : memref<9x16xf32, #tpu.memory_space<smem>>
    %976 = vector.broadcast %975 : f32 to vector<2x256xf32>
    %977 = arith.mulf %974, %976 : vector<2x256xf32>
    %978 = arith.addf %972, %977 : vector<2x256xf32>
    %979 = vector.extract_strided_slice %0 {offsets = [8, 0, 0], sizes = [1, 2, 256], strides = [1, 1, 1]} : vector<9x2x256xf32> to vector<1x2x256xf32>
    %980 = vector.shape_cast %979 : vector<1x2x256xf32> to vector<2x256xf32>
    %c8_334 = arith.constant 8 : index
    %c15_335 = arith.constant 15 : index
    %981 = memref.load %arg1[%c8_334, %c15_335] : memref<9x16xf32, #tpu.memory_space<smem>>
    %982 = vector.broadcast %981 : f32 to vector<2x256xf32>
    %983 = arith.mulf %980, %982 : vector<2x256xf32>
    %984 = arith.addf %978, %983 : vector<2x256xf32>
    %c15_336 = arith.constant 15 : index
    %985 = memref.load %arg2[%c15_336] : memref<16xf32, #tpu.memory_space<smem>>
    %986 = vector.broadcast %985 : f32 to vector<2x256xf32>
    %987 = arith.addf %984, %986 : vector<2x256xf32>
    %cst_337 = arith.constant 0.000000e+00 : f32
    %988 = vector.broadcast %cst_337 : f32 to vector<2x256xf32>
    %989 = arith.maximumf %987, %988 : vector<2x256xf32>
    %c0_338 = arith.constant 0 : index
    %c3840 = arith.constant 3840 : index
    %990 = vector.load %arg3[%c0_338, %c3840] : memref<128x4096xbf16, #tpu.memory_space<vmem>>, vector<128x256xbf16>
    %991 = arith.truncf %989 : vector<2x256xf32> to vector<2x256xbf16>
    %cst_339 = arith.constant dense<0.000000e+00> : vector<2x128xf32>
    %992 = tpu.matmul %991, %990, %cst_339 {dimension_numbers = #tpu.dot_dimension_numbers<[1], [1], [0], [0], [0, 0, 1, 0], [], []>} : vector<2x256xbf16>, vector<128x256xbf16>, vector<2x128xf32> -> vector<2x128xf32>
    %993 = arith.addf %931, %992 : vector<2x128xf32>
    %c0_340 = arith.constant 0 : index
    %c0_341 = arith.constant 0 : index
    %994 = vector.load %arg4[%c0_340, %c0_341] : memref<1x128xf32, #tpu.memory_space<vmem>>, vector<1x128xf32>
    %995 = vector.broadcast %994 : vector<1x128xf32> to vector<2x128xf32>
    %996 = arith.addf %993, %995 : vector<2x128xf32>
    %c0_342 = arith.constant 0 : index
    %c0_343 = arith.constant 0 : index
    %997 = vector.load %arg5[%c0_342, %c0_343] : memref<2x128xf32, #tpu.memory_space<vmem>>, vector<2x128xf32>
    tpu.vector_store %arg5[%c0_342, %c0_343], %996 {strides = array<i32>} : memref<2x128xf32, #tpu.memory_space<vmem>>, vector<2x128xf32>,
    return
  }
}

</mosaic_0001>

<llo_original>
// kernel: squeeze.3
$region0: #{squeeze.3}
  %s0 = inlined_call_operand.vmem [shape: f32[16,3,3], index: 0, kind: input, shape index: {}]
  %s1 = inlined_call_operand.vmem [shape: f32[16,9], index: 1, kind: output, shape index: {}]
  $region1: #{squeeze.3} parent=0
    #allocation0 [shape = 'u8[12288]{0}', space=vmem, size = 0x3000, scoped, tag = 'scoped mem for input reshape']
    %s3 = sshllo.u32 0, 4
    %s4 = smul.addr 4, 2
    %s5 = scalar_lea.vmem %s0, %s4
    %v6 = vld [vmem:[%s5] sm:%s3]
    %s7 = scalar_lea.vmem [#allocation0], 16
    %8 = vst [vmem:[%s7] sm:%s3] %v6
    %s9 = scalar_lea.vmem %s0, 4
    %v10 = vld [vmem:[%s9] sm:%s3]
    %s11 = scalar_lea.vmem [#allocation0], 8
    %12 = vst [vmem:[%s11] sm:%s3] %v10
    %v13 = vld [vmem:[%s0] sm:%s3]
    %14 = vst [vmem:[#allocation0] sm:%s3] %v13
    %v15 = vld [vmem:[#allocation0] sm:$0x7]
    %vm16 = vcmask 130048
    %17 = vst.msk [vmem:[%s1] sm:$0x7] %vm16, %v15
    %s18 = scalar_lea.vmem [#allocation0], 8
    %v19 = vld [vmem:[%s18] sm:$0x7]
    %vm20 = vcmask 130048
    %s21 = scalar_lea.vmem %s1, 3
    %22 = vst.msk [vmem:[%s21] sm:$0x7] %vm20, %v19
    %s23 = scalar_lea.vmem [#allocation0], 16
    %v24 = vld [vmem:[%s23] sm:$0x7]
    %vm25 = vcmask 130048
    %s26 = scalar_lea.vmem %s1, 6
    %27 = vst.msk [vmem:[%s26] sm:$0x7] %vm25, %v24

// kernel: encoder_forward.1
$region0: #{encoder_forward.1}
  #allocation0 [shape = 'u32[]', space=smem, size = 0x4, offset = 0x4, fixed_abs, tag = 'smem constant byte address 0x4 - core index']
  #allocation1 [shape = 'u32[144,128]{1,0:T(1,128)}', space=vmem, size = 0x12000, scoped, tag = 'internal scratch']
  %s0 = inlined_call_operand.vmem [shape: f32[9,2,256], index: 0, kind: input, shape index: {}]
  %s1 = inlined_call_operand.vmem [shape: f32[9,16], index: 1, kind: input, shape index: {}]
  %s2 = inlined_call_operand.vmem [shape: f32[16], index: 2, kind: input, shape index: {}]
  %s3 = inlined_call_operand.hbm [shape: bf16[128,4096], index: 3, kind: input, shape index: {}]
  %s4 = inlined_call_operand.vmem [shape: f32[1,128], index: 4, kind: input, shape index: {}]
  %s5 = inlined_call_operand.hbm [shape: f32[2,128], index: 5, kind: output, shape index: {}]
  %s6 = sld [smem:[#allocation0]]
  $region42: #{encoder_forward.1} parent=0
    _
  %s8 = ssub.s32 1, %s6
  %s9 = scalar_select 0, %s8, %s6
  $region1: #{encoder_forward.1} parent=0
    #allocation2 [shape = 'u8[8192]{0}', space=smem, size = 0x2000, scoped, tag = 'input window, operand 1, single buffered']
    #allocation3 [shape = 's32[1]{0}', space=sflag, size = 0x4, scoped, tag = 'scoped memory for encoder_forward.1']
    #allocation4 [shape = 's32[1]{0}', space=sflag, size = 0x4, scoped, tag = 'scoped memory for encoder_forward.1']
    #allocation5 [shape = 's32[1]{0}', space=sflag, size = 0x4, scoped, tag = 'scoped memory for encoder_forward.1']
    #allocation6 [shape = 'u8[512]{0}', space=smem, size = 0x200, scoped, tag = 'input window, operand 2, single buffered']
    #allocation7 [shape = 's32[1]{0}', space=sflag, size = 0x4, scoped, tag = 'scoped memory for encoder_forward.1']
    #allocation8 [shape = 'u8[1048576]{0}', space=vmem, size = 0x100000, scoped, tag = 'input window, operand 3, single buffered']
    #allocation9 [shape = 'u8[1024]{0}', space=vmem, size = 0x400, scoped, tag = 'output window, operand 0, single buffered']
    %10 = vsyncpa [#allocation5], 0
    %11 = vsyncpa [#allocation7], 0
    %12 = vsyncpa [#allocation3], 0
    %13 = vsyncpa [#allocation4], 0
    // Predicated region
    $region2: #{encoder_forward.1} parent=1 // pred_check
      _
    $region3: #{encoder_forward.1} parent=1 // pred_check_branch
      %15 = sbr.rel (0) target = $region5
    $region4: #{encoder_forward.1} parent=1 // pred_region
      _
    $region5: #{encoder_forward.1} parent=1 // pred_fallthru
      _
    // Predicated region
    $region6: #{encoder_forward.1} parent=1 // pred_check
      _
    $region7: #{encoder_forward.1} parent=1 // pred_check_branch
      %17 = sbr.rel (0) target = $region9
    $region8: #{encoder_forward.1} parent=1 // pred_region
      %s19 = ssub.s32 256, 256
      %20 = vsyncadd [#allocation5], %s19
      %s21 = sshll.u32 %s1, 4
      %s22 = int_to_ptr.vmem [resolvable:$true] %s21
      %27 = dma.vmem_to_smem %s22, 256, [#allocation2], [#allocation5], 128, 128, 8
    $region9: #{encoder_forward.1} parent=1 // pred_fallthru
      _
    // Predicated region
    $region10: #{encoder_forward.1} parent=1 // pred_check
      _
    $region11: #{encoder_forward.1} parent=1 // pred_check_branch
      %29 = sbr.rel (0) target = $region13
    $region12: #{encoder_forward.1} parent=1 // pred_region
      %s31 = ssub.s32 16, 16
      %32 = vsyncadd [#allocation7], %s31
      %s34 = sshll.u32 %s2, 4
      %s35 = int_to_ptr.vmem [resolvable:$true] %s34
      %37 = dma.vmem_to_smem %s35, 16, [#allocation6], [#allocation7]
    $region13: #{encoder_forward.1} parent=1 // pred_fallthru
      _
    // Predicated region
    $region14: #{encoder_forward.1} parent=1 // pred_check
      _
    $region15: #{encoder_forward.1} parent=1 // pred_check_branch
      %39 = sbr.rel (0) target = $region17
    $region16: #{encoder_forward.1} parent=1 // pred_region
      %s41 = ssub.s32 32768, 32768
      %42 = vsyncadd [#allocation3], %s41
      %s43 = sshll.u32 [#allocation8], 4
      %s44 = int_to_ptr.vmem [resolvable:$true] %s43
      %49 = dma.hbm_to_vmem [thread:$0]  %s3, 32768, %s44, [#allocation3], 2048, 2048, 128
    $region17: #{encoder_forward.1} parent=1 // pred_fallthru
      _
    // Predicated region
    $region18: #{encoder_forward.1} parent=1 // pred_check
      _
    $region19: #{encoder_forward.1} parent=1 // pred_check_branch
      %51 = sbr.rel (0) target = $region21
    $region20: #{encoder_forward.1} parent=1 // pred_region
      _
    $region21: #{encoder_forward.1} parent=1 // pred_fallthru
      _
    // Predicated region
    $region22: #{encoder_forward.1} parent=1 // pred_check
      _
    $region23: #{encoder_forward.1} parent=1 // pred_check_branch
      %53 = sbr.rel (0) target = $region25
    $region24: #{encoder_forward.1} parent=1 // pred_region
      %54 = dma.done [#allocation5], 256
    $region25: #{encoder_forward.1} parent=1 // pred_fallthru
      _
    // Predicated region
    $region26: #{encoder_forward.1} parent=1 // pred_check
      _
    $region27: #{encoder_forward.1} parent=1 // pred_check_branch
      %56 = sbr.rel (0) target = $region29
    $region28: #{encoder_forward.1} parent=1 // pred_region
      %57 = dma.done [#allocation7], 16
    $region29: #{encoder_forward.1} parent=1 // pred_fallthru
      _
    // Predicated region
    $region30: #{encoder_forward.1} parent=1 // pred_check
      _
    $region31: #{encoder_forward.1} parent=1 // pred_check_branch
      %59 = sbr.rel (0) target = $region33
    $region32: #{encoder_forward.1} parent=1 // pred_region
      %60 = dma.done [#allocation3], 32768
    $region33: #{encoder_forward.1} parent=1 // pred_fallthru
      _
    %61 = sfence
    %v63 = vld [vmem:[%s0] sm:$0xf]
    %v64 = vld [vmem:[%s0 + $0x4] sm:$0xf]
    %v65 = vld [vmem:[%s0 + $0x8] sm:$0xf]
    %v66 = vld [vmem:[%s0 + $0xc] sm:$0xf]
    %v67 = vld [vmem:[%s0 + $0x10] sm:$0xf]
    %v68 = vld [vmem:[%s0 + $0x14] sm:$0xf]
    %v69 = vld [vmem:[%s0 + $0x18] sm:$0xf]
    %v70 = vld [vmem:[%s0 + $0x1c] sm:$0xf]
    %v71 = vld [vmem:[%s0 + $0x20] sm:$0xf]
    %s72 = sld [smem:[#allocation2]]
    %v73 = vstv %s72
    %v74 = vmul.f32 %v63, %v73
    %s75 = sld [smem:[#allocation2 + $0x80]]
    %v76 = vstv %s75
    %v77 = vmul.f32 %v64, %v76
    %v78 = vadd.f32 %v74, %v77
    %s79 = sld [smem:[#allocation2 + $0x100]]
    %v80 = vstv %s79
    %v81 = vmul.f32 %v65, %v80
    %v82 = vadd.f32 %v78, %v81
    %s83 = sld [smem:[#allocation2 + $0x180]]
    %v84 = vstv %s83
    %v85 = vmul.f32 %v66, %v84
    %v86 = vadd.f32 %v82, %v85
    %s87 = sld [smem:[#allocation2 + $0x200]]
    %v88 = vstv %s87
    %v89 = vmul.f32 %v67, %v88
    %v90 = vadd.f32 %v86, %v89
    %s91 = sld [smem:[#allocation2 + $0x280]]
    %v92 = vstv %s91
    %v93 = vmul.f32 %v68, %v92
    %v94 = vadd.f32 %v90, %v93
    %s95 = sld [smem:[#allocation2 + $0x300]]
    %v96 = vstv %s95
    %v97 = vmul.f32 %v69, %v96
    %v98 = vadd.f32 %v94, %v97
    %s99 = sld [smem:[#allocation2 + $0x380]]
    %v100 = vstv %s99
    %v101 = vmul.f32 %v70, %v100
    %v102 = vadd.f32 %v98, %v101
    %s103 = sld [smem:[#allocation2 + $0x400]]
    %v104 = vstv %s103
    %v105 = vmul.f32 %v71, %v104
    %v106 = vadd.f32 %v102, %v105
    %s107 = sld [smem:[#allocation6]]
    %v108 = vstv %s107
    %v109 = vadd.f32 %v106, %v108
    %v110 = vmax.f32 %v109, 0.0
    %v111 = vld [vmem:[#allocation8] sm:$0xff]
    %v112 = vld [vmem:[#allocation8 + $0x80] sm:$0xff]
    %v113 = vld [vmem:[#allocation8 + $0x100] sm:$0xff]
    %v114 = vld [vmem:[#allocation8 + $0x180] sm:$0xff]
    %v115 = vld [vmem:[#allocation8 + $0x200] sm:$0xff]
    %v116 = vld [vmem:[#allocation8 + $0x280] sm:$0xff]
    %v117 = vld [vmem:[#allocation8 + $0x300] sm:$0xff]
    %v118 = vld [vmem:[#allocation8 + $0x380] sm:$0xff]
    %v119 = vld [vmem:[#allocation8 + $0x400] sm:$0xff]
    %v120 = vld [vmem:[#allocation8 + $0x480] sm:$0xff]
    %v121 = vld [vmem:[#allocation8 + $0x500] sm:$0xff]
    %v122 = vld [vmem:[#allocation8 + $0x580] sm:$0xff]
    %v123 = vld [vmem:[#allocation8 + $0x600] sm:$0xff]
    %v124 = vld [vmem:[#allocation8 + $0x680] sm:$0xff]
    %v125 = vld [vmem:[#allocation8 + $0x700] sm:$0xff]
    %v126 = vld [vmem:[#allocation8 + $0x780] sm:$0xff]
    %v129 = vunpack.c.l.s4 1983009808
    %v130 = vunpack.c.0.s8 %v129
    %v131 = vlaneseq
    %v132 = vshrl.u32 %v131, 7
    %v133 = vsub.s32 %v130, %v132
    %v134 = vrot.slane %v110, %v133
    %v135 = vcombine.high %v134, %v134
    %v138 = vpack.c.bf16 %v134, %v134
    %v139 = vpack.c.bf16 %v135, %v135
    %s140 = sld [smem:[#allocation2 + $0x1]]
    %v141 = vstv %s140
    %v142 = vmul.f32 %v63, %v141
    %s143 = sld [smem:[#allocation2 + $0x81]]
    %v144 = vstv %s143
    %v145 = vmul.f32 %v64, %v144
    %v146 = vadd.f32 %v142, %v145
    %s147 = sld [smem:[#allocation2 + $0x101]]
    %v148 = vstv %s147
    %v149 = vmul.f32 %v65, %v148
    %v150 = vadd.f32 %v146, %v149
    %s151 = sld [smem:[#allocation2 + $0x181]]
    %v152 = vstv %s151
    %v153 = vmul.f32 %v66, %v152
    %v154 = vadd.f32 %v150, %v153
    %s155 = sld [smem:[#allocation2 + $0x201]]
    %v156 = vstv %s155
    %v157 = vmul.f32 %v67, %v156
    %v158 = vadd.f32 %v154, %v157
    %s159 = sld [smem:[#allocation2 + $0x281]]
    %v160 = vstv %s159
    %v161 = vmul.f32 %v68, %v160
    %v162 = vadd.f32 %v158, %v161
    %s163 = sld [smem:[#allocation2 + $0x301]]
    %v164 = vstv %s163
    %v165 = vmul.f32 %v69, %v164
    %v166 = vadd.f32 %v162, %v165
    %s167 = sld [smem:[#allocation2 + $0x381]]
    %v168 = vstv %s167
    %v169 = vmul.f32 %v70, %v168
    %v170 = vadd.f32 %v166, %v169
    %s171 = sld [smem:[#allocation2 + $0x401]]
    %v172 = vstv %s171
    %v173 = vmul.f32 %v71, %v172
    %v174 = vadd.f32 %v170, %v173
    %s175 = sld [smem:[#allocation6 + $0x1]]
    %v176 = vstv %s175
    %v177 = vadd.f32 %v174, %v176
    %v178 = vmax.f32 %v177, 0.0
    %v179 = vld [vmem:[#allocation8 + $0x8] sm:$0xff]
    %v180 = vld [vmem:[#allocation8 + $0x88] sm:$0xff]
    %v181 = vld [vmem:[#allocation8 + $0x108] sm:$0xff]
    %v182 = vld [vmem:[#allocation8 + $0x188] sm:$0xff]
    %v183 = vld [vmem:[#allocation8 + $0x208] sm:$0xff]
    %v184 = vld [vmem:[#allocation8 + $0x288] sm:$0xff]
    %v185 = vld [vmem:[#allocation8 + $0x308] sm:$0xff]
    %v186 = vld [vmem:[#allocation8 + $0x388] sm:$0xff]
    %v187 = vld [vmem:[#allocation8 + $0x408] sm:$0xff]
    %v188 = vld [vmem:[#allocation8 + $0x488] sm:$0xff]
    %v189 = vld [vmem:[#allocation8 + $0x508] sm:$0xff]
    %v190 = vld [vmem:[#allocation8 + $0x588] sm:$0xff]
    %v191 = vld [vmem:[#allocation8 + $0x608] sm:$0xff]
    %v192 = vld [vmem:[#allocation8 + $0x688] sm:$0xff]
    %v193 = vld [vmem:[#allocation8 + $0x708] sm:$0xff]
    %v194 = vld [vmem:[#allocation8 + $0x788] sm:$0xff]
    %v197 = vunpack.c.l.s4 1983009808
    %v198 = vunpack.c.0.s8 %v197
    %v199 = vlaneseq
    %v200 = vshrl.u32 %v199, 7
    %v201 = vsub.s32 %v198, %v200
    %v202 = vrot.slane %v178, %v201
    %v203 = vcombine.high %v202, %v202
    %v206 = vpack.c.bf16 %v202, %v202
    %v207 = vpack.c.bf16 %v203, %v203
    %v224 = vunpack.c.l.b16 %v179
    %v225 = vunpack.c.h.b16 %v179
    %v226 = vunpack.c.l.b16 %v180
    %v227 = vunpack.c.h.b16 %v180
    %v228 = vunpack.c.l.b16 %v181
    %v229 = vunpack.c.h.b16 %v181
    %v230 = vunpack.c.l.b16 %v182
    %v231 = vunpack.c.h.b16 %v182
    %v232 = vunpack.c.l.b16 %v183
    %v233 = vunpack.c.h.b16 %v183
    %v234 = vunpack.c.l.b16 %v184
    %v235 = vunpack.c.h.b16 %v184
    %v236 = vunpack.c.l.b16 %v185
    %v237 = vunpack.c.h.b16 %v185
    %v238 = vunpack.c.l.b16 %v186
    %v239 = vunpack.c.h.b16 %v186
    %v240 = vunpack.c.l.b16 %v187
    %v241 = vunpack.c.h.b16 %v187
    %v242 = vunpack.c.l.b16 %v188
    %v243 = vunpack.c.h.b16 %v188
    %v244 = vunpack.c.l.b16 %v189
    %v245 = vunpack.c.h.b16 %v189
    %v246 = vunpack.c.l.b16 %v190
    %v247 = vunpack.c.h.b16 %v190
    %v248 = vunpack.c.l.b16 %v191
    %v249 = vunpack.c.h.b16 %v191
    %v250 = vunpack.c.l.b16 %v192
    %v251 = vunpack.c.h.b16 %v192
    %v252 = vunpack.c.l.b16 %v193
    %v253 = vunpack.c.h.b16 %v193
    %v254 = vunpack.c.l.b16 %v194
    %v255 = vunpack.c.h.b16 %v194
    %v256 = vpack.c.b16 %v226, %v224
    %v257 = vpack.c.b16 %v227, %v225
    %v258 = vpack.c.b16 %v230, %v228
    %v259 = vpack.c.b16 %v231, %v229
    %v260 = vpack.c.b16 %v234, %v232
    %v261 = vpack.c.b16 %v235, %v233
    %v262 = vpack.c.b16 %v238, %v236
    %v263 = vpack.c.b16 %v239, %v237
    %v264 = vpack.c.b16 %v242, %v240
    %v265 = vpack.c.b16 %v243, %v241
    %v266 = vpack.c.b16 %v246, %v244
    %v267 = vpack.c.b16 %v247, %v245
    %v268 = vpack.c.b16 %v250, %v248
    %v269 = vpack.c.b16 %v251, %v249
    %v270 = vpack.c.b16 %v254, %v252
    %v271 = vpack.c.b16 %v255, %v253
    %288 = vmatprep.subr.bf16.mxu0 %v257
    %289 = vmatpush1.bf16.xpose.msra.mxu0 %v256
    %290 = vmatprep.subr.bf16.mxu0 %v259
    %291 = vmatpush1.bf16.xpose.msra.mxu0 %v258
    %292 = vmatprep.subr.bf16.mxu0 %v261
    %293 = vmatpush1.bf16.xpose.msra.mxu0 %v260
    %294 = vmatprep.subr.bf16.mxu0 %v263
    %295 = vmatpush1.bf16.xpose.msra.mxu0 %v262
    %296 = vmatprep.subr.bf16.mxu0 %v265
    %297 = vmatpush1.bf16.xpose.msra.mxu0 %v264
    %298 = vmatprep.subr.bf16.mxu0 %v267
    %299 = vmatpush1.bf16.xpose.msra.mxu0 %v266
    %300 = vmatprep.subr.bf16.mxu0 %v269
    %301 = vmatpush1.bf16.xpose.msra.mxu0 %v268
    %302 = vmatprep.subr.bf16.mxu0 %v271
    %303 = vmatpush1.bf16.xpose.msra.mxu0 %v270
    %304 = vmatprep.subr.bf16.mxu0 0
    %305 = vmatpush1.bf16.xpose.msra.mxu0 0
    %306 = vmatprep.subr.bf16.mxu0 0
    %307 = vmatpush1.bf16.xpose.msra.mxu0 0
    %308 = vmatprep.subr.bf16.mxu0 0
    %309 = vmatpush1.bf16.xpose.msra.mxu0 0
    %310 = vmatprep.subr.bf16.mxu0 0
    %311 = vmatpush1.bf16.xpose.msra.mxu0 0
    %312 = vmatprep.subr.bf16.mxu0 0
    %313 = vmatpush1.bf16.xpose.msra.mxu0 0
    %314 = vmatprep.subr.bf16.mxu0 0
    %315 = vmatpush1.bf16.xpose.msra.mxu0 0
    %316 = vmatprep.subr.bf16.mxu0 0
    %317 = vmatpush1.bf16.xpose.msra.mxu0 0
    %318 = vmatprep.subr.bf16.mxu0 0
    %319 = vmatpush1.bf16.xpose.msra.mxu0 0
    %320 = vmatprep.mubr.bf16.mxu0 %v207
    %321 = vmatmul.mubr.bf16.gmra.mrb[0].mxu0 %v206
    %v322 = vpop.f32.mrb[0].mxu0
    %v323 = vadd.f32 0.0, %v322
    %v324 = vpop.f32.mrb[0].mxu0
    %v325 = vpop.f32.mrb[0].mxu0
    %v326 = vpop.f32.mrb[0].mxu0
    %327 = vdwg.mxu0
    %v344 = vunpack.c.l.b16 %v111
    %v345 = vunpack.c.h.b16 %v111
    %v346 = vunpack.c.l.b16 %v112
    %v347 = vunpack.c.h.b16 %v112
    %v348 = vunpack.c.l.b16 %v113
    %v349 = vunpack.c.h.b16 %v113
    %v350 = vunpack.c.l.b16 %v114
    %v351 = vunpack.c.h.b16 %v114
    %v352 = vunpack.c.l.b16 %v115
    %v353 = vunpack.c.h.b16 %v115
    %v354 = vunpack.c.l.b16 %v116
    %v355 = vunpack.c.h.b16 %v116
    %v356 = vunpack.c.l.b16 %v117
    %v357 = vunpack.c.h.b16 %v117
    %v358 = vunpack.c.l.b16 %v118
    %v359 = vunpack.c.h.b16 %v118
    %v360 = vunpack.c.l.b16 %v119
    %v361 = vunpack.c.h.b16 %v119
    %v362 = vunpack.c.l.b16 %v120
    %v363 = vunpack.c.h.b16 %v120
    %v364 = vunpack.c.l.b16 %v121
    %v365 = vunpack.c.h.b16 %v121
    %v366 = vunpack.c.l.b16 %v122
    %v367 = vunpack.c.h.b16 %v122
    %v368 = vunpack.c.l.b16 %v123
    %v369 = vunpack.c.h.b16 %v123
    %v370 = vunpack.c.l.b16 %v124
    %v371 = vunpack.c.h.b16 %v124
    %v372 = vunpack.c.l.b16 %v125
    %v373 = vunpack.c.h.b16 %v125
    %v374 = vunpack.c.l.b16 %v126
    %v375 = vunpack.c.h.b16 %v126
    %v376 = vpack.c.b16 %v346, %v344
    %v377 = vpack.c.b16 %v347, %v345
    %v378 = vpack.c.b16 %v350, %v348
    %v379 = vpack.c.b16 %v351, %v349
    %v380 = vpack.c.b16 %v354, %v352
    %v381 = vpack.c.b16 %v355, %v353
    %v382 = vpack.c.b16 %v358, %v356
    %v383 = vpack.c.b16 %v359, %v357
    %v384 = vpack.c.b16 %v362, %v360
    %v385 = vpack.c.b16 %v363, %v361
    %v386 = vpack.c.b16 %v366, %v364
    %v387 = vpack.c.b16 %v367, %v365
    %v388 = vpack.c.b16 %v370, %v368
    %v389 = vpack.c.b16 %v371, %v369
    %v390 = vpack.c.b16 %v374, %v372
    %v391 = vpack.c.b16 %v375, %v373
    %408 = vmatprep.subr.bf16.mxu0 %v377
    %409 = vmatpush1.bf16.xpose.msra.mxu0 %v376
    %410 = vmatprep.subr.bf16.mxu0 %v379
    %411 = vmatpush1.bf16.xpose.msra.mxu0 %v378
    %412 = vmatprep.subr.bf16.mxu0 %v381
    %413 = vmatpush1.bf16.xpose.msra.mxu0 %v380
    %414 = vmatprep.subr.bf16.mxu0 %v383
    %415 = vmatpush1.bf16.xpose.msra.mxu0 %v382
    %416 = vmatprep.subr.bf16.mxu0 %v385
    %417 = vmatpush1.bf16.xpose.msra.mxu0 %v384
    %418 = vmatprep.subr.bf16.mxu0 %v387
    %419 = vmatpush1.bf16.xpose.msra.mxu0 %v386
    %420 = vmatprep.subr.bf16.mxu0 %v389
    %421 = vmatpush1.bf16.xpose.msra.mxu0 %v388
    %422 = vmatprep.subr.bf16.mxu0 %v391
    %423 = vmatpush1.bf16.xpose.msra.mxu0 %v390
    %424 = vmatprep.subr.bf16.mxu0 0
    %425 = vmatpush1.bf16.xpose.msra.mxu0 0
    %426 = vmatprep.subr.bf16.mxu0 0
    %427 = vmatpush1.bf16.xpose.msra.mxu0 0
    %428 = vmatprep.subr.bf16.mxu0 0
    %429 = vmatpush1.bf16.xpose.msra.mxu0 0
    %430 = vmatprep.subr.bf16.mxu0 0
    %431 = vmatpush1.bf16.xpose.msra.mxu0 0
    %432 = vmatprep.subr.bf16.mxu0 0
    %433 = vmatpush1.bf16.xpose.msra.mxu0 0
    %434 = vmatprep.subr.bf16.mxu0 0
    %435 = vmatpush1.bf16.xpose.msra.mxu0 0
    %436 = vmatprep.subr.bf16.mxu0 0
    %437 = vmatpush1.bf16.xpose.msra.mxu0 0
    %438 = vmatprep.subr.bf16.mxu0 0
    %439 = vmatpush1.bf16.xpose.msra.mxu0 0
    %440 = vmatprep.mubr.bf16.mxu0 %v139
    %441 = vmatmul.mubr.bf16.gmra.mrb[0].mxu0 %v138
    %v442 = vpop.f32.mrb[0].mxu0
    %v443 = vadd.f32 %v323, %v442
    %v444 = vpop.f32.mrb[0].mxu0
    %v445 = vpop.f32.mrb[0].mxu0
    %v446 = vpop.f32.mrb[0].mxu0
    %447 = vdwg.mxu0
    %s448 = sld [smem:[#allocation2 + $0x2]]
    %v449 = vstv %s448
    %v450 = vmul.f32 %v63, %v449
    %s451 = sld [smem:[#allocation2 + $0x82]]
    %v452 = vstv %s451
    %v453 = vmul.f32 %v64, %v452
    %v454 = vadd.f32 %v450, %v453
    %s455 = sld [smem:[#allocation2 + $0x102]]
    %v456 = vstv %s455
    %v457 = vmul.f32 %v65, %v456
    %v458 = vadd.f32 %v454, %v457
    %s459 = sld [smem:[#allocation2 + $0x182]]
    %v460 = vstv %s459
    %v461 = vmul.f32 %v66, %v460
    %v462 = vadd.f32 %v458, %v461
    %s463 = sld [smem:[#allocation2 + $0x202]]
    %v464 = vstv %s463
    %v465 = vmul.f32 %v67, %v464
    %v466 = vadd.f32 %v462, %v465
    %s467 = sld [smem:[#allocation2 + $0x282]]
    %v468 = vstv %s467
    %v469 = vmul.f32 %v68, %v468
    %v470 = vadd.f32 %v466, %v469
    %s471 = sld [smem:[#allocation2 + $0x302]]
    %v472 = vstv %s471
    %v473 = vmul.f32 %v69, %v472
    %v474 = vadd.f32 %v470, %v473
    %s475 = sld [smem:[#allocation2 + $0x382]]
    %v476 = vstv %s475
    %v477 = vmul.f32 %v70, %v476
    %v478 = vadd.f32 %v474, %v477
    %s479 = sld [smem:[#allocation2 + $0x402]]
    %v480 = vstv %s479
    %v481 = vmul.f32 %v71, %v480
    %v482 = vadd.f32 %v478, %v481
    %s483 = sld [smem:[#allocation6 + $0x2]]
    %v484 = vstv %s483
    %v485 = vadd.f32 %v482, %v484
    %v486 = vmax.f32 %v485, 0.0
    %v487 = vld [vmem:[#allocation8 + $0x10] sm:$0xff]
    %v488 = vld [vmem:[#allocation8 + $0x90] sm:$0xff]
    %v489 = vld [vmem:[#allocation8 + $0x110] sm:$0xff]
    %v490 = vld [vmem:[#allocation8 + $0x190] sm:$0xff]
    %v491 = vld [vmem:[#allocation8 + $0x210] sm:$0xff]
    %v492 = vld [vmem:[#allocation8 + $0x290] sm:$0xff]
    %v493 = vld [vmem:[#allocation8 + $0x310] sm:$0xff]
    %v494 = vld [vmem:[#allocation8 + $0x390] sm:$0xff]
    %v495 = vld [vmem:[#allocation8 + $0x410] sm:$0xff]
    %v496 = vld [vmem:[#allocation8 + $0x490] sm:$0xff]
    %v497 = vld [vmem:[#allocation8 + $0x510] sm:$0xff]
    %v498 = vld [vmem:[#allocation8 + $0x590] sm:$0xff]
    %v499 = vld [vmem:[#allocation8 + $0x610] sm:$0xff]
    %v500 = vld [vmem:[#allocation8 + $0x690] sm:$0xff]
    %v501 = vld [vmem:[#allocation8 + $0x710] sm:$0xff]
    %v502 = vld [vmem:[#allocation8 + $0x790] sm:$0xff]
    %v505 = vunpack.c.l.s4 1983009808
    %v506 = vunpack.c.0.s8 %v505
    %v507 = vlaneseq
    %v508 = vshrl.u32 %v507, 7
    %v509 = vsub.s32 %v506, %v508
    %v510 = vrot.slane %v486, %v509
    %v511 = vcombine.high %v510, %v510
    %v514 = vpack.c.bf16 %v510, %v510
    %v515 = vpack.c.bf16 %v511, %v511
    %v532 = vunpack.c.l.b16 %v487
    %v533 = vunpack.c.h.b16 %v487
    %v534 = vunpack.c.l.b16 %v488
    %v535 = vunpack.c.h.b16 %v488
    %v536 = vunpack.c.l.b16 %v489
    %v537 = vunpack.c.h.b16 %v489
    %v538 = vunpack.c.l.b16 %v490
    %v539 = vunpack.c.h.b16 %v490
    %v540 = vunpack.c.l.b16 %v491
    %v541 = vunpack.c.h.b16 %v491
    %v542 = vunpack.c.l.b16 %v492
    %v543 = vunpack.c.h.b16 %v492
    %v544 = vunpack.c.l.b16 %v493
    %v545 = vunpack.c.h.b16 %v493
    %v546 = vunpack.c.l.b16 %v494
    %v547 = vunpack.c.h.b16 %v494
    %v548 = vunpack.c.l.b16 %v495
    %v549 = vunpack.c.h.b16 %v495
    %v550 = vunpack.c.l.b16 %v496
    %v551 = vunpack.c.h.b16 %v496
    %v552 = vunpack.c.l.b16 %v497
    %v553 = vunpack.c.h.b16 %v497
    %v554 = vunpack.c.l.b16 %v498
    %v555 = vunpack.c.h.b16 %v498
    %v556 = vunpack.c.l.b16 %v499
    %v557 = vunpack.c.h.b16 %v499
    %v558 = vunpack.c.l.b16 %v500
    %v559 = vunpack.c.h.b16 %v500
    %v560 = vunpack.c.l.b16 %v501
    %v561 = vunpack.c.h.b16 %v501
    %v562 = vunpack.c.l.b16 %v502
    %v563 = vunpack.c.h.b16 %v502
    %v564 = vpack.c.b16 %v534, %v532
    %v565 = vpack.c.b16 %v535, %v533
    %v566 = vpack.c.b16 %v538, %v536
    %v567 = vpack.c.b16 %v539, %v537
    %v568 = vpack.c.b16 %v542, %v540
    %v569 = vpack.c.b16 %v543, %v541
    %v570 = vpack.c.b16 %v546, %v544
    %v571 = vpack.c.b16 %v547, %v545
    %v572 = vpack.c.b16 %v550, %v548
    %v573 = vpack.c.b16 %v551, %v549
    %v574 = vpack.c.b16 %v554, %v552
    %v575 = vpack.c.b16 %v555, %v553
    %v576 = vpack.c.b16 %v558, %v556
    %v577 = vpack.c.b16 %v559, %v557
    %v578 = vpack.c.b16 %v562, %v560
    %v579 = vpack.c.b16 %v563, %v561
    %596 = vmatprep.subr.bf16.mxu0 %v565
    %597 = vmatpush1.bf16.xpose.msra.mxu0 %v564
    %598 = vmatprep.subr.bf16.mxu0 %v567
    %599 = vmatpush1.bf16.xpose.msra.mxu0 %v566
    %600 = vmatprep.subr.bf16.mxu0 %v569
    %601 = vmatpush1.bf16.xpose.msra.mxu0 %v568
    %602 = vmatprep.subr.bf16.mxu0 %v571
    %603 = vmatpush1.bf16.xpose.msra.mxu0 %v570
    %604 = vmatprep.subr.bf16.mxu0 %v573
    %605 = vmatpush1.bf16.xpose.msra.mxu0 %v572
    %606 = vmatprep.subr.bf16.mxu0 %v575
    %607 = vmatpush1.bf16.xpose.msra.mxu0 %v574
    %608 = vmatprep.subr.bf16.mxu0 %v577
    %609 = vmatpush1.bf16.xpose.msra.mxu0 %v576
    %610 = vmatprep.subr.bf16.mxu0 %v579
    %611 = vmatpush1.bf16.xpose.msra.mxu0 %v578
    %612 = vmatprep.subr.bf16.mxu0 0
    %613 = vmatpush1.bf16.xpose.msra.mxu0 0
    %614 = vmatprep.subr.bf16.mxu0 0
    %615 = vmatpush1.bf16.xpose.msra.mxu0 0
    %616 = vmatprep.subr.bf16.mxu0 0
    %617 = vmatpush1.bf16.xpose.msra.mxu0 0
    %618 = vmatprep.subr.bf16.mxu0 0
    %619 = vmatpush1.bf16.xpose.msra.mxu0 0
    %620 = vmatprep.subr.bf16.mxu0 0
    %621 = vmatpush1.bf16.xpose.msra.mxu0 0
    %622 = vmatprep.subr.bf16.mxu0 0
    %623 = vmatpush1.bf16.xpose.msra.mxu0 0
    %624 = vmatprep.subr.bf16.mxu0 0
    %625 = vmatpush1.bf16.xpose.msra.mxu0 0
    %626 = vmatprep.subr.bf16.mxu0 0
    %627 = vmatpush1.bf16.xpose.msra.mxu0 0
    %628 = vmatprep.mubr.bf16.mxu0 %v515
    %629 = vmatmul.mubr.bf16.gmra.mrb[0].mxu0 %v514
    %v630 = vpop.f32.mrb[0].mxu0
    %v631 = vadd.f32 0.0, %v630
    %v632 = vpop.f32.mrb[0].mxu0
    %v633 = vpop.f32.mrb[0].mxu0
    %v634 = vpop.f32.mrb[0].mxu0
    %635 = vdwg.mxu0
    %v636 = vadd.f32 %v443, %v631
    %s637 = sld [smem:[#allocation2 + $0x3]]
    %v638 = vstv %s637
    %v639 = vmul.f32 %v63, %v638
    %s640 = sld [smem:[#allocation2 + $0x83]]
    %v641 = vstv %s640
    %v642 = vmul.f32 %v64, %v641
    %v643 = vadd.f32 %v639, %v642
    %s644 = sld [smem:[#allocation2 + $0x103]]
    %v645 = vstv %s644
    %v646 = vmul.f32 %v65, %v645
    %v647 = vadd.f32 %v643, %v646
    %s648 = sld [smem:[#allocation2 + $0x183]]
    %v649 = vstv %s648
    %v650 = vmul.f32 %v66, %v649
    %v651 = vadd.f32 %v647, %v650
    %s652 = sld [smem:[#allocation2 + $0x203]]
    %v653 = vstv %s652
    %v654 = vmul.f32 %v67, %v653
    %v655 = vadd.f32 %v651, %v654
    %s656 = sld [smem:[#allocation2 + $0x283]]
    %v657 = vstv %s656
    %v658 = vmul.f32 %v68, %v657
    %v659 = vadd.f32 %v655, %v658
    %s660 = sld [smem:[#allocation2 + $0x303]]
    %v661 = vstv %s660
    %v662 = vmul.f32 %v69, %v661
    %v663 = vadd.f32 %v659, %v662
    %s664 = sld [smem:[#allocation2 + $0x383]]
    %v665 = vstv %s664
    %v666 = vmul.f32 %v70, %v665
    %v667 = vadd.f32 %v663, %v666
    %s668 = sld [smem:[#allocation2 + $0x403]]
    %v669 = vstv %s668
    %v670 = vmul.f32 %v71, %v669
    %v671 = vadd.f32 %v667, %v670
    %s672 = sld [smem:[#allocation6 + $0x3]]
    %v673 = vstv %s672
    %v674 = vadd.f32 %v671, %v673
    %v675 = vmax.f32 %v674, 0.0
    %v676 = vld [vmem:[#allocation8 + $0x18] sm:$0xff]
    %v677 = vld [vmem:[#allocation8 + $0x98] sm:$0xff]
    %v678 = vld [vmem:[#allocation8 + $0x118] sm:$0xff]
    %v679 = vld [vmem:[#allocation8 + $0x198] sm:$0xff]
    %v680 = vld [vmem:[#allocation8 + $0x218] sm:$0xff]
    %v681 = vld [vmem:[#allocation8 + $0x298] sm:$0xff]
    %v682 = vld [vmem:[#allocation8 + $0x318] sm:$0xff]
    %v683 = vld [vmem:[#allocation8 + $0x398] sm:$0xff]
    %v684 = vld [vmem:[#allocation8 + $0x418] sm:$0xff]
    %v685 = vld [vmem:[#allocation8 + $0x498] sm:$0xff]
    %v686 = vld [vmem:[#allocation8 + $0x518] sm:$0xff]
    %v687 = vld [vmem:[#allocation8 + $0x598] sm:$0xff]
    %v688 = vld [vmem:[#allocation8 + $0x618] sm:$0xff]
    %v689 = vld [vmem:[#allocation8 + $0x698] sm:$0xff]
    %v690 = vld [vmem:[#allocation8 + $0x718] sm:$0xff]
    %v691 = vld [vmem:[#allocation8 + $0x798] sm:$0xff]
    %v694 = vunpack.c.l.s4 1983009808
    %v695 = vunpack.c.0.s8 %v694
    %v696 = vlaneseq
    %v697 = vshrl.u32 %v696, 7
    %v698 = vsub.s32 %v695, %v697
    %v699 = vrot.slane %v675, %v698
    %v700 = vcombine.high %v699, %v699
    %v703 = vpack.c.bf16 %v699, %v699
    %v704 = vpack.c.bf16 %v700, %v700
    %v721 = vunpack.c.l.b16 %v676
    %v722 = vunpack.c.h.b16 %v676
    %v723 = vunpack.c.l.b16 %v677
    %v724 = vunpack.c.h.b16 %v677
    %v725 = vunpack.c.l.b16 %v678
    %v726 = vunpack.c.h.b16 %v678
    %v727 = vunpack.c.l.b16 %v679
    %v728 = vunpack.c.h.b16 %v679
    %v729 = vunpack.c.l.b16 %v680
    %v730 = vunpack.c.h.b16 %v680
    %v731 = vunpack.c.l.b16 %v681
    %v732 = vunpack.c.h.b16 %v681
    %v733 = vunpack.c.l.b16 %v682
    %v734 = vunpack.c.h.b16 %v682
    %v735 = vunpack.c.l.b16 %v683
    %v736 = vunpack.c.h.b16 %v683
    %v737 = vunpack.c.l.b16 %v684
    %v738 = vunpack.c.h.b16 %v684
    %v739 = vunpack.c.l.b16 %v685
    %v740 = vunpack.c.h.b16 %v685
    %v741 = vunpack.c.l.b16 %v686
    %v742 = vunpack.c.h.b16 %v686
    %v743 = vunpack.c.l.b16 %v687
    %v744 = vunpack.c.h.b16 %v687
    %v745 = vunpack.c.l.b16 %v688
    %v746 = vunpack.c.h.b16 %v688
    %v747 = vunpack.c.l.b16 %v689
    %v748 = vunpack.c.h.b16 %v689
    %v749 = vunpack.c.l.b16 %v690
    %v750 = vunpack.c.h.b16 %v690
    %v751 = vunpack.c.l.b16 %v691
    %v752 = vunpack.c.h.b16 %v691
    %v753 = vpack.c.b16 %v723, %v721
    %v754 = vpack.c.b16 %v724, %v722
    %v755 = vpack.c.b16 %v727, %v725
    %v756 = vpack.c.b16 %v728, %v726
    %v757 = vpack.c.b16 %v731, %v729
    %v758 = vpack.c.b16 %v732, %v730
    %v759 = vpack.c.b16 %v735, %v733
    %v760 = vpack.c.b16 %v736, %v734
    %v761 = vpack.c.b16 %v739, %v737
    %v762 = vpack.c.b16 %v740, %v738
    %v763 = vpack.c.b16 %v743, %v741
    %v764 = vpack.c.b16 %v744, %v742
    %v765 = vpack.c.b16 %v747, %v745
    %v766 = vpack.c.b16 %v748, %v746
    %v767 = vpack.c.b16 %v751, %v749
    %v768 = vpack.c.b16 %v752, %v750
    %785 = vmatprep.subr.bf16.mxu0 %v754
    %786 = vmatpush1.bf16.xpose.msra.mxu0 %v753
    %787 = vmatprep.subr.bf16.mxu0 %v756
    %788 = vmatpush1.bf16.xpose.msra.mxu0 %v755
    %789 = vmatprep.subr.bf16.mxu0 %v758
    %790 = vmatpush1.bf16.xpose.msra.mxu0 %v757
    %791 = vmatprep.subr.bf16.mxu0 %v760
    %792 = vmatpush1.bf16.xpose.msra.mxu0 %v759
    %793 = vmatprep.subr.bf16.mxu0 %v762
    %794 = vmatpush1.bf16.xpose.msra.mxu0 %v761
    %795 = vmatprep.subr.bf16.mxu0 %v764
    %796 = vmatpush1.bf16.xpose.msra.mxu0 %v763
    %797 = vmatprep.subr.bf16.mxu0 %v766
    %798 = vmatpush1.bf16.xpose.msra.mxu0 %v765
    %799 = vmatprep.subr.bf16.mxu0 %v768
    %800 = vmatpush1.bf16.xpose.msra.mxu0 %v767
    %801 = vmatprep.subr.bf16.mxu0 0
    %802 = vmatpush1.bf16.xpose.msra.mxu0 0
    %803 = vmatprep.subr.bf16.mxu0 0
    %804 = vmatpush1.bf16.xpose.msra.mxu0 0
    %805 = vmatprep.subr.bf16.mxu0 0
    %806 = vmatpush1.bf16.xpose.msra.mxu0 0
    %807 = vmatprep.subr.bf16.mxu0 0
    %808 = vmatpush1.bf16.xpose.msra.mxu0 0
    %809 = vmatprep.subr.bf16.mxu0 0
    %810 = vmatpush1.bf16.xpose.msra.mxu0 0
    %811 = vmatprep.subr.bf16.mxu0 0
    %812 = vmatpush1.bf16.xpose.msra.mxu0 0
    %813 = vmatprep.subr.bf16.mxu0 0
    %814 = vmatpush1.bf16.xpose.msra.mxu0 0
    %815 = vmatprep.subr.bf16.mxu0 0
    %816 = vmatpush1.bf16.xpose.msra.mxu0 0
    %817 = vmatprep.mubr.bf16.mxu0 %v704
    %818 = vmatmul.mubr.bf16.gmra.mrb[0].mxu0 %v703
    %v819 = vpop.f32.mrb[0].mxu0
    %v820 = vadd.f32 0.0, %v819
    %v821 = vpop.f32.mrb[0].mxu0
    %v822 = vpop.f32.mrb[0].mxu0
    %v823 = vpop.f32.mrb[0].mxu0
    %824 = vdwg.mxu0
    %v825 = vadd.f32 %v636, %v820
    %s826 = sld [smem:[#allocation2 + $0x4]]
    %v827 = vstv %s826
    %v828 = vmul.f32 %v63, %v827
    %s829 = sld [smem:[#allocation2 + $0x84]]
    %v830 = vstv %s829
    %v831 = vmul.f32 %v64, %v830
    %v832 = vadd.f32 %v828, %v831
    %s833 = sld [smem:[#allocation2 + $0x104]]
    %v834 = vstv %s833
    %v835 = vmul.f32 %v65, %v834
    %v836 = vadd.f32 %v832, %v835
    %s837 = sld [smem:[#allocation2 + $0x184]]
    %v838 = vstv %s837
    %v839 = vmul.f32 %v66, %v838
    %v840 = vadd.f32 %v836, %v839
    %s841 = sld [smem:[#allocation2 + $0x204]]
    %v842 = vstv %s841
    %v843 = vmul.f32 %v67, %v842
    %v844 = vadd.f32 %v840, %v843
    %s845 = sld [smem:[#allocation2 + $0x284]]
    %v846 = vstv %s845
    %v847 = vmul.f32 %v68, %v846
    %v848 = vadd.f32 %v844, %v847
    %s849 = sld [smem:[#allocation2 + $0x304]]
    %v850 = vstv %s849
    %v851 = vmul.f32 %v69, %v850
    %v852 = vadd.f32 %v848, %v851
    %s853 = sld [smem:[#allocation2 + $0x384]]
    %v854 = vstv %s853
    %v855 = vmul.f32 %v70, %v854
    %v856 = vadd.f32 %v852, %v855
    %s857 = sld [smem:[#allocation2 + $0x404]]
    %v858 = vstv %s857
    %v859 = vmul.f32 %v71, %v858
    %v860 = vadd.f32 %v856, %v859
    %s861 = sld [smem:[#allocation6 + $0x4]]
    %v862 = vstv %s861
    %v863 = vadd.f32 %v860, %v862
    %v864 = vmax.f32 %v863, 0.0
    %v865 = vld [vmem:[#allocation8 + $0x20] sm:$0xff]
    %v866 = vld [vmem:[#allocation8 + $0xa0] sm:$0xff]
    %v867 = vld [vmem:[#allocation8 + $0x120] sm:$0xff]
    %v868 = vld [vmem:[#allocation8 + $0x1a0] sm:$0xff]
    %v869 = vld [vmem:[#allocation8 + $0x220] sm:$0xff]
    %v870 = vld [vmem:[#allocation8 + $0x2a0] sm:$0xff]
    %v871 = vld [vmem:[#allocation8 + $0x320] sm:$0xff]
    %v872 = vld [vmem:[#allocation8 + $0x3a0] sm:$0xff]
    %v873 = vld [vmem:[#allocation8 + $0x420] sm:$0xff]
    %v874 = vld [vmem:[#allocation8 + $0x4a0] sm:$0xff]
    %v875 = vld [vmem:[#allocation8 + $0x520] sm:$0xff]
    %v876 = vld [vmem:[#allocation8 + $0x5a0] sm:$0xff]
    %v877 = vld [vmem:[#allocation8 + $0x620] sm:$0xff]
    %v878 = vld [vmem:[#allocation8 + $0x6a0] sm:$0xff]
    %v879 = vld [vmem:[#allocation8 + $0x720] sm:$0xff]
    %v880 = vld [vmem:[#allocation8 + $0x7a0] sm:$0xff]
    %v883 = vunpack.c.l.s4 1983009808
    %v884 = vunpack.c.0.s8 %v883
    %v885 = vlaneseq
    %v886 = vshrl.u32 %v885, 7
    %v887 = vsub.s32 %v884, %v886
    %v888 = vrot.slane %v864, %v887
    %v889 = vcombine.high %v888, %v888
    %v892 = vpack.c.bf16 %v888, %v888
    %v893 = vpack.c.bf16 %v889, %v889
    %v910 = vunpack.c.l.b16 %v865
    %v911 = vunpack.c.h.b16 %v865
    %v912 = vunpack.c.l.b16 %v866
    %v913 = vunpack.c.h.b16 %v866
    %v914 = vunpack.c.l.b16 %v867
    %v915 = vunpack.c.h.b16 %v867
    %v916 = vunpack.c.l.b16 %v868
    %v917 = vunpack.c.h.b16 %v868
    %v918 = vunpack.c.l.b16 %v869
    %v919 = vunpack.c.h.b16 %v869
    %v920 = vunpack.c.l.b16 %v870
    %v921 = vunpack.c.h.b16 %v870
    %v922 = vunpack.c.l.b16 %v871
    %v923 = vunpack.c.h.b16 %v871
    %v924 = vunpack.c.l.b16 %v872
    %v925 = vunpack.c.h.b16 %v872
    %v926 = vunpack.c.l.b16 %v873
    %v927 = vunpack.c.h.b16 %v873
    %v928 = vunpack.c.l.b16 %v874
    %v929 = vunpack.c.h.b16 %v874
    %v930 = vunpack.c.l.b16 %v875
    %v931 = vunpack.c.h.b16 %v875
    %v932 = vunpack.c.l.b16 %v876
    %v933 = vunpack.c.h.b16 %v876
    %v934 = vunpack.c.l.b16 %v877
    %v935 = vunpack.c.h.b16 %v877
    %v936 = vunpack.c.l.b16 %v878
    %v937 = vunpack.c.h.b16 %v878
    %v938 = vunpack.c.l.b16 %v879
    %v939 = vunpack.c.h.b16 %v879
    %v940 = vunpack.c.l.b16 %v880
    %v941 = vunpack.c.h.b16 %v880
    %v942 = vpack.c.b16 %v912, %v910
    %v943 = vpack.c.b16 %v913, %v911
    %v944 = vpack.c.b16 %v916, %v914
    %v945 = vpack.c.b16 %v917, %v915
    %v946 = vpack.c.b16 %v920, %v918
    %v947 = vpack.c.b16 %v921, %v919
    %v948 = vpack.c.b16 %v924, %v922
    %v949 = vpack.c.b16 %v925, %v923
    %v950 = vpack.c.b16 %v928, %v926
    %v951 = vpack.c.b16 %v929, %v927
    %v952 = vpack.c.b16 %v932, %v930
    %v953 = vpack.c.b16 %v933, %v931
    %v954 = vpack.c.b16 %v936, %v934
    %v955 = vpack.c.b16 %v937, %v935
    %v956 = vpack.c.b16 %v940, %v938
    %v957 = vpack.c.b16 %v941, %v939
    %974 = vmatprep.subr.bf16.mxu0 %v943
    %975 = vmatpush1.bf16.xpose.msra.mxu0 %v942
    %976 = vmatprep.subr.bf16.mxu0 %v945
    %977 = vmatpush1.bf16.xpose.msra.mxu0 %v944
    %978 = vmatprep.subr.bf16.mxu0 %v947
    %979 = vmatpush1.bf16.xpose.msra.mxu0 %v946
    %980 = vmatprep.subr.bf16.mxu0 %v949
    %981 = vmatpush1.bf16.xpose.msra.mxu0 %v948
    %982 = vmatprep.subr.bf16.mxu0 %v951
    %983 = vmatpush1.bf16.xpose.msra.mxu0 %v950
    %984 = vmatprep.subr.bf16.mxu0 %v953
    %985 = vmatpush1.bf16.xpose.msra.mxu0 %v952
    %986 = vmatprep.subr.bf16.mxu0 %v955
    %987 = vmatpush1.bf16.xpose.msra.mxu0 %v954
    %988 = vmatprep.subr.bf16.mxu0 %v957
    %989 = vmatpush1.bf16.xpose.msra.mxu0 %v956
    %990 = vmatprep.subr.bf16.mxu0 0
    %991 = vmatpush1.bf16.xpose.msra.mxu0 0
    %992 = vmatprep.subr.bf16.mxu0 0
    %993 = vmatpush1.bf16.xpose.msra.mxu0 0
    %994 = vmatprep.subr.bf16.mxu0 0
    %995 = vmatpush1.bf16.xpose.msra.mxu0 0
    %996 = vmatprep.subr.bf16.mxu0 0
    %997 = vmatpush1.bf16.xpose.msra.mxu0 0
    %998 = vmatprep.subr.bf16.mxu0 0
    %999 = vmatpush1.bf16.xpose.msra.mxu0 0
    %1000 = vmatprep.subr.bf16.mxu0 0
    %1001 = vmatpush1.bf16.xpose.msra.mxu0 0
    %1002 = vmatprep.subr.bf16.mxu0 0
    %1003 = vmatpush1.bf16.xpose.msra.mxu0 0
    %1004 = vmatprep.subr.bf16.mxu0 0
    %1005 = vmatpush1.bf16.xpose.msra.mxu0 0
    %1006 = vmatprep.mubr.bf16.mxu0 %v893
    %1007 = vmatmul.mubr.bf16.gmra.mrb[0].mxu0 %v892
    %v1008 = vpop.f32.mrb[0].mxu0
    %v1009 = vadd.f32 0.0, %v1008
    %v1010 = vpop.f32.mrb[0].mxu0
    %v1011 = vpop.f32.mrb[0].mxu0
    %v1012 = vpop.f32.mrb[0].mxu0
    %1013 = vdwg.mxu0
    %v1014 = vadd.f32 %v825, %v1009
    %s1015 = sld [smem:[#allocation2 + $0x5]]
    %v1016 = vstv %s1015
    %v1017 = vmul.f32 %v63, %v1016
    %s1018 = sld [smem:[#allocation2 + $0x85]]
    %v1019 = vstv %s1018
    %v1020 = vmul.f32 %v64, %v1019
    %v1021 = vadd.f32 %v1017, %v1020
    %s1022 = sld [smem:[#allocation2 + $0x105]]
    %v1023 = vstv %s1022
    %v1024 = vmul.f32 %v65, %v1023
    %v1025 = vadd.f32 %v1021, %v1024
    %s1026 = sld [smem:[#allocation2 + $0x185]]
    %v1027 = vstv %s1026
    %v1028 = vmul.f32 %v66, %v1027
    %v1029 = vadd.f32 %v1025, %v1028
    %s1030 = sld [smem:[#allocation2 + $0x205]]
    %v1031 = vstv %s1030
    %v1032 = vmul.f32 %v67, %v1031
    %v1033 = vadd.f32 %v1029, %v1032
    %s1034 = sld [smem:[#allocation2 + $0x285]]
    %v1035 = vstv %s1034
    %v1036 = vmul.f32 %v68, %v1035
    %v1037 = vadd.f32 %v1033, %v1036
    %s1038 = sld [smem:[#allocation2 + $0x305]]
    %v1039 = vstv %s1038
    %v1040 = vmul.f32 %v69, %v1039
    %v1041 = vadd.f32 %v1037, %v1040
    %s1042 = sld [smem:[#allocation2 + $0x385]]
    %v1043 = vstv %s1042
    %v1044 = vmul.f32 %v70, %v1043
    %v1045 = vadd.f32 %v1041, %v1044
    %s1046 = sld [smem:[#allocation2 + $0x405]]
    %v1047 = vstv %s1046
    %v1048 = vmul.f32 %v71, %v1047
    %v1049 = vadd.f32 %v1045, %v1048
    %s1050 = sld [smem:[#allocation6 + $0x5]]
    %v1051 = vstv %s1050
    %v1052 = vadd.f32 %v1049, %v1051
    %v1053 = vmax.f32 %v1052, 0.0
    %v1054 = vld [vmem:[#allocation8 + $0x28] sm:$0xff]
    %v1055 = vld [vmem:[#allocation8 + $0xa8] sm:$0xff]
    %v1056 = vld [vmem:[#allocation8 + $0x128] sm:$0xff]
    %v1057 = vld [vmem:[#allocation8 + $0x1a8] sm:$0xff]
    %v1058 = vld [vmem:[#allocation8 + $0x228] sm:$0xff]
    %v1059 = vld [vmem:[#allocation8 + $0x2a8] sm:$0xff]
    %v1060 = vld [vmem:[#allocation8 + $0x328] sm:$0xff]
    %v1061 = vld [vmem:[#allocation8 + $0x3a8] sm:$0xff]
    %v1062 = vld [vmem:[#allocation8 + $0x428] sm:$0xff]
    %v1063 = vld [vmem:[#allocation8 + $0x4a8] sm:$0xff]
    %v1064 = vld [vmem:[#allocation8 + $0x528] sm:$0xff]
    %v1065 = vld [vmem:[#allocation8 + $0x5a8] sm:$0xff]
    %v1066 = vld [vmem:[#allocation8 + $0x628] sm:$0xff]
    %v1067 = vld [vmem:[#allocation8 + $0x6a8] sm:$0xff]
    %v1068 = vld [vmem:[#allocation8 + $0x728] sm:$0xff]
    %v1069 = vld [vmem:[#allocation8 + $0x7a8] sm:$0xff]
    %v1072 = vunpack.c.l.s4 1983009808
    %v1073 = vunpack.c.0.s8 %v1072
    %v1074 = vlaneseq
    %v1075 = vshrl.u32 %v1074, 7
    %v1076 = vsub.s32 %v1073, %v1075
    %v1077 = vrot.slane %v1053, %v1076
    %v1078 = vcombine.high %v1077, %v1077
    %v1081 = vpack.c.bf16 %v1077, %v1077
    %v1082 = vpack.c.bf16 %v1078, %v1078
    %v1099 = vunpack.c.l.b16 %v1054
    %v1100 = vunpack.c.h.b16 %v1054
    %v1101 = vunpack.c.l.b16 %v1055
    %v1102 = vunpack.c.h.b16 %v1055
    %v1103 = vunpack.c.l.b16 %v1056
    %v1104 = vunpack.c.h.b16 %v1056
    %v1105 = vunpack.c.l.b16 %v1057
    %v1106 = vunpack.c.h.b16 %v1057
    %v1107 = vunpack.c.l.b16 %v1058
    %v1108 = vunpack.c.h.b16 %v1058
    %v1109 = vunpack.c.l.b16 %v1059
    %v1110 = vunpack.c.h.b16 %v1059
    %v1111 = vunpack.c.l.b16 %v1060
    %v1112 = vunpack.c.h.b16 %v1060
    %v1113 = vunpack.c.l.b16 %v1061
    %v1114 = vunpack.c.h.b16 %v1061
    %v1115 = vunpack.c.l.b16 %v1062
    %v1116 = vunpack.c.h.b16 %v1062
    %v1117 = vunpack.c.l.b16 %v1063
    %v1118 = vunpack.c.h.b16 %v1063
    %v1119 = vunpack.c.l.b16 %v1064
    %v1120 = vunpack.c.h.b16 %v1064
    %v1121 = vunpack.c.l.b16 %v1065
    %v1122 = vunpack.c.h.b16 %v1065
    %v1123 = vunpack.c.l.b16 %v1066
    %v1124 = vunpack.c.h.b16 %v1066
    %v1125 = vunpack.c.l.b16 %v1067
    %v1126 = vunpack.c.h.b16 %v1067
    %v1127 = vunpack.c.l.b16 %v1068
    %v1128 = vunpack.c.h.b16 %v1068
    %v1129 = vunpack.c.l.b16 %v1069
    %v1130 = vunpack.c.h.b16 %v1069
    %v1131 = vpack.c.b16 %v1101, %v1099
    %v1132 = vpack.c.b16 %v1102, %v1100
    %v1133 = vpack.c.b16 %v1105, %v1103
    %v1134 = vpack.c.b16 %v1106, %v1104
    %v1135 = vpack.c.b16 %v1109, %v1107
    %v1136 = vpack.c.b16 %v1110, %v1108
    %v1137 = vpack.c.b16 %v1113, %v1111
    %v1138 = vpack.c.b16 %v1114, %v1112
    %v1139 = vpack.c.b16 %v1117, %v1115
    %v1140 = vpack.c.b16 %v1118, %v1116
    %v1141 = vpack.c.b16 %v1121, %v1119
    %v1142 = vpack.c.b16 %v1122, %v1120
    %v1143 = vpack.c.b16 %v1125, %v1123
    %v1144 = vpack.c.b16 %v1126, %v1124
    %v1145 = vpack.c.b16 %v1129, %v1127
    %v1146 = vpack.c.b16 %v1130, %v1128
    %1163 = vmatprep.subr.bf16.mxu0 %v1132
    %1164 = vmatpush1.bf16.xpose.msra.mxu0 %v1131
    %1165 = vmatprep.subr.bf16.mxu0 %v1134
    %1166 = vmatpush1.bf16.xpose.msra.mxu0 %v1133
    %1167 = vmatprep.subr.bf16.mxu0 %v1136
    %1168 = vmatpush1.bf16.xpose.msra.mxu0 %v1135
    %1169 = vmatprep.subr.bf16.mxu0 %v1138
    %1170 = vmatpush1.bf16.xpose.msra.mxu0 %v1137
    %1171 = vmatprep.subr.bf16.mxu0 %v1140
    %1172 = vmatpush1.bf16.xpose.msra.mxu0 %v1139
    %1173 = vmatprep.subr.bf16.mxu0 %v1142
    %1174 = vmatpush1.bf16.xpose.msra.mxu0 %v1141
    %1175 = vmatprep.subr.bf16.mxu0 %v1144
    %1176 = vmatpush1.bf16.xpose.msra.mxu0 %v1143
    %1177 = vmatprep.subr.bf16.mxu0 %v1146
    %1178 = vmatpush1.bf16.xpose.msra.mxu0 %v1145
    %1179 = vmatprep.subr.bf16.mxu0 0
    %1180 = vmatpush1.bf16.xpose.msra.mxu0 0
    %1181 = vmatprep.subr.bf16.mxu0 0
    %1182 = vmatpush1.bf16.xpose.msra.mxu0 0
    %1183 = vmatprep.subr.bf16.mxu0 0
    %1184 = vmatpush1.bf16.xpose.msra.mxu0 0
    %1185 = vmatprep.subr.bf16.mxu0 0
    %1186 = vmatpush1.bf16.xpose.msra.mxu0 0
    %1187 = vmatprep.subr.bf16.mxu0 0
    %1188 = vmatpush1.bf16.xpose.msra.mxu0 0
    %1189 = vmatprep.subr.bf16.mxu0 0
    %1190 = vmatpush1.bf16.xpose.msra.mxu0 0
    %1191 = vmatprep.subr.bf16.mxu0 0
    %1192 = vmatpush1.bf16.xpose.msra.mxu0 0
    %1193 = vmatprep.subr.bf16.mxu0 0
    %1194 = vmatpush1.bf16.xpose.msra.mxu0 0
    %1195 = vmatprep.mubr.bf16.mxu0 %v1082
    %1196 = vmatmul.mubr.bf16.gmra.mrb[0].mxu0 %v1081
    %v1197 = vpop.f32.mrb[0].mxu0
    %v1198 = vadd.f32 0.0, %v1197
    %v1199 = vpop.f32.mrb[0].mxu0
    %v1200 = vpop.f32.mrb[0].mxu0
    %v1201 = vpop.f32.mrb[0].mxu0
    %1202 = vdwg.mxu0
    %v1203 = vadd.f32 %v1014, %v1198
    %s1204 = sld [smem:[#allocation2 + $0x6]]
    %v1205 = vstv %s1204
    %v1206 = vmul.f32 %v63, %v1205
    %s1207 = sld [smem:[#allocation2 + $0x86]]
    %v1208 = vstv %s1207
    %v1209 = vmul.f32 %v64, %v1208
    %v1210 = vadd.f32 %v1206, %v1209
    %s1211 = sld [smem:[#allocation2 + $0x106]]
    %v1212 = vstv %s1211
    %v1213 = vmul.f32 %v65, %v1212
    %v1214 = vadd.f32 %v1210, %v1213
    %s1215 = sld [smem:[#allocation2 + $0x186]]
    %v1216 = vstv %s1215
    %v1217 = vmul.f32 %v66, %v1216
    %v1218 = vadd.f32 %v1214, %v1217
    %s1219 = sld [smem:[#allocation2 + $0x206]]
    %v1220 = vstv %s1219
    %v1221 = vmul.f32 %v67, %v1220
    %v1222 = vadd.f32 %v1218, %v1221
    %s1223 = sld [smem:[#allocation2 + $0x286]]
    %v1224 = vstv %s1223
    %v1225 = vmul.f32 %v68, %v1224
    %v1226 = vadd.f32 %v1222, %v1225
    %s1227 = sld [smem:[#allocation2 + $0x306]]
    %v1228 = vstv %s1227
    %v1229 = vmul.f32 %v69, %v1228
    %v1230 = vadd.f32 %v1226, %v1229
    %s1231 = sld [smem:[#allocation2 + $0x386]]
    %v1232 = vstv %s1231
    %v1233 = vmul.f32 %v70, %v1232
    %v1234 = vadd.f32 %v1230, %v1233
    %s1235 = sld [smem:[#allocation2 + $0x406]]
    %v1236 = vstv %s1235
    %v1237 = vmul.f32 %v71, %v1236
    %v1238 = vadd.f32 %v1234, %v1237
    %s1239 = sld [smem:[#allocation6 + $0x6]]
    %v1240 = vstv %s1239
    %v1241 = vadd.f32 %v1238, %v1240
    %v1242 = vmax.f32 %v1241, 0.0
    %v1243 = vld [vmem:[#allocation8 + $0x30] sm:$0xff]
    %v1244 = vld [vmem:[#allocation8 + $0xb0] sm:$0xff]
    %v1245 = vld [vmem:[#allocation8 + $0x130] sm:$0xff]
    %v1246 = vld [vmem:[#allocation8 + $0x1b0] sm:$0xff]
    %v1247 = vld [vmem:[#allocation8 + $0x230] sm:$0xff]
    %v1248 = vld [vmem:[#allocation8 + $0x2b0] sm:$0xff]
    %v1249 = vld [vmem:[#allocation8 + $0x330] sm:$0xff]
    %v1250 = vld [vmem:[#allocation8 + $0x3b0] sm:$0xff]
    %v1251 = vld [vmem:[#allocation8 + $0x430] sm:$0xff]
    %v1252 = vld [vmem:[#allocation8 + $0x4b0] sm:$0xff]
    %v1253 = vld [vmem:[#allocation8 + $0x530] sm:$0xff]
    %v1254 = vld [vmem:[#allocation8 + $0x5b0] sm:$0xff]
    %v1255 = vld [vmem:[#allocation8 + $0x630] sm:$0xff]
    %v1256 = vld [vmem:[#allocation8 + $0x6b0] sm:$0xff]
    %v1257 = vld [vmem:[#allocation8 + $0x730] sm:$0xff]
    %v1258 = vld [vmem:[#allocation8 + $0x7b0] sm:$0xff]
    %v1261 = vunpack.c.l.s4 1983009808
    %v1262 = vunpack.c.0.s8 %v1261
    %v1263 = vlaneseq
    %v1264 = vshrl.u32 %v1263, 7
    %v1265 = vsub.s32 %v1262, %v1264
    %v1266 = vrot.slane %v1242, %v1265
    %v1267 = vcombine.high %v1266, %v1266
    %v1270 = vpack.c.bf16 %v1266, %v1266
    %v1271 = vpack.c.bf16 %v1267, %v1267
    %v1288 = vunpack.c.l.b16 %v1243
    %v1289 = vunpack.c.h.b16 %v1243
    %v1290 = vunpack.c.l.b16 %v1244
    %v1291 = vunpack.c.h.b16 %v1244
    %v1292 = vunpack.c.l.b16 %v1245
    %v1293 = vunpack.c.h.b16 %v1245
    %v1294 = vunpack.c.l.b16 %v1246
    %v1295 = vunpack.c.h.b16 %v1246
    %v1296 = vunpack.c.l.b16 %v1247
    %v1297 = vunpack.c.h.b16 %v1247
    %v1298 = vunpack.c.l.b16 %v1248
    %v1299 = vunpack.c.h.b16 %v1248
    %v1300 = vunpack.c.l.b16 %v1249
    %v1301 = vunpack.c.h.b16 %v1249
    %v1302 = vunpack.c.l.b16 %v1250
    %v1303 = vunpack.c.h.b16 %v1250
    %v1304 = vunpack.c.l.b16 %v1251
    %v1305 = vunpack.c.h.b16 %v1251
    %v1306 = vunpack.c.l.b16 %v1252
    %v1307 = vunpack.c.h.b16 %v1252
    %v1308 = vunpack.c.l.b16 %v1253
    %v1309 = vunpack.c.h.b16 %v1253
    %v1310 = vunpack.c.l.b16 %v1254
    %v1311 = vunpack.c.h.b16 %v1254
    %v1312 = vunpack.c.l.b16 %v1255
    %v1313 = vunpack.c.h.b16 %v1255
    %v1314 = vunpack.c.l.b16 %v1256
    %v1315 = vunpack.c.h.b16 %v1256
    %v1316 = vunpack.c.l.b16 %v1257
    %v1317 = vunpack.c.h.b16 %v1257
    %v1318 = vunpack.c.l.b16 %v1258
    %v1319 = vunpack.c.h.b16 %v1258
    %v1320 = vpack.c.b16 %v1290, %v1288
    %v1321 = vpack.c.b16 %v1291, %v1289
    %v1322 = vpack.c.b16 %v1294, %v1292
    %v1323 = vpack.c.b16 %v1295, %v1293
    %v1324 = vpack.c.b16 %v1298, %v1296
    %v1325 = vpack.c.b16 %v1299, %v1297
    %v1326 = vpack.c.b16 %v1302, %v1300
    %v1327 = vpack.c.b16 %v1303, %v1301
    %v1328 = vpack.c.b16 %v1306, %v1304
    %v1329 = vpack.c.b16 %v1307, %v1305
    %v1330 = vpack.c.b16 %v1310, %v1308
    %v1331 = vpack.c.b16 %v1311, %v1309
    %v1332 = vpack.c.b16 %v1314, %v1312
    %v1333 = vpack.c.b16 %v1315, %v1313
    %v1334 = vpack.c.b16 %v1318, %v1316
    %v1335 = vpack.c.b16 %v1319, %v1317
    %1352 = vmatprep.subr.bf16.mxu0 %v1321
    %1353 = vmatpush1.bf16.xpose.msra.mxu0 %v1320
    %1354 = vmatprep.subr.bf16.mxu0 %v1323
    %1355 = vmatpush1.bf16.xpose.msra.mxu0 %v1322
    %1356 = vmatprep.subr.bf16.mxu0 %v1325
    %1357 = vmatpush1.bf16.xpose.msra.mxu0 %v1324
    %1358 = vmatprep.subr.bf16.mxu0 %v1327
    %1359 = vmatpush1.bf16.xpose.msra.mxu0 %v1326
    %1360 = vmatprep.subr.bf16.mxu0 %v1329
    %1361 = vmatpush1.bf16.xpose.msra.mxu0 %v1328
    %1362 = vmatprep.subr.bf16.mxu0 %v1331
    %1363 = vmatpush1.bf16.xpose.msra.mxu0 %v1330
    %1364 = vmatprep.subr.bf16.mxu0 %v1333
    %1365 = vmatpush1.bf16.xpose.msra.mxu0 %v1332
    %1366 = vmatprep.subr.bf16.mxu0 %v1335
    %1367 = vmatpush1.bf16.xpose.msra.mxu0 %v1334
    %1368 = vmatprep.subr.bf16.mxu0 0
    %1369 = vmatpush1.bf16.xpose.msra.mxu0 0
    %1370 = vmatprep.subr.bf16.mxu0 0
    %1371 = vmatpush1.bf16.xpose.msra.mxu0 0
    %1372 = vmatprep.subr.bf16.mxu0 0
    %1373 = vmatpush1.bf16.xpose.msra.mxu0 0
    %1374 = vmatprep.subr.bf16.mxu0 0
    %1375 = vmatpush1.bf16.xpose.msra.mxu0 0
    %1376 = vmatprep.subr.bf16.mxu0 0
    %1377 = vmatpush1.bf16.xpose.msra.mxu0 0
    %1378 = vmatprep.subr.bf16.mxu0 0
    %1379 = vmatpush1.bf16.xpose.msra.mxu0 0
    %1380 = vmatprep.subr.bf16.mxu0 0
    %1381 = vmatpush1.bf16.xpose.msra.mxu0 0
    %1382 = vmatprep.subr.bf16.mxu0 0
    %1383 = vmatpush1.bf16.xpose.msra.mxu0 0
    %1384 = vmatprep.mubr.bf16.mxu0 %v1271
    %1385 = vmatmul.mubr.bf16.gmra.mrb[0].mxu0 %v1270
    %v1386 = vpop.f32.mrb[0].mxu0
    %v1387 = vadd.f32 0.0, %v1386
    %v1388 = vpop.f32.mrb[0].mxu0
    %v1389 = vpop.f32.mrb[0].mxu0
    %v1390 = vpop.f32.mrb[0].mxu0
    %1391 = vdwg.mxu0
    %v1392 = vadd.f32 %v1203, %v1387
    %s1393 = sld [smem:[#allocation2 + $0x7]]
    %v1394 = vstv %s1393
    %v1395 = vmul.f32 %v63, %v1394
    %s1396 = sld [smem:[#allocation2 + $0x87]]
    %v1397 = vstv %s1396
    %v1398 = vmul.f32 %v64, %v1397
    %v1399 = vadd.f32 %v1395, %v1398
    %s1400 = sld [smem:[#allocation2 + $0x107]]
    %v1401 = vstv %s1400
    %v1402 = vmul.f32 %v65, %v1401
    %v1403 = vadd.f32 %v1399, %v1402
    %s1404 = sld [smem:[#allocation2 + $0x187]]
    %v1405 = vstv %s1404
    %v1406 = vmul.f32 %v66, %v1405
    %v1407 = vadd.f32 %v1403, %v1406
    %s1408 = sld [smem:[#allocation2 + $0x207]]
    %v1409 = vstv %s1408
    %v1410 = vmul.f32 %v67, %v1409
    %v1411 = vadd.f32 %v1407, %v1410
    %s1412 = sld [smem:[#allocation2 + $0x287]]
    %v1413 = vstv %s1412
    %v1414 = vmul.f32 %v68, %v1413
    %v1415 = vadd.f32 %v1411, %v1414
    %s1416 = sld [smem:[#allocation2 + $0x307]]
    %v1417 = vstv %s1416
    %v1418 = vmul.f32 %v69, %v1417
    %v1419 = vadd.f32 %v1415, %v1418
    %s1420 = sld [smem:[#allocation2 + $0x387]]
    %v1421 = vstv %s1420
    %v1422 = vmul.f32 %v70, %v1421
    %v1423 = vadd.f32 %v1419, %v1422
    %s1424 = sld [smem:[#allocation2 + $0x407]]
    %v1425 = vstv %s1424
    %v1426 = vmul.f32 %v71, %v1425
    %v1427 = vadd.f32 %v1423, %v1426
    %s1428 = sld [smem:[#allocation6 + $0x7]]
    %v1429 = vstv %s1428
    %v1430 = vadd.f32 %v1427, %v1429
    %v1431 = vmax.f32 %v1430, 0.0
    %v1432 = vld [vmem:[#allocation8 + $0x38] sm:$0xff]
    %v1433 = vld [vmem:[#allocation8 + $0xb8] sm:$0xff]
    %v1434 = vld [vmem:[#allocation8 + $0x138] sm:$0xff]
    %v1435 = vld [vmem:[#allocation8 + $0x1b8] sm:$0xff]
    %v1436 = vld [vmem:[#allocation8 + $0x238] sm:$0xff]
    %v1437 = vld [vmem:[#allocation8 + $0x2b8] sm:$0xff]
    %v1438 = vld [vmem:[#allocation8 + $0x338] sm:$0xff]
    %v1439 = vld [vmem:[#allocation8 + $0x3b8] sm:$0xff]
    %v1440 = vld [vmem:[#allocation8 + $0x438] sm:$0xff]
    %v1441 = vld [vmem:[#allocation8 + $0x4b8] sm:$0xff]
    %v1442 = vld [vmem:[#allocation8 + $0x538] sm:$0xff]
    %v1443 = vld [vmem:[#allocation8 + $0x5b8] sm:$0xff]
    %v1444 = vld [vmem:[#allocation8 + $0x638] sm:$0xff]
    %v1445 = vld [vmem:[#allocation8 + $0x6b8] sm:$0xff]
    %v1446 = vld [vmem:[#allocation8 + $0x738] sm:$0xff]
    %v1447 = vld [vmem:[#allocation8 + $0x7b8] sm:$0xff]
    %v1450 = vunpack.c.l.s4 1983009808
    %v1451 = vunpack.c.0.s8 %v1450
    %v1452 = vlaneseq
    %v1453 = vshrl.u32 %v1452, 7
    %v1454 = vsub.s32 %v1451, %v1453
    %v1455 = vrot.slane %v1431, %v1454
    %v1456 = vcombine.high %v1455, %v1455
    %v1459 = vpack.c.bf16 %v1455, %v1455
    %v1460 = vpack.c.bf16 %v1456, %v1456
    %v1477 = vunpack.c.l.b16 %v1432
    %v1478 = vunpack.c.h.b16 %v1432
    %v1479 = vunpack.c.l.b16 %v1433
    %v1480 = vunpack.c.h.b16 %v1433
    %v1481 = vunpack.c.l.b16 %v1434
    %v1482 = vunpack.c.h.b16 %v1434
    %v1483 = vunpack.c.l.b16 %v1435
    %v1484 = vunpack.c.h.b16 %v1435
    %v1485 = vunpack.c.l.b16 %v1436
    %v1486 = vunpack.c.h.b16 %v1436
    %v1487 = vunpack.c.l.b16 %v1437
    %v1488 = vunpack.c.h.b16 %v1437
    %v1489 = vunpack.c.l.b16 %v1438
    %v1490 = vunpack.c.h.b16 %v1438
    %v1491 = vunpack.c.l.b16 %v1439
    %v1492 = vunpack.c.h.b16 %v1439
    %v1493 = vunpack.c.l.b16 %v1440
    %v1494 = vunpack.c.h.b16 %v1440
    %v1495 = vunpack.c.l.b16 %v1441
    %v1496 = vunpack.c.h.b16 %v1441
    %v1497 = vunpack.c.l.b16 %v1442
    %v1498 = vunpack.c.h.b16 %v1442
    %v1499 = vunpack.c.l.b16 %v1443
    %v1500 = vunpack.c.h.b16 %v1443
    %v1501 = vunpack.c.l.b16 %v1444
    %v1502 = vunpack.c.h.b16 %v1444
    %v1503 = vunpack.c.l.b16 %v1445
    %v1504 = vunpack.c.h.b16 %v1445
    %v1505 = vunpack.c.l.b16 %v1446
    %v1506 = vunpack.c.h.b16 %v1446
    %v1507 = vunpack.c.l.b16 %v1447
    %v1508 = vunpack.c.h.b16 %v1447
    %v1509 = vpack.c.b16 %v1479, %v1477
    %v1510 = vpack.c.b16 %v1480, %v1478
    %v1511 = vpack.c.b16 %v1483, %v1481
    %v1512 = vpack.c.b16 %v1484, %v1482
    %v1513 = vpack.c.b16 %v1487, %v1485
    %v1514 = vpack.c.b16 %v1488, %v1486
    %v1515 = vpack.c.b16 %v1491, %v1489
    %v1516 = vpack.c.b16 %v1492, %v1490
    %v1517 = vpack.c.b16 %v1495, %v1493
    %v1518 = vpack.c.b16 %v1496, %v1494
    %v1519 = vpack.c.b16 %v1499, %v1497
    %v1520 = vpack.c.b16 %v1500, %v1498
    %v1521 = vpack.c.b16 %v1503, %v1501
    %v1522 = vpack.c.b16 %v1504, %v1502
    %v1523 = vpack.c.b16 %v1507, %v1505
    %v1524 = vpack.c.b16 %v1508, %v1506
    %1541 = vmatprep.subr.bf16.mxu0 %v1510
    %1542 = vmatpush1.bf16.xpose.msra.mxu0 %v1509
    %1543 = vmatprep.subr.bf16.mxu0 %v1512
    %1544 = vmatpush1.bf16.xpose.msra.mxu0 %v1511
    %1545 = vmatprep.subr.bf16.mxu0 %v1514
    %1546 = vmatpush1.bf16.xpose.msra.mxu0 %v1513
    %1547 = vmatprep.subr.bf16.mxu0 %v1516
    %1548 = vmatpush1.bf16.xpose.msra.mxu0 %v1515
    %1549 = vmatprep.subr.bf16.mxu0 %v1518
    %1550 = vmatpush1.bf16.xpose.msra.mxu0 %v1517
    %1551 = vmatprep.subr.bf16.mxu0 %v1520
    %1552 = vmatpush1.bf16.xpose.msra.mxu0 %v1519
    %1553 = vmatprep.subr.bf16.mxu0 %v1522
    %1554 = vmatpush1.bf16.xpose.msra.mxu0 %v1521
    %1555 = vmatprep.subr.bf16.mxu0 %v1524
    %1556 = vmatpush1.bf16.xpose.msra.mxu0 %v1523
    %1557 = vmatprep.subr.bf16.mxu0 0
    %1558 = vmatpush1.bf16.xpose.msra.mxu0 0
    %1559 = vmatprep.subr.bf16.mxu0 0
    %1560 = vmatpush1.bf16.xpose.msra.mxu0 0
    %1561 = vmatprep.subr.bf16.mxu0 0
    %1562 = vmatpush1.bf16.xpose.msra.mxu0 0
    %1563 = vmatprep.subr.bf16.mxu0 0
    %1564 = vmatpush1.bf16.xpose.msra.mxu0 0
    %1565 = vmatprep.subr.bf16.mxu0 0
    %1566 = vmatpush1.bf16.xpose.msra.mxu0 0
    %1567 = vmatprep.subr.bf16.mxu0 0
    %1568 = vmatpush1.bf16.xpose.msra.mxu0 0
    %1569 = vmatprep.subr.bf16.mxu0 0
    %1570 = vmatpush1.bf16.xpose.msra.mxu0 0
    %1571 = vmatprep.subr.bf16.mxu0 0
    %1572 = vmatpush1.bf16.xpose.msra.mxu0 0
    %1573 = vmatprep.mubr.bf16.mxu0 %v1460
    %1574 = vmatmul.mubr.bf16.gmra.mrb[0].mxu0 %v1459
    %v1575 = vpop.f32.mrb[0].mxu0
    %v1576 = vadd.f32 0.0, %v1575
    %v1577 = vpop.f32.mrb[0].mxu0
    %v1578 = vpop.f32.mrb[0].mxu0
    %v1579 = vpop.f32.mrb[0].mxu0
    %1580 = vdwg.mxu0
    %v1581 = vadd.f32 %v1392, %v1576
    %s1582 = sld [smem:[#allocation2 + $0x8]]
    %v1583 = vstv %s1582
    %v1584 = vmul.f32 %v63, %v1583
    %s1585 = sld [smem:[#allocation2 + $0x88]]
    %v1586 = vstv %s1585
    %v1587 = vmul.f32 %v64, %v1586
    %v1588 = vadd.f32 %v1584, %v1587
    %s1589 = sld [smem:[#allocation2 + $0x108]]
    %v1590 = vstv %s1589
    %v1591 = vmul.f32 %v65, %v1590
    %v1592 = vadd.f32 %v1588, %v1591
    %s1593 = sld [smem:[#allocation2 + $0x188]]
    %v1594 = vstv %s1593
    %v1595 = vmul.f32 %v66, %v1594
    %v1596 = vadd.f32 %v1592, %v1595
    %s1597 = sld [smem:[#allocation2 + $0x208]]
    %v1598 = vstv %s1597
    %v1599 = vmul.f32 %v67, %v1598
    %v1600 = vadd.f32 %v1596, %v1599
    %s1601 = sld [smem:[#allocation2 + $0x288]]
    %v1602 = vstv %s1601
    %v1603 = vmul.f32 %v68, %v1602
    %v1604 = vadd.f32 %v1600, %v1603
    %s1605 = sld [smem:[#allocation2 + $0x308]]
    %v1606 = vstv %s1605
    %v1607 = vmul.f32 %v69, %v1606
    %v1608 = vadd.f32 %v1604, %v1607
    %s1609 = sld [smem:[#allocation2 + $0x388]]
    %v1610 = vstv %s1609
    %v1611 = vmul.f32 %v70, %v1610
    %v1612 = vadd.f32 %v1608, %v1611
    %s1613 = sld [smem:[#allocation2 + $0x408]]
    %v1614 = vstv %s1613
    %v1615 = vmul.f32 %v71, %v1614
    %v1616 = vadd.f32 %v1612, %v1615
    %s1617 = sld [smem:[#allocation6 + $0x8]]
    %v1618 = vstv %s1617
    %v1619 = vadd.f32 %v1616, %v1618
    %v1620 = vmax.f32 %v1619, 0.0
    %v1621 = vld [vmem:[#allocation8 + $0x40] sm:$0xff]
    %v1622 = vld [vmem:[#allocation8 + $0xc0] sm:$0xff]
    %v1623 = vld [vmem:[#allocation8 + $0x140] sm:$0xff]
    %v1624 = vld [vmem:[#allocation8 + $0x1c0] sm:$0xff]
    %v1625 = vld [vmem:[#allocation8 + $0x240] sm:$0xff]
    %v1626 = vld [vmem:[#allocation8 + $0x2c0] sm:$0xff]
    %v1627 = vld [vmem:[#allocation8 + $0x340] sm:$0xff]
    %v1628 = vld [vmem:[#allocation8 + $0x3c0] sm:$0xff]
    %v1629 = vld [vmem:[#allocation8 + $0x440] sm:$0xff]
    %v1630 = vld [vmem:[#allocation8 + $0x4c0] sm:$0xff]
    %v1631 = vld [vmem:[#allocation8 + $0x540] sm:$0xff]
    %v1632 = vld [vmem:[#allocation8 + $0x5c0] sm:$0xff]
    %v1633 = vld [vmem:[#allocation8 + $0x640] sm:$0xff]
    %v1634 = vld [vmem:[#allocation8 + $0x6c0] sm:$0xff]
    %v1635 = vld [vmem:[#allocation8 + $0x740] sm:$0xff]
    %v1636 = vld [vmem:[#allocation8 + $0x7c0] sm:$0xff]
    %v1639 = vunpack.c.l.s4 1983009808
    %v1640 = vunpack.c.0.s8 %v1639
    %v1641 = vlaneseq
    %v1642 = vshrl.u32 %v1641, 7
    %v1643 = vsub.s32 %v1640, %v1642
    %v1644 = vrot.slane %v1620, %v1643
    %v1645 = vcombine.high %v1644, %v1644
    %v1648 = vpack.c.bf16 %v1644, %v1644
    %v1649 = vpack.c.bf16 %v1645, %v1645
    %v1666 = vunpack.c.l.b16 %v1621
    %v1667 = vunpack.c.h.b16 %v1621
    %v1668 = vunpack.c.l.b16 %v1622
    %v1669 = vunpack.c.h.b16 %v1622
    %v1670 = vunpack.c.l.b16 %v1623
    %v1671 = vunpack.c.h.b16 %v1623
    %v1672 = vunpack.c.l.b16 %v1624
    %v1673 = vunpack.c.h.b16 %v1624
    %v1674 = vunpack.c.l.b16 %v1625
    %v1675 = vunpack.c.h.b16 %v1625
    %v1676 = vunpack.c.l.b16 %v1626
    %v1677 = vunpack.c.h.b16 %v1626
    %v1678 = vunpack.c.l.b16 %v1627
    %v1679 = vunpack.c.h.b16 %v1627
    %v1680 = vunpack.c.l.b16 %v1628
    %v1681 = vunpack.c.h.b16 %v1628
    %v1682 = vunpack.c.l.b16 %v1629
    %v1683 = vunpack.c.h.b16 %v1629
    %v1684 = vunpack.c.l.b16 %v1630
    %v1685 = vunpack.c.h.b16 %v1630
    %v1686 = vunpack.c.l.b16 %v1631
    %v1687 = vunpack.c.h.b16 %v1631
    %v1688 = vunpack.c.l.b16 %v1632
    %v1689 = vunpack.c.h.b16 %v1632
    %v1690 = vunpack.c.l.b16 %v1633
    %v1691 = vunpack.c.h.b16 %v1633
    %v1692 = vunpack.c.l.b16 %v1634
    %v1693 = vunpack.c.h.b16 %v1634
    %v1694 = vunpack.c.l.b16 %v1635
    %v1695 = vunpack.c.h.b16 %v1635
    %v1696 = vunpack.c.l.b16 %v1636
    %v1697 = vunpack.c.h.b16 %v1636
    %v1698 = vpack.c.b16 %v1668, %v1666
    %v1699 = vpack.c.b16 %v1669, %v1667
    %v1700 = vpack.c.b16 %v1672, %v1670
    %v1701 = vpack.c.b16 %v1673, %v1671
    %v1702 = vpack.c.b16 %v1676, %v1674
    %v1703 = vpack.c.b16 %v1677, %v1675
    %v1704 = vpack.c.b16 %v1680, %v1678
    %v1705 = vpack.c.b16 %v1681, %v1679
    %v1706 = vpack.c.b16 %v1684, %v1682
    %v1707 = vpack.c.b16 %v1685, %v1683
    %v1708 = vpack.c.b16 %v1688, %v1686
    %v1709 = vpack.c.b16 %v1689, %v1687
    %v1710 = vpack.c.b16 %v1692, %v1690
    %v1711 = vpack.c.b16 %v1693, %v1691
    %v1712 = vpack.c.b16 %v1696, %v1694
    %v1713 = vpack.c.b16 %v1697, %v1695
    %1730 = vmatprep.subr.bf16.mxu0 %v1699
    %1731 = vmatpush1.bf16.xpose.msra.mxu0 %v1698
    %1732 = vmatprep.subr.bf16.mxu0 %v1701
    %1733 = vmatpush1.bf16.xpose.msra.mxu0 %v1700
    %1734 = vmatprep.subr.bf16.mxu0 %v1703
    %1735 = vmatpush1.bf16.xpose.msra.mxu0 %v1702
    %1736 = vmatprep.subr.bf16.mxu0 %v1705
    %1737 = vmatpush1.bf16.xpose.msra.mxu0 %v1704
    %1738 = vmatprep.subr.bf16.mxu0 %v1707
    %1739 = vmatpush1.bf16.xpose.msra.mxu0 %v1706
    %1740 = vmatprep.subr.bf16.mxu0 %v1709
    %1741 = vmatpush1.bf16.xpose.msra.mxu0 %v1708
    %1742 = vmatprep.subr.bf16.mxu0 %v1711
    %1743 = vmatpush1.bf16.xpose.msra.mxu0 %v1710
    %1744 = vmatprep.subr.bf16.mxu0 %v1713
    %1745 = vmatpush1.bf16.xpose.msra.mxu0 %v1712
    %1746 = vmatprep.subr.bf16.mxu0 0
    %1747 = vmatpush1.bf16.xpose.msra.mxu0 0
    %1748 = vmatprep.subr.bf16.mxu0 0
    %1749 = vmatpush1.bf16.xpose.msra.mxu0 0
    %1750 = vmatprep.subr.bf16.mxu0 0
    %1751 = vmatpush1.bf16.xpose.msra.mxu0 0
    %1752 = vmatprep.subr.bf16.mxu0 0
    %1753 = vmatpush1.bf16.xpose.msra.mxu0 0
    %1754 = vmatprep.subr.bf16.mxu0 0
    %1755 = vmatpush1.bf16.xpose.msra.mxu0 0
    %1756 = vmatprep.subr.bf16.mxu0 0
    %1757 = vmatpush1.bf16.xpose.msra.mxu0 0
    %1758 = vmatprep.subr.bf16.mxu0 0
    %1759 = vmatpush1.bf16.xpose.msra.mxu0 0
    %1760 = vmatprep.subr.bf16.mxu0 0
    %1761 = vmatpush1.bf16.xpose.msra.mxu0 0
    %1762 = vmatprep.mubr.bf16.mxu0 %v1649
    %1763 = vmatmul.mubr.bf16.gmra.mrb[0].mxu0 %v1648
    %v1764 = vpop.f32.mrb[0].mxu0
    %v1765 = vadd.f32 0.0, %v1764
    %v1766 = vpop.f32.mrb[0].mxu0
    %v1767 = vpop.f32.mrb[0].mxu0
    %v1768 = vpop.f32.mrb[0].mxu0
    %1769 = vdwg.mxu0
    %v1770 = vadd.f32 %v1581, %v1765
    %s1771 = sld [smem:[#allocation2 + $0x9]]
    %v1772 = vstv %s1771
    %v1773 = vmul.f32 %v63, %v1772
    %s1774 = sld [smem:[#allocation2 + $0x89]]
    %v1775 = vstv %s1774
    %v1776 = vmul.f32 %v64, %v1775
    %v1777 = vadd.f32 %v1773, %v1776
    %s1778 = sld [smem:[#allocation2 + $0x109]]
    %v1779 = vstv %s1778
    %v1780 = vmul.f32 %v65, %v1779
    %v1781 = vadd.f32 %v1777, %v1780
    %s1782 = sld [smem:[#allocation2 + $0x189]]
    %v1783 = vstv %s1782
    %v1784 = vmul.f32 %v66, %v1783
    %v1785 = vadd.f32 %v1781, %v1784
    %s1786 = sld [smem:[#allocation2 + $0x209]]
    %v1787 = vstv %s1786
    %v1788 = vmul.f32 %v67, %v1787
    %v1789 = vadd.f32 %v1785, %v1788
    %s1790 = sld [smem:[#allocation2 + $0x289]]
    %v1791 = vstv %s1790
    %v1792 = vmul.f32 %v68, %v1791
    %v1793 = vadd.f32 %v1789, %v1792
    %s1794 = sld [smem:[#allocation2 + $0x309]]
    %v1795 = vstv %s1794
    %v1796 = vmul.f32 %v69, %v1795
    %v1797 = vadd.f32 %v1793, %v1796
    %s1798 = sld [smem:[#allocation2 + $0x389]]
    %v1799 = vstv %s1798
    %v1800 = vmul.f32 %v70, %v1799
    %v1801 = vadd.f32 %v1797, %v1800
    %s1802 = sld [smem:[#allocation2 + $0x409]]
    %v1803 = vstv %s1802
    %v1804 = vmul.f32 %v71, %v1803
    %v1805 = vadd.f32 %v1801, %v1804
    %s1806 = sld [smem:[#allocation6 + $0x9]]
    %v1807 = vstv %s1806
    %v1808 = vadd.f32 %v1805, %v1807
    %v1809 = vmax.f32 %v1808, 0.0
    %v1810 = vld [vmem:[#allocation8 + $0x48] sm:$0xff]
    %v1811 = vld [vmem:[#allocation8 + $0xc8] sm:$0xff]
    %v1812 = vld [vmem:[#allocation8 + $0x148] sm:$0xff]
    %v1813 = vld [vmem:[#allocation8 + $0x1c8] sm:$0xff]
    %v1814 = vld [vmem:[#allocation8 + $0x248] sm:$0xff]
    %v1815 = vld [vmem:[#allocation8 + $0x2c8] sm:$0xff]
    %v1816 = vld [vmem:[#allocation8 + $0x348] sm:$0xff]
    %v1817 = vld [vmem:[#allocation8 + $0x3c8] sm:$0xff]
    %v1818 = vld [vmem:[#allocation8 + $0x448] sm:$0xff]
    %v1819 = vld [vmem:[#allocation8 + $0x4c8] sm:$0xff]
    %v1820 = vld [vmem:[#allocation8 + $0x548] sm:$0xff]
    %v1821 = vld [vmem:[#allocation8 + $0x5c8] sm:$0xff]
    %v1822 = vld [vmem:[#allocation8 + $0x648] sm:$0xff]
    %v1823 = vld [vmem:[#allocation8 + $0x6c8] sm:$0xff]
    %v1824 = vld [vmem:[#allocation8 + $0x748] sm:$0xff]
    %v1825 = vld [vmem:[#allocation8 + $0x7c8] sm:$0xff]
    %v1828 = vunpack.c.l.s4 1983009808
    %v1829 = vunpack.c.0.s8 %v1828
    %v1830 = vlaneseq
    %v1831 = vshrl.u32 %v1830, 7
    %v1832 = vsub.s32 %v1829, %v1831
    %v1833 = vrot.slane %v1809, %v1832
    %v1834 = vcombine.high %v1833, %v1833
    %v1837 = vpack.c.bf16 %v1833, %v1833
    %v1838 = vpack.c.bf16 %v1834, %v1834
    %v1855 = vunpack.c.l.b16 %v1810
    %v1856 = vunpack.c.h.b16 %v1810
    %v1857 = vunpack.c.l.b16 %v1811
    %v1858 = vunpack.c.h.b16 %v1811
    %v1859 = vunpack.c.l.b16 %v1812
    %v1860 = vunpack.c.h.b16 %v1812
    %v1861 = vunpack.c.l.b16 %v1813
    %v1862 = vunpack.c.h.b16 %v1813
    %v1863 = vunpack.c.l.b16 %v1814
    %v1864 = vunpack.c.h.b16 %v1814
    %v1865 = vunpack.c.l.b16 %v1815
    %v1866 = vunpack.c.h.b16 %v1815
    %v1867 = vunpack.c.l.b16 %v1816
    %v1868 = vunpack.c.h.b16 %v1816
    %v1869 = vunpack.c.l.b16 %v1817
    %v1870 = vunpack.c.h.b16 %v1817
    %v1871 = vunpack.c.l.b16 %v1818
    %v1872 = vunpack.c.h.b16 %v1818
    %v1873 = vunpack.c.l.b16 %v1819
    %v1874 = vunpack.c.h.b16 %v1819
    %v1875 = vunpack.c.l.b16 %v1820
    %v1876 = vunpack.c.h.b16 %v1820
    %v1877 = vunpack.c.l.b16 %v1821
    %v1878 = vunpack.c.h.b16 %v1821
    %v1879 = vunpack.c.l.b16 %v1822
    %v1880 = vunpack.c.h.b16 %v1822
    %v1881 = vunpack.c.l.b16 %v1823
    %v1882 = vunpack.c.h.b16 %v1823
    %v1883 = vunpack.c.l.b16 %v1824
    %v1884 = vunpack.c.h.b16 %v1824
    %v1885 = vunpack.c.l.b16 %v1825
    %v1886 = vunpack.c.h.b16 %v1825
    %v1887 = vpack.c.b16 %v1857, %v1855
    %v1888 = vpack.c.b16 %v1858, %v1856
    %v1889 = vpack.c.b16 %v1861, %v1859
    %v1890 = vpack.c.b16 %v1862, %v1860
    %v1891 = vpack.c.b16 %v1865, %v1863
    %v1892 = vpack.c.b16 %v1866, %v1864
    %v1893 = vpack.c.b16 %v1869, %v1867
    %v1894 = vpack.c.b16 %v1870, %v1868
    %v1895 = vpack.c.b16 %v1873, %v1871
    %v1896 = vpack.c.b16 %v1874, %v1872
    %v1897 = vpack.c.b16 %v1877, %v1875
    %v1898 = vpack.c.b16 %v1878, %v1876
    %v1899 = vpack.c.b16 %v1881, %v1879
    %v1900 = vpack.c.b16 %v1882, %v1880
    %v1901 = vpack.c.b16 %v1885, %v1883
    %v1902 = vpack.c.b16 %v1886, %v1884
    %1919 = vmatprep.subr.bf16.mxu0 %v1888
    %1920 = vmatpush1.bf16.xpose.msra.mxu0 %v1887
    %1921 = vmatprep.subr.bf16.mxu0 %v1890
    %1922 = vmatpush1.bf16.xpose.msra.mxu0 %v1889
    %1923 = vmatprep.subr.bf16.mxu0 %v1892
    %1924 = vmatpush1.bf16.xpose.msra.mxu0 %v1891
    %1925 = vmatprep.subr.bf16.mxu0 %v1894
    %1926 = vmatpush1.bf16.xpose.msra.mxu0 %v1893
    %1927 = vmatprep.subr.bf16.mxu0 %v1896
    %1928 = vmatpush1.bf16.xpose.msra.mxu0 %v1895
    %1929 = vmatprep.subr.bf16.mxu0 %v1898
    %1930 = vmatpush1.bf16.xpose.msra.mxu0 %v1897
    %1931 = vmatprep.subr.bf16.mxu0 %v1900
    %1932 = vmatpush1.bf16.xpose.msra.mxu0 %v1899
    %1933 = vmatprep.subr.bf16.mxu0 %v1902
    %1934 = vmatpush1.bf16.xpose.msra.mxu0 %v1901
    %1935 = vmatprep.subr.bf16.mxu0 0
    %1936 = vmatpush1.bf16.xpose.msra.mxu0 0
    %1937 = vmatprep.subr.bf16.mxu0 0
    %1938 = vmatpush1.bf16.xpose.msra.mxu0 0
    %1939 = vmatprep.subr.bf16.mxu0 0
    %1940 = vmatpush1.bf16.xpose.msra.mxu0 0
    %1941 = vmatprep.subr.bf16.mxu0 0
    %1942 = vmatpush1.bf16.xpose.msra.mxu0 0
    %1943 = vmatprep.subr.bf16.mxu0 0
    %1944 = vmatpush1.bf16.xpose.msra.mxu0 0
    %1945 = vmatprep.subr.bf16.mxu0 0
    %1946 = vmatpush1.bf16.xpose.msra.mxu0 0
    %1947 = vmatprep.subr.bf16.mxu0 0
    %1948 = vmatpush1.bf16.xpose.msra.mxu0 0
    %1949 = vmatprep.subr.bf16.mxu0 0
    %1950 = vmatpush1.bf16.xpose.msra.mxu0 0
    %1951 = vmatprep.mubr.bf16.mxu0 %v1838
    %1952 = vmatmul.mubr.bf16.gmra.mrb[0].mxu0 %v1837
    %v1953 = vpop.f32.mrb[0].mxu0
    %v1954 = vadd.f32 0.0, %v1953
    %v1955 = vpop.f32.mrb[0].mxu0
    %v1956 = vpop.f32.mrb[0].mxu0
    %v1957 = vpop.f32.mrb[0].mxu0
    %1958 = vdwg.mxu0
    %v1959 = vadd.f32 %v1770, %v1954
    %s1960 = sld [smem:[#allocation2 + $0xa]]
    %v1961 = vstv %s1960
    %v1962 = vmul.f32 %v63, %v1961
    %s1963 = sld [smem:[#allocation2 + $0x8a]]
    %v1964 = vstv %s1963
    %v1965 = vmul.f32 %v64, %v1964
    %v1966 = vadd.f32 %v1962, %v1965
    %s1967 = sld [smem:[#allocation2 + $0x10a]]
    %v1968 = vstv %s1967
    %v1969 = vmul.f32 %v65, %v1968
    %v1970 = vadd.f32 %v1966, %v1969
    %s1971 = sld [smem:[#allocation2 + $0x18a]]
    %v1972 = vstv %s1971
    %v1973 = vmul.f32 %v66, %v1972
    %v1974 = vadd.f32 %v1970, %v1973
    %s1975 = sld [smem:[#allocation2 + $0x20a]]
    %v1976 = vstv %s1975
    %v1977 = vmul.f32 %v67, %v1976
    %v1978 = vadd.f32 %v1974, %v1977
    %s1979 = sld [smem:[#allocation2 + $0x28a]]
    %v1980 = vstv %s1979
    %v1981 = vmul.f32 %v68, %v1980
    %v1982 = vadd.f32 %v1978, %v1981
    %s1983 = sld [smem:[#allocation2 + $0x30a]]
    %v1984 = vstv %s1983
    %v1985 = vmul.f32 %v69, %v1984
    %v1986 = vadd.f32 %v1982, %v1985
    %s1987 = sld [smem:[#allocation2 + $0x38a]]
    %v1988 = vstv %s1987
    %v1989 = vmul.f32 %v70, %v1988
    %v1990 = vadd.f32 %v1986, %v1989
    %s1991 = sld [smem:[#allocation2 + $0x40a]]
    %v1992 = vstv %s1991
    %v1993 = vmul.f32 %v71, %v1992
    %v1994 = vadd.f32 %v1990, %v1993
    %s1995 = sld [smem:[#allocation6 + $0xa]]
    %v1996 = vstv %s1995
    %v1997 = vadd.f32 %v1994, %v1996
    %v1998 = vmax.f32 %v1997, 0.0
    %v1999 = vld [vmem:[#allocation8 + $0x50] sm:$0xff]
    %v2000 = vld [vmem:[#allocation8 + $0xd0] sm:$0xff]
    %v2001 = vld [vmem:[#allocation8 + $0x150] sm:$0xff]
    %v2002 = vld [vmem:[#allocation8 + $0x1d0] sm:$0xff]
    %v2003 = vld [vmem:[#allocation8 + $0x250] sm:$0xff]
    %v2004 = vld [vmem:[#allocation8 + $0x2d0] sm:$0xff]
    %v2005 = vld [vmem:[#allocation8 + $0x350] sm:$0xff]
    %v2006 = vld [vmem:[#allocation8 + $0x3d0] sm:$0xff]
    %v2007 = vld [vmem:[#allocation8 + $0x450] sm:$0xff]
    %v2008 = vld [vmem:[#allocation8 + $0x4d0] sm:$0xff]
    %v2009 = vld [vmem:[#allocation8 + $0x550] sm:$0xff]
    %v2010 = vld [vmem:[#allocation8 + $0x5d0] sm:$0xff]
    %v2011 = vld [vmem:[#allocation8 + $0x650] sm:$0xff]
    %v2012 = vld [vmem:[#allocation8 + $0x6d0] sm:$0xff]
    %v2013 = vld [vmem:[#allocation8 + $0x750] sm:$0xff]
    %v2014 = vld [vmem:[#allocation8 + $0x7d0] sm:$0xff]
    %v2017 = vunpack.c.l.s4 1983009808
    %v2018 = vunpack.c.0.s8 %v2017
    %v2019 = vlaneseq
    %v2020 = vshrl.u32 %v2019, 7
    %v2021 = vsub.s32 %v2018, %v2020
    %v2022 = vrot.slane %v1998, %v2021
    %v2023 = vcombine.high %v2022, %v2022
    %v2026 = vpack.c.bf16 %v2022, %v2022
    %v2027 = vpack.c.bf16 %v2023, %v2023
    %v2044 = vunpack.c.l.b16 %v1999
    %v2045 = vunpack.c.h.b16 %v1999
    %v2046 = vunpack.c.l.b16 %v2000
    %v2047 = vunpack.c.h.b16 %v2000
    %v2048 = vunpack.c.l.b16 %v2001
    %v2049 = vunpack.c.h.b16 %v2001
    %v2050 = vunpack.c.l.b16 %v2002
    %v2051 = vunpack.c.h.b16 %v2002
    %v2052 = vunpack.c.l.b16 %v2003
    %v2053 = vunpack.c.h.b16 %v2003
    %v2054 = vunpack.c.l.b16 %v2004
    %v2055 = vunpack.c.h.b16 %v2004
    %v2056 = vunpack.c.l.b16 %v2005
    %v2057 = vunpack.c.h.b16 %v2005
    %v2058 = vunpack.c.l.b16 %v2006
    %v2059 = vunpack.c.h.b16 %v2006
    %v2060 = vunpack.c.l.b16 %v2007
    %v2061 = vunpack.c.h.b16 %v2007
    %v2062 = vunpack.c.l.b16 %v2008
    %v2063 = vunpack.c.h.b16 %v2008
    %v2064 = vunpack.c.l.b16 %v2009
    %v2065 = vunpack.c.h.b16 %v2009
    %v2066 = vunpack.c.l.b16 %v2010
    %v2067 = vunpack.c.h.b16 %v2010
    %v2068 = vunpack.c.l.b16 %v2011
    %v2069 = vunpack.c.h.b16 %v2011
    %v2070 = vunpack.c.l.b16 %v2012
    %v2071 = vunpack.c.h.b16 %v2012
    %v2072 = vunpack.c.l.b16 %v2013
    %v2073 = vunpack.c.h.b16 %v2013
    %v2074 = vunpack.c.l.b16 %v2014
    %v2075 = vunpack.c.h.b16 %v2014
    %v2076 = vpack.c.b16 %v2046, %v2044
    %v2077 = vpack.c.b16 %v2047, %v2045
    %v2078 = vpack.c.b16 %v2050, %v2048
    %v2079 = vpack.c.b16 %v2051, %v2049
    %v2080 = vpack.c.b16 %v2054, %v2052
    %v2081 = vpack.c.b16 %v2055, %v2053
    %v2082 = vpack.c.b16 %v2058, %v2056
    %v2083 = vpack.c.b16 %v2059, %v2057
    %v2084 = vpack.c.b16 %v2062, %v2060
    %v2085 = vpack.c.b16 %v2063, %v2061
    %v2086 = vpack.c.b16 %v2066, %v2064
    %v2087 = vpack.c.b16 %v2067, %v2065
    %v2088 = vpack.c.b16 %v2070, %v2068
    %v2089 = vpack.c.b16 %v2071, %v2069
    %v2090 = vpack.c.b16 %v2074, %v2072
    %v2091 = vpack.c.b16 %v2075, %v2073
    %2108 = vmatprep.subr.bf16.mxu0 %v2077
    %2109 = vmatpush1.bf16.xpose.msra.mxu0 %v2076
    %2110 = vmatprep.subr.bf16.mxu0 %v2079
    %2111 = vmatpush1.bf16.xpose.msra.mxu0 %v2078
    %2112 = vmatprep.subr.bf16.mxu0 %v2081
    %2113 = vmatpush1.bf16.xpose.msra.mxu0 %v2080
    %2114 = vmatprep.subr.bf16.mxu0 %v2083
    %2115 = vmatpush1.bf16.xpose.msra.mxu0 %v2082
    %2116 = vmatprep.subr.bf16.mxu0 %v2085
    %2117 = vmatpush1.bf16.xpose.msra.mxu0 %v2084
    %2118 = vmatprep.subr.bf16.mxu0 %v2087
    %2119 = vmatpush1.bf16.xpose.msra.mxu0 %v2086
    %2120 = vmatprep.subr.bf16.mxu0 %v2089
    %2121 = vmatpush1.bf16.xpose.msra.mxu0 %v2088
    %2122 = vmatprep.subr.bf16.mxu0 %v2091
    %2123 = vmatpush1.bf16.xpose.msra.mxu0 %v2090
    %2124 = vmatprep.subr.bf16.mxu0 0
    %2125 = vmatpush1.bf16.xpose.msra.mxu0 0
    %2126 = vmatprep.subr.bf16.mxu0 0
    %2127 = vmatpush1.bf16.xpose.msra.mxu0 0
    %2128 = vmatprep.subr.bf16.mxu0 0
    %2129 = vmatpush1.bf16.xpose.msra.mxu0 0
    %2130 = vmatprep.subr.bf16.mxu0 0
    %2131 = vmatpush1.bf16.xpose.msra.mxu0 0
    %2132 = vmatprep.subr.bf16.mxu0 0
    %2133 = vmatpush1.bf16.xpose.msra.mxu0 0
    %2134 = vmatprep.subr.bf16.mxu0 0
    %2135 = vmatpush1.bf16.xpose.msra.mxu0 0
    %2136 = vmatprep.subr.bf16.mxu0 0
    %2137 = vmatpush1.bf16.xpose.msra.mxu0 0
    %2138 = vmatprep.subr.bf16.mxu0 0
    %2139 = vmatpush1.bf16.xpose.msra.mxu0 0
    %2140 = vmatprep.mubr.bf16.mxu0 %v2027
    %2141 = vmatmul.mubr.bf16.gmra.mrb[0].mxu0 %v2026
    %v2142 = vpop.f32.mrb[0].mxu0
    %v2143 = vadd.f32 0.0, %v2142
    %v2144 = vpop.f32.mrb[0].mxu0
    %v2145 = vpop.f32.mrb[0].mxu0
    %v2146 = vpop.f32.mrb[0].mxu0
    %2147 = vdwg.mxu0
    %v2148 = vadd.f32 %v1959, %v2143
    %s2149 = sld [smem:[#allocation2 + $0xb]]
    %v2150 = vstv %s2149
    %v2151 = vmul.f32 %v63, %v2150
    %s2152 = sld [smem:[#allocation2 + $0x8b]]
    %v2153 = vstv %s2152
    %v2154 = vmul.f32 %v64, %v2153
    %v2155 = vadd.f32 %v2151, %v2154
    %s2156 = sld [smem:[#allocation2 + $0x10b]]
    %v2157 = vstv %s2156
    %v2158 = vmul.f32 %v65, %v2157
    %v2159 = vadd.f32 %v2155, %v2158
    %s2160 = sld [smem:[#allocation2 + $0x18b]]
    %v2161 = vstv %s2160
    %v2162 = vmul.f32 %v66, %v2161
    %v2163 = vadd.f32 %v2159, %v2162
    %s2164 = sld [smem:[#allocation2 + $0x20b]]
    %v2165 = vstv %s2164
    %v2166 = vmul.f32 %v67, %v2165
    %v2167 = vadd.f32 %v2163, %v2166
    %s2168 = sld [smem:[#allocation2 + $0x28b]]
    %v2169 = vstv %s2168
    %v2170 = vmul.f32 %v68, %v2169
    %v2171 = vadd.f32 %v2167, %v2170
    %s2172 = sld [smem:[#allocation2 + $0x30b]]
    %v2173 = vstv %s2172
    %v2174 = vmul.f32 %v69, %v2173
    %v2175 = vadd.f32 %v2171, %v2174
    %s2176 = sld [smem:[#allocation2 + $0x38b]]
    %v2177 = vstv %s2176
    %v2178 = vmul.f32 %v70, %v2177
    %v2179 = vadd.f32 %v2175, %v2178
    %s2180 = sld [smem:[#allocation2 + $0x40b]]
    %v2181 = vstv %s2180
    %v2182 = vmul.f32 %v71, %v2181
    %v2183 = vadd.f32 %v2179, %v2182
    %s2184 = sld [smem:[#allocation6 + $0xb]]
    %v2185 = vstv %s2184
    %v2186 = vadd.f32 %v2183, %v2185
    %v2187 = vmax.f32 %v2186, 0.0
    %v2188 = vld [vmem:[#allocation8 + $0x58] sm:$0xff]
    %v2189 = vld [vmem:[#allocation8 + $0xd8] sm:$0xff]
    %v2190 = vld [vmem:[#allocation8 + $0x158] sm:$0xff]
    %v2191 = vld [vmem:[#allocation8 + $0x1d8] sm:$0xff]
    %v2192 = vld [vmem:[#allocation8 + $0x258] sm:$0xff]
    %v2193 = vld [vmem:[#allocation8 + $0x2d8] sm:$0xff]
    %v2194 = vld [vmem:[#allocation8 + $0x358] sm:$0xff]
    %v2195 = vld [vmem:[#allocation8 + $0x3d8] sm:$0xff]
    %v2196 = vld [vmem:[#allocation8 + $0x458] sm:$0xff]
    %v2197 = vld [vmem:[#allocation8 + $0x4d8] sm:$0xff]
    %v2198 = vld [vmem:[#allocation8 + $0x558] sm:$0xff]
    %v2199 = vld [vmem:[#allocation8 + $0x5d8] sm:$0xff]
    %v2200 = vld [vmem:[#allocation8 + $0x658] sm:$0xff]
    %v2201 = vld [vmem:[#allocation8 + $0x6d8] sm:$0xff]
    %v2202 = vld [vmem:[#allocation8 + $0x758] sm:$0xff]
    %v2203 = vld [vmem:[#allocation8 + $0x7d8] sm:$0xff]
    %v2206 = vunpack.c.l.s4 1983009808
    %v2207 = vunpack.c.0.s8 %v2206
    %v2208 = vlaneseq
    %v2209 = vshrl.u32 %v2208, 7
    %v2210 = vsub.s32 %v2207, %v2209
    %v2211 = vrot.slane %v2187, %v2210
    %v2212 = vcombine.high %v2211, %v2211
    %v2215 = vpack.c.bf16 %v2211, %v2211
    %v2216 = vpack.c.bf16 %v2212, %v2212
    %v2233 = vunpack.c.l.b16 %v2188
    %v2234 = vunpack.c.h.b16 %v2188
    %v2235 = vunpack.c.l.b16 %v2189
    %v2236 = vunpack.c.h.b16 %v2189
    %v2237 = vunpack.c.l.b16 %v2190
    %v2238 = vunpack.c.h.b16 %v2190
    %v2239 = vunpack.c.l.b16 %v2191
    %v2240 = vunpack.c.h.b16 %v2191
    %v2241 = vunpack.c.l.b16 %v2192
    %v2242 = vunpack.c.h.b16 %v2192
    %v2243 = vunpack.c.l.b16 %v2193
    %v2244 = vunpack.c.h.b16 %v2193
    %v2245 = vunpack.c.l.b16 %v2194
    %v2246 = vunpack.c.h.b16 %v2194
    %v2247 = vunpack.c.l.b16 %v2195
    %v2248 = vunpack.c.h.b16 %v2195
    %v2249 = vunpack.c.l.b16 %v2196
    %v2250 = vunpack.c.h.b16 %v2196
    %v2251 = vunpack.c.l.b16 %v2197
    %v2252 = vunpack.c.h.b16 %v2197
    %v2253 = vunpack.c.l.b16 %v2198
    %v2254 = vunpack.c.h.b16 %v2198
    %v2255 = vunpack.c.l.b16 %v2199
    %v2256 = vunpack.c.h.b16 %v2199
    %v2257 = vunpack.c.l.b16 %v2200
    %v2258 = vunpack.c.h.b16 %v2200
    %v2259 = vunpack.c.l.b16 %v2201
    %v2260 = vunpack.c.h.b16 %v2201
    %v2261 = vunpack.c.l.b16 %v2202
    %v2262 = vunpack.c.h.b16 %v2202
    %v2263 = vunpack.c.l.b16 %v2203
    %v2264 = vunpack.c.h.b16 %v2203
    %v2265 = vpack.c.b16 %v2235, %v2233
    %v2266 = vpack.c.b16 %v2236, %v2234
    %v2267 = vpack.c.b16 %v2239, %v2237
    %v2268 = vpack.c.b16 %v2240, %v2238
    %v2269 = vpack.c.b16 %v2243, %v2241
    %v2270 = vpack.c.b16 %v2244, %v2242
    %v2271 = vpack.c.b16 %v2247, %v2245
    %v2272 = vpack.c.b16 %v2248, %v2246
    %v2273 = vpack.c.b16 %v2251, %v2249
    %v2274 = vpack.c.b16 %v2252, %v2250
    %v2275 = vpack.c.b16 %v2255, %v2253
    %v2276 = vpack.c.b16 %v2256, %v2254
    %v2277 = vpack.c.b16 %v2259, %v2257
    %v2278 = vpack.c.b16 %v2260, %v2258
    %v2279 = vpack.c.b16 %v2263, %v2261
    %v2280 = vpack.c.b16 %v2264, %v2262
    %2297 = vmatprep.subr.bf16.mxu0 %v2266
    %2298 = vmatpush1.bf16.xpose.msra.mxu0 %v2265
    %2299 = vmatprep.subr.bf16.mxu0 %v2268
    %2300 = vmatpush1.bf16.xpose.msra.mxu0 %v2267
    %2301 = vmatprep.subr.bf16.mxu0 %v2270
    %2302 = vmatpush1.bf16.xpose.msra.mxu0 %v2269
    %2303 = vmatprep.subr.bf16.mxu0 %v2272
    %2304 = vmatpush1.bf16.xpose.msra.mxu0 %v2271
    %2305 = vmatprep.subr.bf16.mxu0 %v2274
    %2306 = vmatpush1.bf16.xpose.msra.mxu0 %v2273
    %2307 = vmatprep.subr.bf16.mxu0 %v2276
    %2308 = vmatpush1.bf16.xpose.msra.mxu0 %v2275
    %2309 = vmatprep.subr.bf16.mxu0 %v2278
    %2310 = vmatpush1.bf16.xpose.msra.mxu0 %v2277
    %2311 = vmatprep.subr.bf16.mxu0 %v2280
    %2312 = vmatpush1.bf16.xpose.msra.mxu0 %v2279
    %2313 = vmatprep.subr.bf16.mxu0 0
    %2314 = vmatpush1.bf16.xpose.msra.mxu0 0
    %2315 = vmatprep.subr.bf16.mxu0 0
    %2316 = vmatpush1.bf16.xpose.msra.mxu0 0
    %2317 = vmatprep.subr.bf16.mxu0 0
    %2318 = vmatpush1.bf16.xpose.msra.mxu0 0
    %2319 = vmatprep.subr.bf16.mxu0 0
    %2320 = vmatpush1.bf16.xpose.msra.mxu0 0
    %2321 = vmatprep.subr.bf16.mxu0 0
    %2322 = vmatpush1.bf16.xpose.msra.mxu0 0
    %2323 = vmatprep.subr.bf16.mxu0 0
    %2324 = vmatpush1.bf16.xpose.msra.mxu0 0
    %2325 = vmatprep.subr.bf16.mxu0 0
    %2326 = vmatpush1.bf16.xpose.msra.mxu0 0
    %2327 = vmatprep.subr.bf16.mxu0 0
    %2328 = vmatpush1.bf16.xpose.msra.mxu0 0
    %2329 = vmatprep.mubr.bf16.mxu0 %v2216
    %2330 = vmatmul.mubr.bf16.gmra.mrb[0].mxu0 %v2215
    %v2331 = vpop.f32.mrb[0].mxu0
    %v2332 = vadd.f32 0.0, %v2331
    %v2333 = vpop.f32.mrb[0].mxu0
    %v2334 = vpop.f32.mrb[0].mxu0
    %v2335 = vpop.f32.mrb[0].mxu0
    %2336 = vdwg.mxu0
    %v2337 = vadd.f32 %v2148, %v2332
    %s2338 = sld [smem:[#allocation2 + $0xc]]
    %v2339 = vstv %s2338
    %v2340 = vmul.f32 %v63, %v2339
    %s2341 = sld [smem:[#allocation2 + $0x8c]]
    %v2342 = vstv %s2341
    %v2343 = vmul.f32 %v64, %v2342
    %v2344 = vadd.f32 %v2340, %v2343
    %s2345 = sld [smem:[#allocation2 + $0x10c]]
    %v2346 = vstv %s2345
    %v2347 = vmul.f32 %v65, %v2346
    %v2348 = vadd.f32 %v2344, %v2347
    %s2349 = sld [smem:[#allocation2 + $0x18c]]
    %v2350 = vstv %s2349
    %v2351 = vmul.f32 %v66, %v2350
    %v2352 = vadd.f32 %v2348, %v2351
    %s2353 = sld [smem:[#allocation2 + $0x20c]]
    %v2354 = vstv %s2353
    %v2355 = vmul.f32 %v67, %v2354
    %v2356 = vadd.f32 %v2352, %v2355
    %s2357 = sld [smem:[#allocation2 + $0x28c]]
    %v2358 = vstv %s2357
    %v2359 = vmul.f32 %v68, %v2358
    %v2360 = vadd.f32 %v2356, %v2359
    %s2361 = sld [smem:[#allocation2 + $0x30c]]
    %v2362 = vstv %s2361
    %v2363 = vmul.f32 %v69, %v2362
    %v2364 = vadd.f32 %v2360, %v2363
    %s2365 = sld [smem:[#allocation2 + $0x38c]]
    %v2366 = vstv %s2365
    %v2367 = vmul.f32 %v70, %v2366
    %v2368 = vadd.f32 %v2364, %v2367
    %s2369 = sld [smem:[#allocation2 + $0x40c]]
    %v2370 = vstv %s2369
    %v2371 = vmul.f32 %v71, %v2370
    %v2372 = vadd.f32 %v2368, %v2371
    %s2373 = sld [smem:[#allocation6 + $0xc]]
    %v2374 = vstv %s2373
    %v2375 = vadd.f32 %v2372, %v2374
    %v2376 = vmax.f32 %v2375, 0.0
    %v2377 = vld [vmem:[#allocation8 + $0x60] sm:$0xff]
    %v2378 = vld [vmem:[#allocation8 + $0xe0] sm:$0xff]
    %v2379 = vld [vmem:[#allocation8 + $0x160] sm:$0xff]
    %v2380 = vld [vmem:[#allocation8 + $0x1e0] sm:$0xff]
    %v2381 = vld [vmem:[#allocation8 + $0x260] sm:$0xff]
    %v2382 = vld [vmem:[#allocation8 + $0x2e0] sm:$0xff]
    %v2383 = vld [vmem:[#allocation8 + $0x360] sm:$0xff]
    %v2384 = vld [vmem:[#allocation8 + $0x3e0] sm:$0xff]
    %v2385 = vld [vmem:[#allocation8 + $0x460] sm:$0xff]
    %v2386 = vld [vmem:[#allocation8 + $0x4e0] sm:$0xff]
    %v2387 = vld [vmem:[#allocation8 + $0x560] sm:$0xff]
    %v2388 = vld [vmem:[#allocation8 + $0x5e0] sm:$0xff]
    %v2389 = vld [vmem:[#allocation8 + $0x660] sm:$0xff]
    %v2390 = vld [vmem:[#allocation8 + $0x6e0] sm:$0xff]
    %v2391 = vld [vmem:[#allocation8 + $0x760] sm:$0xff]
    %v2392 = vld [vmem:[#allocation8 + $0x7e0] sm:$0xff]
    %v2395 = vunpack.c.l.s4 1983009808
    %v2396 = vunpack.c.0.s8 %v2395
    %v2397 = vlaneseq
    %v2398 = vshrl.u32 %v2397, 7
    %v2399 = vsub.s32 %v2396, %v2398
    %v2400 = vrot.slane %v2376, %v2399
    %v2401 = vcombine.high %v2400, %v2400
    %v2404 = vpack.c.bf16 %v2400, %v2400
    %v2405 = vpack.c.bf16 %v2401, %v2401
    %v2422 = vunpack.c.l.b16 %v2377
    %v2423 = vunpack.c.h.b16 %v2377
    %v2424 = vunpack.c.l.b16 %v2378
    %v2425 = vunpack.c.h.b16 %v2378
    %v2426 = vunpack.c.l.b16 %v2379
    %v2427 = vunpack.c.h.b16 %v2379
    %v2428 = vunpack.c.l.b16 %v2380
    %v2429 = vunpack.c.h.b16 %v2380
    %v2430 = vunpack.c.l.b16 %v2381
    %v2431 = vunpack.c.h.b16 %v2381
    %v2432 = vunpack.c.l.b16 %v2382
    %v2433 = vunpack.c.h.b16 %v2382
    %v2434 = vunpack.c.l.b16 %v2383
    %v2435 = vunpack.c.h.b16 %v2383
    %v2436 = vunpack.c.l.b16 %v2384
    %v2437 = vunpack.c.h.b16 %v2384
    %v2438 = vunpack.c.l.b16 %v2385
    %v2439 = vunpack.c.h.b16 %v2385
    %v2440 = vunpack.c.l.b16 %v2386
    %v2441 = vunpack.c.h.b16 %v2386
    %v2442 = vunpack.c.l.b16 %v2387
    %v2443 = vunpack.c.h.b16 %v2387
    %v2444 = vunpack.c.l.b16 %v2388
    %v2445 = vunpack.c.h.b16 %v2388
    %v2446 = vunpack.c.l.b16 %v2389
    %v2447 = vunpack.c.h.b16 %v2389
    %v2448 = vunpack.c.l.b16 %v2390
    %v2449 = vunpack.c.h.b16 %v2390
    %v2450 = vunpack.c.l.b16 %v2391
    %v2451 = vunpack.c.h.b16 %v2391
    %v2452 = vunpack.c.l.b16 %v2392
    %v2453 = vunpack.c.h.b16 %v2392
    %v2454 = vpack.c.b16 %v2424, %v2422
    %v2455 = vpack.c.b16 %v2425, %v2423
    %v2456 = vpack.c.b16 %v2428, %v2426
    %v2457 = vpack.c.b16 %v2429, %v2427
    %v2458 = vpack.c.b16 %v2432, %v2430
    %v2459 = vpack.c.b16 %v2433, %v2431
    %v2460 = vpack.c.b16 %v2436, %v2434
    %v2461 = vpack.c.b16 %v2437, %v2435
    %v2462 = vpack.c.b16 %v2440, %v2438
    %v2463 = vpack.c.b16 %v2441, %v2439
    %v2464 = vpack.c.b16 %v2444, %v2442
    %v2465 = vpack.c.b16 %v2445, %v2443
    %v2466 = vpack.c.b16 %v2448, %v2446
    %v2467 = vpack.c.b16 %v2449, %v2447
    %v2468 = vpack.c.b16 %v2452, %v2450
    %v2469 = vpack.c.b16 %v2453, %v2451
    %2486 = vmatprep.subr.bf16.mxu0 %v2455
    %2487 = vmatpush1.bf16.xpose.msra.mxu0 %v2454
    %2488 = vmatprep.subr.bf16.mxu0 %v2457
    %2489 = vmatpush1.bf16.xpose.msra.mxu0 %v2456
    %2490 = vmatprep.subr.bf16.mxu0 %v2459
    %2491 = vmatpush1.bf16.xpose.msra.mxu0 %v2458
    %2492 = vmatprep.subr.bf16.mxu0 %v2461
    %2493 = vmatpush1.bf16.xpose.msra.mxu0 %v2460
    %2494 = vmatprep.subr.bf16.mxu0 %v2463
    %2495 = vmatpush1.bf16.xpose.msra.mxu0 %v2462
    %2496 = vmatprep.subr.bf16.mxu0 %v2465
    %2497 = vmatpush1.bf16.xpose.msra.mxu0 %v2464
    %2498 = vmatprep.subr.bf16.mxu0 %v2467
    %2499 = vmatpush1.bf16.xpose.msra.mxu0 %v2466
    %2500 = vmatprep.subr.bf16.mxu0 %v2469
    %2501 = vmatpush1.bf16.xpose.msra.mxu0 %v2468
    %2502 = vmatprep.subr.bf16.mxu0 0
    %2503 = vmatpush1.bf16.xpose.msra.mxu0 0
    %2504 = vmatprep.subr.bf16.mxu0 0
    %2505 = vmatpush1.bf16.xpose.msra.mxu0 0
    %2506 = vmatprep.subr.bf16.mxu0 0
    %2507 = vmatpush1.bf16.xpose.msra.mxu0 0
    %2508 = vmatprep.subr.bf16.mxu0 0
    %2509 = vmatpush1.bf16.xpose.msra.mxu0 0
    %2510 = vmatprep.subr.bf16.mxu0 0
    %2511 = vmatpush1.bf16.xpose.msra.mxu0 0
    %2512 = vmatprep.subr.bf16.mxu0 0
    %2513 = vmatpush1.bf16.xpose.msra.mxu0 0
    %2514 = vmatprep.subr.bf16.mxu0 0
    %2515 = vmatpush1.bf16.xpose.msra.mxu0 0
    %2516 = vmatprep.subr.bf16.mxu0 0
    %2517 = vmatpush1.bf16.xpose.msra.mxu0 0
    %2518 = vmatprep.mubr.bf16.mxu0 %v2405
    %2519 = vmatmul.mubr.bf16.gmra.mrb[0].mxu0 %v2404
    %v2520 = vpop.f32.mrb[0].mxu0
    %v2521 = vadd.f32 0.0, %v2520
    %v2522 = vpop.f32.mrb[0].mxu0
    %v2523 = vpop.f32.mrb[0].mxu0
    %v2524 = vpop.f32.mrb[0].mxu0
    %2525 = vdwg.mxu0
    %v2526 = vadd.f32 %v2337, %v2521
    %s2527 = sld [smem:[#allocation2 + $0xd]]
    %v2528 = vstv %s2527
    %v2529 = vmul.f32 %v63, %v2528
    %s2530 = sld [smem:[#allocation2 + $0x8d]]
    %v2531 = vstv %s2530
    %v2532 = vmul.f32 %v64, %v2531
    %v2533 = vadd.f32 %v2529, %v2532
    %s2534 = sld [smem:[#allocation2 + $0x10d]]
    %v2535 = vstv %s2534
    %v2536 = vmul.f32 %v65, %v2535
    %v2537 = vadd.f32 %v2533, %v2536
    %s2538 = sld [smem:[#allocation2 + $0x18d]]
    %v2539 = vstv %s2538
    %v2540 = vmul.f32 %v66, %v2539
    %v2541 = vadd.f32 %v2537, %v2540
    %s2542 = sld [smem:[#allocation2 + $0x20d]]
    %v2543 = vstv %s2542
    %v2544 = vmul.f32 %v67, %v2543
    %v2545 = vadd.f32 %v2541, %v2544
    %s2546 = sld [smem:[#allocation2 + $0x28d]]
    %v2547 = vstv %s2546
    %v2548 = vmul.f32 %v68, %v2547
    %v2549 = vadd.f32 %v2545, %v2548
    %s2550 = sld [smem:[#allocation2 + $0x30d]]
    %v2551 = vstv %s2550
    %v2552 = vmul.f32 %v69, %v2551
    %v2553 = vadd.f32 %v2549, %v2552
    %s2554 = sld [smem:[#allocation2 + $0x38d]]
    %v2555 = vstv %s2554
    %v2556 = vmul.f32 %v70, %v2555
    %v2557 = vadd.f32 %v2553, %v2556
    %s2558 = sld [smem:[#allocation2 + $0x40d]]
    %v2559 = vstv %s2558
    %v2560 = vmul.f32 %v71, %v2559
    %v2561 = vadd.f32 %v2557, %v2560
    %s2562 = sld [smem:[#allocation6 + $0xd]]
    %v2563 = vstv %s2562
    %v2564 = vadd.f32 %v2561, %v2563
    %v2565 = vmax.f32 %v2564, 0.0
    %v2566 = vld [vmem:[#allocation8 + $0x68] sm:$0xff]
    %v2567 = vld [vmem:[#allocation8 + $0xe8] sm:$0xff]
    %v2568 = vld [vmem:[#allocation8 + $0x168] sm:$0xff]
    %v2569 = vld [vmem:[#allocation8 + $0x1e8] sm:$0xff]
    %v2570 = vld [vmem:[#allocation8 + $0x268] sm:$0xff]
    %v2571 = vld [vmem:[#allocation8 + $0x2e8] sm:$0xff]
    %v2572 = vld [vmem:[#allocation8 + $0x368] sm:$0xff]
    %v2573 = vld [vmem:[#allocation8 + $0x3e8] sm:$0xff]
    %v2574 = vld [vmem:[#allocation8 + $0x468] sm:$0xff]
    %v2575 = vld [vmem:[#allocation8 + $0x4e8] sm:$0xff]
    %v2576 = vld [vmem:[#allocation8 + $0x568] sm:$0xff]
    %v2577 = vld [vmem:[#allocation8 + $0x5e8] sm:$0xff]
    %v2578 = vld [vmem:[#allocation8 + $0x668] sm:$0xff]
    %v2579 = vld [vmem:[#allocation8 + $0x6e8] sm:$0xff]
    %v2580 = vld [vmem:[#allocation8 + $0x768] sm:$0xff]
    %v2581 = vld [vmem:[#allocation8 + $0x7e8] sm:$0xff]
    %v2584 = vunpack.c.l.s4 1983009808
    %v2585 = vunpack.c.0.s8 %v2584
    %v2586 = vlaneseq
    %v2587 = vshrl.u32 %v2586, 7
    %v2588 = vsub.s32 %v2585, %v2587
    %v2589 = vrot.slane %v2565, %v2588
    %v2590 = vcombine.high %v2589, %v2589
    %v2593 = vpack.c.bf16 %v2589, %v2589
    %v2594 = vpack.c.bf16 %v2590, %v2590
    %v2611 = vunpack.c.l.b16 %v2566
    %v2612 = vunpack.c.h.b16 %v2566
    %v2613 = vunpack.c.l.b16 %v2567
    %v2614 = vunpack.c.h.b16 %v2567
    %v2615 = vunpack.c.l.b16 %v2568
    %v2616 = vunpack.c.h.b16 %v2568
    %v2617 = vunpack.c.l.b16 %v2569
    %v2618 = vunpack.c.h.b16 %v2569
    %v2619 = vunpack.c.l.b16 %v2570
    %v2620 = vunpack.c.h.b16 %v2570
    %v2621 = vunpack.c.l.b16 %v2571
    %v2622 = vunpack.c.h.b16 %v2571
    %v2623 = vunpack.c.l.b16 %v2572
    %v2624 = vunpack.c.h.b16 %v2572
    %v2625 = vunpack.c.l.b16 %v2573
    %v2626 = vunpack.c.h.b16 %v2573
    %v2627 = vunpack.c.l.b16 %v2574
    %v2628 = vunpack.c.h.b16 %v2574
    %v2629 = vunpack.c.l.b16 %v2575
    %v2630 = vunpack.c.h.b16 %v2575
    %v2631 = vunpack.c.l.b16 %v2576
    %v2632 = vunpack.c.h.b16 %v2576
    %v2633 = vunpack.c.l.b16 %v2577
    %v2634 = vunpack.c.h.b16 %v2577
    %v2635 = vunpack.c.l.b16 %v2578
    %v2636 = vunpack.c.h.b16 %v2578
    %v2637 = vunpack.c.l.b16 %v2579
    %v2638 = vunpack.c.h.b16 %v2579
    %v2639 = vunpack.c.l.b16 %v2580
    %v2640 = vunpack.c.h.b16 %v2580
    %v2641 = vunpack.c.l.b16 %v2581
    %v2642 = vunpack.c.h.b16 %v2581
    %v2643 = vpack.c.b16 %v2613, %v2611
    %v2644 = vpack.c.b16 %v2614, %v2612
    %v2645 = vpack.c.b16 %v2617, %v2615
    %v2646 = vpack.c.b16 %v2618, %v2616
    %v2647 = vpack.c.b16 %v2621, %v2619
    %v2648 = vpack.c.b16 %v2622, %v2620
    %v2649 = vpack.c.b16 %v2625, %v2623
    %v2650 = vpack.c.b16 %v2626, %v2624
    %v2651 = vpack.c.b16 %v2629, %v2627
    %v2652 = vpack.c.b16 %v2630, %v2628
    %v2653 = vpack.c.b16 %v2633, %v2631
    %v2654 = vpack.c.b16 %v2634, %v2632
    %v2655 = vpack.c.b16 %v2637, %v2635
    %v2656 = vpack.c.b16 %v2638, %v2636
    %v2657 = vpack.c.b16 %v2641, %v2639
    %v2658 = vpack.c.b16 %v2642, %v2640
    %2675 = vmatprep.subr.bf16.mxu0 %v2644
    %2676 = vmatpush1.bf16.xpose.msra.mxu0 %v2643
    %2677 = vmatprep.subr.bf16.mxu0 %v2646
    %2678 = vmatpush1.bf16.xpose.msra.mxu0 %v2645
    %2679 = vmatprep.subr.bf16.mxu0 %v2648
    %2680 = vmatpush1.bf16.xpose.msra.mxu0 %v2647
    %2681 = vmatprep.subr.bf16.mxu0 %v2650
    %2682 = vmatpush1.bf16.xpose.msra.mxu0 %v2649
    %2683 = vmatprep.subr.bf16.mxu0 %v2652
    %2684 = vmatpush1.bf16.xpose.msra.mxu0 %v2651
    %2685 = vmatprep.subr.bf16.mxu0 %v2654
    %2686 = vmatpush1.bf16.xpose.msra.mxu0 %v2653
    %2687 = vmatprep.subr.bf16.mxu0 %v2656
    %2688 = vmatpush1.bf16.xpose.msra.mxu0 %v2655
    %2689 = vmatprep.subr.bf16.mxu0 %v2658
    %2690 = vmatpush1.bf16.xpose.msra.mxu0 %v2657
    %2691 = vmatprep.subr.bf16.mxu0 0
    %2692 = vmatpush1.bf16.xpose.msra.mxu0 0
    %2693 = vmatprep.subr.bf16.mxu0 0
    %2694 = vmatpush1.bf16.xpose.msra.mxu0 0
    %2695 = vmatprep.subr.bf16.mxu0 0
    %2696 = vmatpush1.bf16.xpose.msra.mxu0 0
    %2697 = vmatprep.subr.bf16.mxu0 0
    %2698 = vmatpush1.bf16.xpose.msra.mxu0 0
    %2699 = vmatprep.subr.bf16.mxu0 0
    %2700 = vmatpush1.bf16.xpose.msra.mxu0 0
    %2701 = vmatprep.subr.bf16.mxu0 0
    %2702 = vmatpush1.bf16.xpose.msra.mxu0 0
    %2703 = vmatprep.subr.bf16.mxu0 0
    %2704 = vmatpush1.bf16.xpose.msra.mxu0 0
    %2705 = vmatprep.subr.bf16.mxu0 0
    %2706 = vmatpush1.bf16.xpose.msra.mxu0 0
    %2707 = vmatprep.mubr.bf16.mxu0 %v2594
    %2708 = vmatmul.mubr.bf16.gmra.mrb[0].mxu0 %v2593
    %v2709 = vpop.f32.mrb[0].mxu0
    %v2710 = vadd.f32 0.0, %v2709
    %v2711 = vpop.f32.mrb[0].mxu0
    %v2712 = vpop.f32.mrb[0].mxu0
    %v2713 = vpop.f32.mrb[0].mxu0
    %2714 = vdwg.mxu0
    %v2715 = vadd.f32 %v2526, %v2710
    %s2716 = sld [smem:[#allocation2 + $0xe]]
    %v2717 = vstv %s2716
    %v2718 = vmul.f32 %v63, %v2717
    %s2719 = sld [smem:[#allocation2 + $0x8e]]
    %v2720 = vstv %s2719
    %v2721 = vmul.f32 %v64, %v2720
    %v2722 = vadd.f32 %v2718, %v2721
    %s2723 = sld [smem:[#allocation2 + $0x10e]]
    %v2724 = vstv %s2723
    %v2725 = vmul.f32 %v65, %v2724
    %v2726 = vadd.f32 %v2722, %v2725
    %s2727 = sld [smem:[#allocation2 + $0x18e]]
    %v2728 = vstv %s2727
    %v2729 = vmul.f32 %v66, %v2728
    %v2730 = vadd.f32 %v2726, %v2729
    %s2731 = sld [smem:[#allocation2 + $0x20e]]
    %v2732 = vstv %s2731
    %v2733 = vmul.f32 %v67, %v2732
    %v2734 = vadd.f32 %v2730, %v2733
    %s2735 = sld [smem:[#allocation2 + $0x28e]]
    %v2736 = vstv %s2735
    %v2737 = vmul.f32 %v68, %v2736
    %v2738 = vadd.f32 %v2734, %v2737
    %s2739 = sld [smem:[#allocation2 + $0x30e]]
    %v2740 = vstv %s2739
    %v2741 = vmul.f32 %v69, %v2740
    %v2742 = vadd.f32 %v2738, %v2741
    %s2743 = sld [smem:[#allocation2 + $0x38e]]
    %v2744 = vstv %s2743
    %v2745 = vmul.f32 %v70, %v2744
    %v2746 = vadd.f32 %v2742, %v2745
    %s2747 = sld [smem:[#allocation2 + $0x40e]]
    %v2748 = vstv %s2747
    %v2749 = vmul.f32 %v71, %v2748
    %v2750 = vadd.f32 %v2746, %v2749
    %s2751 = sld [smem:[#allocation6 + $0xe]]
    %v2752 = vstv %s2751
    %v2753 = vadd.f32 %v2750, %v2752
    %v2754 = vmax.f32 %v2753, 0.0
    %v2755 = vld [vmem:[#allocation8 + $0x70] sm:$0xff]
    %v2756 = vld [vmem:[#allocation8 + $0xf0] sm:$0xff]
    %v2757 = vld [vmem:[#allocation8 + $0x170] sm:$0xff]
    %v2758 = vld [vmem:[#allocation8 + $0x1f0] sm:$0xff]
    %v2759 = vld [vmem:[#allocation8 + $0x270] sm:$0xff]
    %v2760 = vld [vmem:[#allocation8 + $0x2f0] sm:$0xff]
    %v2761 = vld [vmem:[#allocation8 + $0x370] sm:$0xff]
    %v2762 = vld [vmem:[#allocation8 + $0x3f0] sm:$0xff]
    %v2763 = vld [vmem:[#allocation8 + $0x470] sm:$0xff]
    %v2764 = vld [vmem:[#allocation8 + $0x4f0] sm:$0xff]
    %v2765 = vld [vmem:[#allocation8 + $0x570] sm:$0xff]
    %v2766 = vld [vmem:[#allocation8 + $0x5f0] sm:$0xff]
    %v2767 = vld [vmem:[#allocation8 + $0x670] sm:$0xff]
    %v2768 = vld [vmem:[#allocation8 + $0x6f0] sm:$0xff]
    %v2769 = vld [vmem:[#allocation8 + $0x770] sm:$0xff]
    %v2770 = vld [vmem:[#allocation8 + $0x7f0] sm:$0xff]
    %v2773 = vunpack.c.l.s4 1983009808
    %v2774 = vunpack.c.0.s8 %v2773
    %v2775 = vlaneseq
    %v2776 = vshrl.u32 %v2775, 7
    %v2777 = vsub.s32 %v2774, %v2776
    %v2778 = vrot.slane %v2754, %v2777
    %v2779 = vcombine.high %v2778, %v2778
    %v2782 = vpack.c.bf16 %v2778, %v2778
    %v2783 = vpack.c.bf16 %v2779, %v2779
    %v2800 = vunpack.c.l.b16 %v2755
    %v2801 = vunpack.c.h.b16 %v2755
    %v2802 = vunpack.c.l.b16 %v2756
    %v2803 = vunpack.c.h.b16 %v2756
    %v2804 = vunpack.c.l.b16 %v2757
    %v2805 = vunpack.c.h.b16 %v2757
    %v2806 = vunpack.c.l.b16 %v2758
    %v2807 = vunpack.c.h.b16 %v2758
    %v2808 = vunpack.c.l.b16 %v2759
    %v2809 = vunpack.c.h.b16 %v2759
    %v2810 = vunpack.c.l.b16 %v2760
    %v2811 = vunpack.c.h.b16 %v2760
    %v2812 = vunpack.c.l.b16 %v2761
    %v2813 = vunpack.c.h.b16 %v2761
    %v2814 = vunpack.c.l.b16 %v2762
    %v2815 = vunpack.c.h.b16 %v2762
    %v2816 = vunpack.c.l.b16 %v2763
    %v2817 = vunpack.c.h.b16 %v2763
    %v2818 = vunpack.c.l.b16 %v2764
    %v2819 = vunpack.c.h.b16 %v2764
    %v2820 = vunpack.c.l.b16 %v2765
    %v2821 = vunpack.c.h.b16 %v2765
    %v2822 = vunpack.c.l.b16 %v2766
    %v2823 = vunpack.c.h.b16 %v2766
    %v2824 = vunpack.c.l.b16 %v2767
    %v2825 = vunpack.c.h.b16 %v2767
    %v2826 = vunpack.c.l.b16 %v2768
    %v2827 = vunpack.c.h.b16 %v2768
    %v2828 = vunpack.c.l.b16 %v2769
    %v2829 = vunpack.c.h.b16 %v2769
    %v2830 = vunpack.c.l.b16 %v2770
    %v2831 = vunpack.c.h.b16 %v2770
    %v2832 = vpack.c.b16 %v2802, %v2800
    %v2833 = vpack.c.b16 %v2803, %v2801
    %v2834 = vpack.c.b16 %v2806, %v2804
    %v2835 = vpack.c.b16 %v2807, %v2805
    %v2836 = vpack.c.b16 %v2810, %v2808
    %v2837 = vpack.c.b16 %v2811, %v2809
    %v2838 = vpack.c.b16 %v2814, %v2812
    %v2839 = vpack.c.b16 %v2815, %v2813
    %v2840 = vpack.c.b16 %v2818, %v2816
    %v2841 = vpack.c.b16 %v2819, %v2817
    %v2842 = vpack.c.b16 %v2822, %v2820
    %v2843 = vpack.c.b16 %v2823, %v2821
    %v2844 = vpack.c.b16 %v2826, %v2824
    %v2845 = vpack.c.b16 %v2827, %v2825
    %v2846 = vpack.c.b16 %v2830, %v2828
    %v2847 = vpack.c.b16 %v2831, %v2829
    %2864 = vmatprep.subr.bf16.mxu0 %v2833
    %2865 = vmatpush1.bf16.xpose.msra.mxu0 %v2832
    %2866 = vmatprep.subr.bf16.mxu0 %v2835
    %2867 = vmatpush1.bf16.xpose.msra.mxu0 %v2834
    %2868 = vmatprep.subr.bf16.mxu0 %v2837
    %2869 = vmatpush1.bf16.xpose.msra.mxu0 %v2836
    %2870 = vmatprep.subr.bf16.mxu0 %v2839
    %2871 = vmatpush1.bf16.xpose.msra.mxu0 %v2838
    %2872 = vmatprep.subr.bf16.mxu0 %v2841
    %2873 = vmatpush1.bf16.xpose.msra.mxu0 %v2840
    %2874 = vmatprep.subr.bf16.mxu0 %v2843
    %2875 = vmatpush1.bf16.xpose.msra.mxu0 %v2842
    %2876 = vmatprep.subr.bf16.mxu0 %v2845
    %2877 = vmatpush1.bf16.xpose.msra.mxu0 %v2844
    %2878 = vmatprep.subr.bf16.mxu0 %v2847
    %2879 = vmatpush1.bf16.xpose.msra.mxu0 %v2846
    %2880 = vmatprep.subr.bf16.mxu0 0
    %2881 = vmatpush1.bf16.xpose.msra.mxu0 0
    %2882 = vmatprep.subr.bf16.mxu0 0
    %2883 = vmatpush1.bf16.xpose.msra.mxu0 0
    %2884 = vmatprep.subr.bf16.mxu0 0
    %2885 = vmatpush1.bf16.xpose.msra.mxu0 0
    %2886 = vmatprep.subr.bf16.mxu0 0
    %2887 = vmatpush1.bf16.xpose.msra.mxu0 0
    %2888 = vmatprep.subr.bf16.mxu0 0
    %2889 = vmatpush1.bf16.xpose.msra.mxu0 0
    %2890 = vmatprep.subr.bf16.mxu0 0
    %2891 = vmatpush1.bf16.xpose.msra.mxu0 0
    %2892 = vmatprep.subr.bf16.mxu0 0
    %2893 = vmatpush1.bf16.xpose.msra.mxu0 0
    %2894 = vmatprep.subr.bf16.mxu0 0
    %2895 = vmatpush1.bf16.xpose.msra.mxu0 0
    %2896 = vmatprep.mubr.bf16.mxu0 %v2783
    %2897 = vmatmul.mubr.bf16.gmra.mrb[0].mxu0 %v2782
    %v2898 = vpop.f32.mrb[0].mxu0
    %v2899 = vadd.f32 0.0, %v2898
    %v2900 = vpop.f32.mrb[0].mxu0
    %v2901 = vpop.f32.mrb[0].mxu0
    %v2902 = vpop.f32.mrb[0].mxu0
    %2903 = vdwg.mxu0
    %v2904 = vadd.f32 %v2715, %v2899
    %s2905 = sld [smem:[#allocation2 + $0xf]]
    %v2906 = vstv %s2905
    %v2907 = vmul.f32 %v63, %v2906
    %s2908 = sld [smem:[#allocation2 + $0x8f]]
    %v2909 = vstv %s2908
    %v2910 = vmul.f32 %v64, %v2909
    %v2911 = vadd.f32 %v2907, %v2910
    %s2912 = sld [smem:[#allocation2 + $0x10f]]
    %v2913 = vstv %s2912
    %v2914 = vmul.f32 %v65, %v2913
    %v2915 = vadd.f32 %v2911, %v2914
    %s2916 = sld [smem:[#allocation2 + $0x18f]]
    %v2917 = vstv %s2916
    %v2918 = vmul.f32 %v66, %v2917
    %v2919 = vadd.f32 %v2915, %v2918
    %s2920 = sld [smem:[#allocation2 + $0x20f]]
    %v2921 = vstv %s2920
    %v2922 = vmul.f32 %v67, %v2921
    %v2923 = vadd.f32 %v2919, %v2922
    %s2924 = sld [smem:[#allocation2 + $0x28f]]
    %v2925 = vstv %s2924
    %v2926 = vmul.f32 %v68, %v2925
    %v2927 = vadd.f32 %v2923, %v2926
    %s2928 = sld [smem:[#allocation2 + $0x30f]]
    %v2929 = vstv %s2928
    %v2930 = vmul.f32 %v69, %v2929
    %v2931 = vadd.f32 %v2927, %v2930
    %s2932 = sld [smem:[#allocation2 + $0x38f]]
    %v2933 = vstv %s2932
    %v2934 = vmul.f32 %v70, %v2933
    %v2935 = vadd.f32 %v2931, %v2934
    %s2936 = sld [smem:[#allocation2 + $0x40f]]
    %v2937 = vstv %s2936
    %v2938 = vmul.f32 %v71, %v2937
    %v2939 = vadd.f32 %v2935, %v2938
    %s2940 = sld [smem:[#allocation6 + $0xf]]
    %v2941 = vstv %s2940
    %v2942 = vadd.f32 %v2939, %v2941
    %v2943 = vmax.f32 %v2942, 0.0
    %v2944 = vld [vmem:[#allocation8 + $0x78] sm:$0xff]
    %v2945 = vld [vmem:[#allocation8 + $0xf8] sm:$0xff]
    %v2946 = vld [vmem:[#allocation8 + $0x178] sm:$0xff]
    %v2947 = vld [vmem:[#allocation8 + $0x1f8] sm:$0xff]
    %v2948 = vld [vmem:[#allocation8 + $0x278] sm:$0xff]
    %v2949 = vld [vmem:[#allocation8 + $0x2f8] sm:$0xff]
    %v2950 = vld [vmem:[#allocation8 + $0x378] sm:$0xff]
    %v2951 = vld [vmem:[#allocation8 + $0x3f8] sm:$0xff]
    %v2952 = vld [vmem:[#allocation8 + $0x478] sm:$0xff]
    %v2953 = vld [vmem:[#allocation8 + $0x4f8] sm:$0xff]
    %v2954 = vld [vmem:[#allocation8 + $0x578] sm:$0xff]
    %v2955 = vld [vmem:[#allocation8 + $0x5f8] sm:$0xff]
    %v2956 = vld [vmem:[#allocation8 + $0x678] sm:$0xff]
    %v2957 = vld [vmem:[#allocation8 + $0x6f8] sm:$0xff]
    %v2958 = vld [vmem:[#allocation8 + $0x778] sm:$0xff]
    %v2959 = vld [vmem:[#allocation8 + $0x7f8] sm:$0xff]
    %v2962 = vunpack.c.l.s4 1983009808
    %v2963 = vunpack.c.0.s8 %v2962
    %v2964 = vlaneseq
    %v2965 = vshrl.u32 %v2964, 7
    %v2966 = vsub.s32 %v2963, %v2965
    %v2967 = vrot.slane %v2943, %v2966
    %v2968 = vcombine.high %v2967, %v2967
    %v2971 = vpack.c.bf16 %v2967, %v2967
    %v2972 = vpack.c.bf16 %v2968, %v2968
    %v2989 = vunpack.c.l.b16 %v2944
    %v2990 = vunpack.c.h.b16 %v2944
    %v2991 = vunpack.c.l.b16 %v2945
    %v2992 = vunpack.c.h.b16 %v2945
    %v2993 = vunpack.c.l.b16 %v2946
    %v2994 = vunpack.c.h.b16 %v2946
    %v2995 = vunpack.c.l.b16 %v2947
    %v2996 = vunpack.c.h.b16 %v2947
    %v2997 = vunpack.c.l.b16 %v2948
    %v2998 = vunpack.c.h.b16 %v2948
    %v2999 = vunpack.c.l.b16 %v2949
    %v3000 = vunpack.c.h.b16 %v2949
    %v3001 = vunpack.c.l.b16 %v2950
    %v3002 = vunpack.c.h.b16 %v2950
    %v3003 = vunpack.c.l.b16 %v2951
    %v3004 = vunpack.c.h.b16 %v2951
    %v3005 = vunpack.c.l.b16 %v2952
    %v3006 = vunpack.c.h.b16 %v2952
    %v3007 = vunpack.c.l.b16 %v2953
    %v3008 = vunpack.c.h.b16 %v2953
    %v3009 = vunpack.c.l.b16 %v2954
    %v3010 = vunpack.c.h.b16 %v2954
    %v3011 = vunpack.c.l.b16 %v2955
    %v3012 = vunpack.c.h.b16 %v2955
    %v3013 = vunpack.c.l.b16 %v2956
    %v3014 = vunpack.c.h.b16 %v2956
    %v3015 = vunpack.c.l.b16 %v2957
    %v3016 = vunpack.c.h.b16 %v2957
    %v3017 = vunpack.c.l.b16 %v2958
    %v3018 = vunpack.c.h.b16 %v2958
    %v3019 = vunpack.c.l.b16 %v2959
    %v3020 = vunpack.c.h.b16 %v2959
    %v3021 = vpack.c.b16 %v2991, %v2989
    %v3022 = vpack.c.b16 %v2992, %v2990
    %v3023 = vpack.c.b16 %v2995, %v2993
    %v3024 = vpack.c.b16 %v2996, %v2994
    %v3025 = vpack.c.b16 %v2999, %v2997
    %v3026 = vpack.c.b16 %v3000, %v2998
    %v3027 = vpack.c.b16 %v3003, %v3001
    %v3028 = vpack.c.b16 %v3004, %v3002
    %v3029 = vpack.c.b16 %v3007, %v3005
    %v3030 = vpack.c.b16 %v3008, %v3006
    %v3031 = vpack.c.b16 %v3011, %v3009
    %v3032 = vpack.c.b16 %v3012, %v3010
    %v3033 = vpack.c.b16 %v3015, %v3013
    %v3034 = vpack.c.b16 %v3016, %v3014
    %v3035 = vpack.c.b16 %v3019, %v3017
    %v3036 = vpack.c.b16 %v3020, %v3018
    %3053 = vmatprep.subr.bf16.mxu0 %v3022
    %3054 = vmatpush1.bf16.xpose.msra.mxu0 %v3021
    %3055 = vmatprep.subr.bf16.mxu0 %v3024
    %3056 = vmatpush1.bf16.xpose.msra.mxu0 %v3023
    %3057 = vmatprep.subr.bf16.mxu0 %v3026
    %3058 = vmatpush1.bf16.xpose.msra.mxu0 %v3025
    %3059 = vmatprep.subr.bf16.mxu0 %v3028
    %3060 = vmatpush1.bf16.xpose.msra.mxu0 %v3027
    %3061 = vmatprep.subr.bf16.mxu0 %v3030
    %3062 = vmatpush1.bf16.xpose.msra.mxu0 %v3029
    %3063 = vmatprep.subr.bf16.mxu0 %v3032
    %3064 = vmatpush1.bf16.xpose.msra.mxu0 %v3031
    %3065 = vmatprep.subr.bf16.mxu0 %v3034
    %3066 = vmatpush1.bf16.xpose.msra.mxu0 %v3033
    %3067 = vmatprep.subr.bf16.mxu0 %v3036
    %3068 = vmatpush1.bf16.xpose.msra.mxu0 %v3035
    %3069 = vmatprep.subr.bf16.mxu0 0
    %3070 = vmatpush1.bf16.xpose.msra.mxu0 0
    %3071 = vmatprep.subr.bf16.mxu0 0
    %3072 = vmatpush1.bf16.xpose.msra.mxu0 0
    %3073 = vmatprep.subr.bf16.mxu0 0
    %3074 = vmatpush1.bf16.xpose.msra.mxu0 0
    %3075 = vmatprep.subr.bf16.mxu0 0
    %3076 = vmatpush1.bf16.xpose.msra.mxu0 0
    %3077 = vmatprep.subr.bf16.mxu0 0
    %3078 = vmatpush1.bf16.xpose.msra.mxu0 0
    %3079 = vmatprep.subr.bf16.mxu0 0
    %3080 = vmatpush1.bf16.xpose.msra.mxu0 0
    %3081 = vmatprep.subr.bf16.mxu0 0
    %3082 = vmatpush1.bf16.xpose.msra.mxu0 0
    %3083 = vmatprep.subr.bf16.mxu0 0
    %3084 = vmatpush1.bf16.xpose.msra.mxu0 0
    %3085 = vmatprep.mubr.bf16.mxu0 %v2972
    %3086 = vmatmul.mubr.bf16.gmra.mrb[0].mxu0 %v2971
    %v3087 = vpop.f32.mrb[0].mxu0
    %v3088 = vadd.f32 0.0, %v3087
    %v3089 = vpop.f32.mrb[0].mxu0
    %v3090 = vpop.f32.mrb[0].mxu0
    %v3091 = vpop.f32.mrb[0].mxu0
    %3092 = vdwg.mxu0
    %v3093 = vadd.f32 %v2904, %v3088
    %v3094 = vld [vmem:[%s4] sm:$0x1]
    %v3096 = vlaneseq
    %v3097 = vshrl.u32 %v3096, 7
    %v3098 = vsub.s32 0, %v3097
    %v3099 = vrot.slane %v3094, %v3098
    %v3101 = vadd.f32 %v3093, %v3099
    %3102 = vst [vmem:[#allocation9] sm:$0x3] %v3101
    // Predicated region
    $region34: #{encoder_forward.1} parent=1 // pred_check
      _
    $region35: #{encoder_forward.1} parent=1 // pred_check_branch
      %3104 = sbr.rel (0) target = $region37
    $region36: #{encoder_forward.1} parent=1 // pred_region
      %s3106 = ssub.s32 32, 32
      %3107 = vsyncadd [#allocation4], %s3106
      %s3109 = sshll.u32 [#allocation9], 4
      %s3110 = int_to_ptr.vmem [resolvable:$true] %s3109
      %3112 = dma.vmem_to_hbm [thread:$0]  %s3110, 32, %s5, [#allocation4]
    $region37: #{encoder_forward.1} parent=1 // pred_fallthru
      _
    // Predicated region
    $region38: #{encoder_forward.1} parent=1 // pred_check
      _
    $region39: #{encoder_forward.1} parent=1 // pred_check_branch
      %3114 = sbr.rel (0) target = $region41
    $region40: #{encoder_forward.1} parent=1 // pred_region
      %3115 = dma.done [#allocation4], 32
    $region41: #{encoder_forward.1} parent=1 // pred_fallthru
      _
    %3116 = vsyncpa [#allocation3], 1
    %3117 = vsyncpa [#allocation4], 1
    %3118 = vsyncpa [#allocation5], 1
    %3119 = vsyncpa [#allocation7], 1

</llo_original>
